<compile_context>
chip_gen: v6e
topology: v6e:2x2x1
jax: 0.10.0
libtpu: 0.0.40
codegen_flags: <defaults>
</compile_context>

<pallas_src>
import math
import functools

import jax
import jax.numpy as jnp
from jax.experimental import pallas as pl
from jax.experimental.pallas import tpu as pltpu


def _transformer_kernel(x_ref, wqkv_ref, wo_ref, w1_ref, b1_ref, w2_ref, b2_ref,
                        g1_ref, beta1_ref, g2_ref, beta2_ref,
                        out_ref, score_ref,
                        n1_ref, ff_ref,
                        *, num_heads, head_dim):
    eps = 1e-5
    bt, S, E = x_ref.shape
    f = pl.program_id(1)
    nf = pl.num_programs(1)

    # ---- f == 0: attention + residual + LayerNorm1; init the FFN accumulator --------
    @pl.when(f == 0)
    def _attention_and_norm1():
        x2 = x_ref[...].reshape(bt * S, E)                     # fold batch into M dim

        # Fused Q/K/V projection: one MXU matmul, bf16 inputs, f32 accumulation.
        # 1/sqrt(head_dim) is already folded into the Q columns of wqkv (prep time).
        qkv = jnp.dot(x2.astype(jnp.bfloat16), wqkv_ref[...],
                      preferred_element_type=jnp.float32)      # (bt*S, 3E)
        qb = qkv[:, :E].reshape(bt, S, E).astype(jnp.bfloat16)
        kb = qkv[:, E:2 * E].reshape(bt, S, E).astype(jnp.bfloat16)
        vb = qkv[:, 2 * E:].reshape(bt, S, E).astype(jnp.bfloat16)

        # Per-head attention.  Each head's output is folded directly into the output
        # projection (mha += attn_h @ wo_h), so nothing is stored at sub-128 lane
        # offsets (no masked vst / no concat / no attention scratch buffer).
        mha = jnp.zeros((bt * S, E), jnp.float32)
        for h in range(num_heads):
            sl = slice(h * head_dim, (h + 1) * head_dim)
            s = jax.lax.dot_general(                           # (bt, S, S)
                qb[:, :, sl], kb[:, :, sl],
                dimension_numbers=(((2,), (2,)), ((0,), (0,))),
                preferred_element_type=jnp.float32)
            s = s - jnp.max(s, axis=-1, keepdims=True)
            ez = jnp.exp(s)
            # Exact reciprocal: stored probabilities sum to 1 (review correctness note).
            p = ez * pl.reciprocal(jnp.sum(ez, axis=-1, keepdims=True), approx=False)
            score_ref[:, h, :, :] = p.astype(score_ref.dtype)  # lane-dense (S,S) slab
            attn = jax.lax.dot_general(                        # (bt, S, d)
                p.astype(jnp.bfloat16), vb[:, :, sl],
                dimension_numbers=(((2,), (1,)), ((0,), (0,))),
                preferred_element_type=jnp.float32)
            mha = mha + jnp.dot(
                attn.reshape(bt * S, head_dim).astype(jnp.bfloat16),
                wo_ref[sl, :],                                 # sublane slice of wo
                preferred_element_type=jnp.float32)

        # residual + LayerNorm 1 (f32)
        r1 = x2 + mha
        mu1 = jnp.mean(r1, axis=-1, keepdims=True)
        var1 = jnp.mean((r1 - mu1) ** 2, axis=-1, keepdims=True)
        n1_ref[...] = ((r1 - mu1) * jax.lax.rsqrt(var1 + eps)
                       * g1_ref[...] + beta1_ref[...])
        ff_ref[...] = jnp.zeros_like(ff_ref)

    # ---- every step: one F-tile of the feedforward (Linear -> ReLU -> Linear) -------
    n1b = n1_ref[...].astype(jnp.bfloat16)
    h1 = jnp.dot(n1b, w1_ref[...], preferred_element_type=jnp.float32) + b1_ref[...]
    h1 = jnp.maximum(h1, 0.0)
    ff_ref[...] += jnp.dot(h1.astype(jnp.bfloat16), w2_ref[...],
                           preferred_element_type=jnp.float32)

    # ---- f == last: second bias, residual + LayerNorm2, outer skip, write output ----
    @pl.when(f == nf - 1)
    def _norm2_and_out():
        x2 = x_ref[...].reshape(bt * S, E)
        r2 = n1_ref[...] + ff_ref[...] + b2_ref[...]
        mu2 = jnp.mean(r2, axis=-1, keepdims=True)
        var2 = jnp.mean((r2 - mu2) ** 2, axis=-1, keepdims=True)
        n2 = (r2 - mu2) * jax.lax.rsqrt(var2 + eps) * g2_ref[...] + beta2_ref[...]
        out_ref[...] = (n2 + x2).reshape(bt, S, E)


def _choose_block_b(batch, seq, rows_target=512):
    """Pick how many batch rows to fold into one grid step.

    Bigger bt*S means bigger matmul M dims and amortized per-step overhead; the old
    '>= 2 grid steps' rule is dropped (it only helps v7x's dual TensorCores and is pure
    overhead on single-TC v5e/v6e).  Target up to ~512 rows per step."""
    divisors = [d for d in range(1, batch + 1) if batch % d == 0]
    cands = [d for d in divisors if d * seq <= rows_target]
    return max(cands) if cands else 1


def _choose_block_f(fc_dim, max_tf=2048):
    """FFN hidden-dim tile.  Must equal F or be a multiple of 128 (lane constraint)."""
    if fc_dim <= max_tf or fc_dim % 128 != 0:
        return fc_dim
    for tf in (2048, 1024, 512, 256, 128):
        if fc_dim % tf == 0:
            return tf
    return fc_dim


def _pick_vmem_limit():
    """~75% of physical VMEM: ~48 MiB on v7x (64 MiB), ~96 MiB on v5e/v6e (128 MiB)."""
    cap = 64 << 20
    try:
        info = pltpu.get_tpu_info()
        cap = int(getattr(info, "vmem_capacity_bytes", cap))
    except Exception:
        pass
    return max(32 << 20, min((cap * 3) // 4, 112 << 20))


def prepare_params(params, *, num_heads):
    """One-time weight prep (do NOT call per step): fuse QKV, fold 1/sqrt(d) into the
    Q columns in f32, then cast matmul weights to bf16."""
    E = params["wq"].shape[0]
    d = E // num_heads
    wq_scaled = params["wq"] * (1.0 / math.sqrt(d))            # fold scale pre-cast
    wqkv = jnp.concatenate([wq_scaled, params["wk"], params["wv"]],
                           axis=1).astype(jnp.bfloat16)
    r = lambda a: jnp.asarray(a, jnp.float32).reshape(1, -1)
    return dict(
        wqkv=wqkv,
        wo=params["wo"].astype(jnp.bfloat16),
        w1=params["w1"].astype(jnp.bfloat16),
        b1=r(params["b1"]),
        w2=params["w2"].astype(jnp.bfloat16),
        b2=r(params["b2"]),
        g1=r(params["g1"]), beta1=r(params["beta1"]),
        g2=r(params["g2"]), beta2=r(params["beta2"]),
    )


def transformer_layer(x, prepared, *, num_heads, block_b=None, block_f=None,
                      scores_heads_last=False, scores_dtype=jnp.float32):
    B, S, E = x.shape
    F = prepared["w1"].shape[1]
    H = num_heads
    assert E % H == 0
    d = E // H

    bt = block_b if block_b is not None else _choose_block_b(B, S)
    tf = block_f if block_f is not None else _choose_block_f(F)
    assert B % bt == 0 and F % tf == 0

    kern = functools.partial(_transformer_kernel, num_heads=H, head_dim=d)

    def _in_specs(single_buffer_weights):
        # Grid-invariant inputs (weights / biases / LN params): single-buffer them so
        # they are not duplicated in VMEM (matters most on v7x's 64 MiB VMEM).
        if single_buffer_weights:
            const = lambda shp: pl.BlockSpec(shp, lambda b, f: (0,) * len(shp),
                                             pipeline_mode=pl.Buffered(1))
        else:
            const = lambda shp: pl.BlockSpec(shp, lambda b, f: (0,) * len(shp))
        return [
            pl.BlockSpec((bt, S, E), lambda b, f: (b, 0, 0)),   # x (varies over b)
            const((E, 3 * E)),                                  # fused wq|wk|wv
            const((E, E)),                                      # wo
            pl.BlockSpec((E, tf), lambda b, f: (0, f)),         # w1 F-tile
            pl.BlockSpec((1, tf), lambda b, f: (0, f)),         # b1 F-tile
            pl.BlockSpec((tf, E), lambda b, f: (f, 0)),         # w2 F-tile
            const((1, E)),                                      # b2
            const((1, E)), const((1, E)),                       # ln1 gamma / beta
            const((1, E)), const((1, E)),                       # ln2 gamma / beta
        ]

    out_specs = [
        pl.BlockSpec((bt, S, E), lambda b, f: (b, 0, 0)),       # layer output
        pl.BlockSpec((bt, H, S, S), lambda b, f: (b, 0, 0, 0)),  # attn probs, lane-dense
    ]
    out_shapes = (
        jax.ShapeDtypeStruct((B, S, E), jnp.float32),
        jax.ShapeDtypeStruct((B, H, S, S), scores_dtype),
    )
    scratch_shapes = [
        pltpu.VMEM((bt * S, E), jnp.float32),   # n1 (post-LN1), reused by every F-tile
        pltpu.VMEM((bt * S, E), jnp.float32),   # FFN accumulator over F-tiles
    ]

    score_bytes = jnp.dtype(scores_dtype).itemsize * B * H * S * S
    cost = pl.CostEstimate(
        flops=int(2 * B * S * (4 * E * E + 2 * E * F) + 4 * B * H * S * S * d),
        transcendentals=int(B * H * S * S),
        bytes_accessed=int(4 * (2 * B * S * E) + 2 * (4 * E * E + 2 * E * F)
                           + score_bytes),
    )
    cp = pltpu.CompilerParams(
        dimension_semantics=("parallel", "arbitrary"),
        vmem_limit_bytes=_pick_vmem_limit(),
    )
    args = (x, prepared["wqkv"], prepared["wo"], prepared["w1"], prepared["b1"],
            prepared["w2"], prepared["b2"], prepared["g1"], prepared["beta1"],
            prepared["g2"], prepared["beta2"])

    def _call(single_buffer_weights):
        return pl.pallas_call(
            kern,
            out_shape=out_shapes,
            grid_spec=pltpu.PrefetchScalarGridSpec(
                num_scalar_prefetch=0,
                grid=(B // bt, F // tf),
                in_specs=_in_specs(single_buffer_weights),
                out_specs=out_specs,
                scratch_shapes=scratch_shapes),
            compiler_params=cp,
            cost_estimate=cost,
        )(*args)

    try:
        out, scores_bhss = _call(True)
    except Exception:
        # pl.Buffered(1) single-buffering not supported by this jax/Mosaic version;
        # fall back to default double-buffered specs.
        out, scores_bhss = _call(False)

    if scores_heads_last:
        # Torch module convention: torch.stack(scores, dim=-1) -> (B, S, S, H).
        # Transpose done by XLA outside the kernel only when explicitly requested.
        return out, jnp.transpose(scores_bhss, (0, 2, 3, 1))
    return out, scores_bhss


def _reference(x, params, *, num_heads):
    """Plain-JAX f32 reference mirroring the PyTorch forward (dropout = identity)."""
    B, S, E = x.shape
    d = E // num_heads
    eps = 1e-5

    q = x @ params["wq"]
    k = x @ params["wk"]
    v = x @ params["wv"]
    attns, scores = [], []
    for h in range(num_heads):
        sl = slice(h * d, (h + 1) * d)
        s = jnp.einsum("bqe,bke->bqk", q[..., sl], k[..., sl]) / math.sqrt(d)
        p = jax.nn.softmax(s, axis=-1)
        attns.append(jnp.einsum("bqk,bke->bqe", p, v[..., sl]))
        scores.append(p)
    attn_cat = jnp.concatenate(attns, axis=-1)
    score_stack = jnp.stack(scores, axis=-1)
    mha = attn_cat @ params["wo"]

    def ln(y, g, b):
        mu = jnp.mean(y, axis=-1, keepdims=True)
        var = jnp.mean((y - mu) ** 2, axis=-1, keepdims=True)
        return (y - mu) * jax.lax.rsqrt(var + eps) * g + b

    r1 = ln(x + mha, params["g1"], params["beta1"])
    ff = jnp.maximum(r1 @ params["w1"] + params["b1"], 0.0) @ params["w2"] + params["b2"]
    r2 = ln(r1 + ff, params["g2"], params["beta2"])
    return r2 + x, score_stack


if __name__ == "__main__":
    # Small shapes consistent with the module: batch=2, seq=8, embed_dim=32,
    # num_heads=4 (head_dim=8), fc_dim=64.
    B, S, E, H, F = 2, 8, 32, 4, 64

    key = jax.random.PRNGKey(0)
    keys = jax.random.split(key, 10)

    scale = 0.1
    # Per-head WQ/WK/WV are (d, E) in PyTorch; stored transposed + concatenated -> (E, E)
    wq = scale * jax.random.normal(keys[0], (E, E), jnp.float32)
    wk = scale * jax.random.normal(keys[1], (E, E), jnp.float32)
    wv = scale * jax.random.normal(keys[2], (E, E), jnp.float32)
    wo = scale * jax.random.normal(keys[3], (E, E), jnp.float32)   # out-proj weight.T
    w1 = scale * jax.random.normal(keys[4], (E, F), jnp.float32)   # ff1 weight.T
    b1 = scale * jax.random.normal(keys[5], (1, F), jnp.float32)
    w2 = scale * jax.random.normal(keys[6], (F, E), jnp.float32)   # ff2 weight.T
    b2 = scale * jax.random.normal(keys[7], (1, E), jnp.float32)
    # LayerNorm params at PyTorch defaults (ones / zeros)
    g1 = jnp.ones((1, E), jnp.float32)
    beta1 = jnp.zeros((1, E), jnp.float32)
    g2 = jnp.ones((1, E), jnp.float32)
    beta2 = jnp.zeros((1, E), jnp.float32)

    params = dict(wq=wq, wk=wk, wv=wv, wo=wo, w1=w1, b1=b1, w2=w2, b2=b2,
                  g1=g1, beta1=beta1, g2=g2, beta2=beta2)

    x = jax.random.normal(keys[8], (B, S, E), jnp.float32)

    prepared = prepare_params(params, num_heads=H)   # one-time weight prep
    out, scores_bhss = transformer_layer(x, prepared, num_heads=H)
    out = jax.block_until_ready(out)
    scores_bhss = jax.block_until_ready(scores_bhss)

    ref_out, ref_scores = _reference(x, params, num_heads=H)   # ref scores (B,S,S,H)
    assert out.shape == (B, S, E)
    assert scores_bhss.shape == (B, H, S, S)
    # Tolerances account for bf16 matmul inputs (and bf16 weight rounding of the folded
    # 1/sqrt(d) scale) in the kernel; accumulation and softmax/LayerNorm are f32.
    assert jnp.allclose(out, ref_out, atol=3e-2, rtol=3e-2)
    assert jnp.allclose(scores_bhss, jnp.transpose(ref_scores, (0, 3, 1, 2)),
                        atol=5e-3, rtol=5e-3)

    print("KERNEL_OK")
</pallas_src>

<mosaic_0001>
module attributes {stable_mosaic.version = 11 : i64} {
  func.func @_transformer_kernel(%arg0: i32, %arg1: i32, %arg2: memref<2x8x32xf32, #tpu.memory_space<vmem>>, %arg3: memref<32x96xbf16, #tpu.memory_space<vmem>>, %arg4: memref<32x32xbf16, #tpu.memory_space<vmem>>, %arg5: memref<32x64xbf16, #tpu.memory_space<vmem>>, %arg6: memref<1x64xf32, #tpu.memory_space<vmem>>, %arg7: memref<64x32xbf16, #tpu.memory_space<vmem>>, %arg8: memref<1x32xf32, #tpu.memory_space<vmem>>, %arg9: memref<1x32xf32, #tpu.memory_space<vmem>>, %arg10: memref<1x32xf32, #tpu.memory_space<vmem>>, %arg11: memref<1x32xf32, #tpu.memory_space<vmem>>, %arg12: memref<1x32xf32, #tpu.memory_space<vmem>>, %arg13: memref<2x8x32xf32, #tpu.memory_space<vmem>>, %arg14: memref<2x4x8x8xf32, #tpu.memory_space<vmem>>, %arg15: memref<16x32xf32, #tpu.memory_space<vmem>>, %arg16: memref<16x32xf32, #tpu.memory_space<vmem>>) attributes {dimension_semantics = [#tpu.dimension_semantics<parallel>, #tpu.dimension_semantics<arbitrary>], iteration_bounds = array<i64: 1, 1>, scalar_prefetch = 0 : i64, scratch_operands = 2 : i64, tpu.core_type = #tpu.core_type<tc>, window_params = [{transform_indices = @transform_0, window_bounds = array<i64: 2, 8, 32>}, {pipeline_mode = #tpu.pipeline_mode<synchronous>, transform_indices = @transform_1, window_bounds = array<i64: 32, 96>}, {pipeline_mode = #tpu.pipeline_mode<synchronous>, transform_indices = @transform_2, window_bounds = array<i64: 32, 32>}, {transform_indices = @transform_3, window_bounds = array<i64: 32, 64>}, {transform_indices = @transform_4, window_bounds = array<i64: 1, 64>}, {transform_indices = @transform_5, window_bounds = array<i64: 64, 32>}, {pipeline_mode = #tpu.pipeline_mode<synchronous>, transform_indices = @transform_6, window_bounds = array<i64: 1, 32>}, {pipeline_mode = #tpu.pipeline_mode<synchronous>, transform_indices = @transform_7, window_bounds = array<i64: 1, 32>}, {pipeline_mode = #tpu.pipeline_mode<synchronous>, transform_indices = @transform_8, window_bounds = array<i64: 1, 32>}, {pipeline_mode = #tpu.pipeline_mode<synchronous>, transform_indices = @transform_9, window_bounds = array<i64: 1, 32>}, {pipeline_mode = #tpu.pipeline_mode<synchronous>, transform_indices = @transform_10, window_bounds = array<i64: 1, 32>}, {transform_indices = @transform_11, window_bounds = array<i64: 2, 8, 32>}, {transform_indices = @transform_12, window_bounds = array<i64: 2, 4, 8, 8>}]} {
    %c0_i32 = arith.constant 0 : i32
    %0 = arith.cmpi eq, %arg1, %c0_i32 : i32
    %1 = arith.extui %0 : i1 to i32
    %c0_i32_0 = arith.constant 0 : i32
    %2 = arith.cmpi ne, %1, %c0_i32_0 : i32
    scf.if %2 {
      %c0_16 = arith.constant 0 : index
      %c0_17 = arith.constant 0 : index
      %c0_18 = arith.constant 0 : index
      %21 = vector.load %arg2[%c0_16, %c0_17, %c0_18] : memref<2x8x32xf32, #tpu.memory_space<vmem>>, vector<2x8x32xf32>
      %22 = vector.shape_cast %21 : vector<2x8x32xf32> to vector<16x32xf32>
      %23 = arith.truncf %22 : vector<16x32xf32> to vector<16x32xbf16>
      %c0_19 = arith.constant 0 : index
      %c0_20 = arith.constant 0 : index
      %24 = vector.load %arg3[%c0_19, %c0_20] : memref<32x96xbf16, #tpu.memory_space<vmem>>, vector<32x96xbf16>
      %cst_21 = arith.constant dense<0.000000e+00> : vector<16x96xf32>
      %25 = tpu.matmul %23, %24, %cst_21 {dimension_numbers = #tpu.dot_dimension_numbers<[1], [0], [0], [1], [0, 0, 1, 1], [], []>} : vector<16x32xbf16>, vector<32x96xbf16>, vector<16x96xf32> -> vector<16x96xf32>
      %26 = vector.extract_strided_slice %25 {offsets = [0, 0], sizes = [16, 32], strides = [1, 1]} : vector<16x96xf32> to vector<16x32xf32>
      %27 = vector.shape_cast %26 : vector<16x32xf32> to vector<2x8x32xf32>
      %28 = arith.truncf %27 : vector<2x8x32xf32> to vector<2x8x32xbf16>
      %29 = vector.extract_strided_slice %25 {offsets = [0, 32], sizes = [16, 32], strides = [1, 1]} : vector<16x96xf32> to vector<16x32xf32>
      %30 = vector.shape_cast %29 : vector<16x32xf32> to vector<2x8x32xf32>
      %31 = arith.truncf %30 : vector<2x8x32xf32> to vector<2x8x32xbf16>
      %32 = vector.extract_strided_slice %25 {offsets = [0, 64], sizes = [16, 32], strides = [1, 1]} : vector<16x96xf32> to vector<16x32xf32>
      %33 = vector.shape_cast %32 : vector<16x32xf32> to vector<2x8x32xf32>
      %34 = arith.truncf %33 : vector<2x8x32xf32> to vector<2x8x32xbf16>
      %cst_22 = arith.constant 0.000000e+00 : f32
      %35 = vector.broadcast %cst_22 : f32 to vector<16x32xf32>
      %36 = vector.extract_strided_slice %28 {offsets = [0, 0, 0], sizes = [2, 8, 8], strides = [1, 1, 1]} : vector<2x8x32xbf16> to vector<2x8x8xbf16>
      %37 = vector.extract_strided_slice %31 {offsets = [0, 0, 0], sizes = [2, 8, 8], strides = [1, 1, 1]} : vector<2x8x32xbf16> to vector<2x8x8xbf16>
      %cst_23 = arith.constant dense<0.000000e+00> : vector<2x8x8xf32>
      %38 = tpu.matmul %36, %37, %cst_23 {dimension_numbers = #tpu.dot_dimension_numbers<[2], [2], [1], [1], [0, 0, 0, 1, 1, 1], [0], [0]>} : vector<2x8x8xbf16>, vector<2x8x8xbf16>, vector<2x8x8xf32> -> vector<2x8x8xf32>
      %cst_24 = arith.constant dense<0xFF800000> : vector<2x8xf32>
      %39 = vector.multi_reduction <maximumf>, %38, %cst_24 [2] : vector<2x8x8xf32> to vector<2x8xf32>
      %40 = vector.shape_cast %39 : vector<2x8xf32> to vector<2x8x1xf32>
      %41 = vector.broadcast %40 : vector<2x8x1xf32> to vector<2x8x8xf32>
      %42 = arith.subf %38, %41 : vector<2x8x8xf32>
      %43 = math.exp %42 : vector<2x8x8xf32>
      %cst_25 = arith.constant dense<0.000000e+00> : vector<2x8xf32>
      %44 = vector.multi_reduction <add>, %43, %cst_25 [2] : vector<2x8x8xf32> to vector<2x8xf32>
      %45 = vector.shape_cast %44 : vector<2x8xf32> to vector<2x8x1xf32>
      %46 = tpu.reciprocal %45 : vector<2x8x1xf32> -> vector<2x8x1xf32>
      %47 = vector.broadcast %46 : vector<2x8x1xf32> to vector<2x8x8xf32>
      %48 = arith.mulf %43, %47 : vector<2x8x8xf32>
      %c0_26 = arith.constant 0 : index
      %c0_27 = arith.constant 0 : index
      %c0_28 = arith.constant 0 : index
      %c0_29 = arith.constant 0 : index
      %49 = vector.load %arg14[%c0_26, %c0_27, %c0_28, %c0_29] : memref<2x4x8x8xf32, #tpu.memory_space<vmem>>, vector<2x1x8x8xf32>
      %50 = vector.shape_cast %49 : vector<2x1x8x8xf32> to vector<2x8x8xf32>
      %51 = vector.shape_cast %48 : vector<2x8x8xf32> to vector<2x1x8x8xf32>
      tpu.vector_store %arg14[%c0_26, %c0_27, %c0_28, %c0_29], %51 {strides = array<i32>} : memref<2x4x8x8xf32, #tpu.memory_space<vmem>>, vector<2x1x8x8xf32>,
      %52 = arith.truncf %48 : vector<2x8x8xf32> to vector<2x8x8xbf16>
      %53 = vector.extract_strided_slice %34 {offsets = [0, 0, 0], sizes = [2, 8, 8], strides = [1, 1, 1]} : vector<2x8x32xbf16> to vector<2x8x8xbf16>
      %cst_30 = arith.constant dense<0.000000e+00> : vector<2x8x8xf32>
      %54 = tpu.matmul %52, %53, %cst_30 {dimension_numbers = #tpu.dot_dimension_numbers<[2], [1], [1], [2], [0, 0, 0, 1, 1, 2], [0], [0]>} : vector<2x8x8xbf16>, vector<2x8x8xbf16>, vector<2x8x8xf32> -> vector<2x8x8xf32>
      %55 = vector.shape_cast %54 : vector<2x8x8xf32> to vector<16x8xf32>
      %56 = arith.truncf %55 : vector<16x8xf32> to vector<16x8xbf16>
      %c0_31 = arith.constant 0 : index
      %c0_32 = arith.constant 0 : index
      %57 = vector.load %arg4[%c0_31, %c0_32] : memref<32x32xbf16, #tpu.memory_space<vmem>>, vector<8x32xbf16>
      %cst_33 = arith.constant dense<0.000000e+00> : vector<16x32xf32>
      %58 = tpu.matmul %56, %57, %cst_33 {dimension_numbers = #tpu.dot_dimension_numbers<[1], [0], [0], [1], [0, 0, 1, 1], [], []>} : vector<16x8xbf16>, vector<8x32xbf16>, vector<16x32xf32> -> vector<16x32xf32>
      %59 = arith.addf %35, %58 : vector<16x32xf32>
      %60 = vector.extract_strided_slice %28 {offsets = [0, 0, 8], sizes = [2, 8, 8], strides = [1, 1, 1]} : vector<2x8x32xbf16> to vector<2x8x8xbf16>
      %61 = vector.extract_strided_slice %31 {offsets = [0, 0, 8], sizes = [2, 8, 8], strides = [1, 1, 1]} : vector<2x8x32xbf16> to vector<2x8x8xbf16>
      %cst_34 = arith.constant dense<0.000000e+00> : vector<2x8x8xf32>
      %62 = tpu.matmul %60, %61, %cst_34 {dimension_numbers = #tpu.dot_dimension_numbers<[2], [2], [1], [1], [0, 0, 0, 1, 1, 1], [0], [0]>} : vector<2x8x8xbf16>, vector<2x8x8xbf16>, vector<2x8x8xf32> -> vector<2x8x8xf32>
      %cst_35 = arith.constant dense<0xFF800000> : vector<2x8xf32>
      %63 = vector.multi_reduction <maximumf>, %62, %cst_35 [2] : vector<2x8x8xf32> to vector<2x8xf32>
      %64 = vector.shape_cast %63 : vector<2x8xf32> to vector<2x8x1xf32>
      %65 = vector.broadcast %64 : vector<2x8x1xf32> to vector<2x8x8xf32>
      %66 = arith.subf %62, %65 : vector<2x8x8xf32>
      %67 = math.exp %66 : vector<2x8x8xf32>
      %cst_36 = arith.constant dense<0.000000e+00> : vector<2x8xf32>
      %68 = vector.multi_reduction <add>, %67, %cst_36 [2] : vector<2x8x8xf32> to vector<2x8xf32>
      %69 = vector.shape_cast %68 : vector<2x8xf32> to vector<2x8x1xf32>
      %70 = tpu.reciprocal %69 : vector<2x8x1xf32> -> vector<2x8x1xf32>
      %71 = vector.broadcast %70 : vector<2x8x1xf32> to vector<2x8x8xf32>
      %72 = arith.mulf %67, %71 : vector<2x8x8xf32>
      %c0_37 = arith.constant 0 : index
      %c1 = arith.constant 1 : index
      %c0_38 = arith.constant 0 : index
      %c0_39 = arith.constant 0 : index
      %73 = vector.load %arg14[%c0_37, %c1, %c0_38, %c0_39] : memref<2x4x8x8xf32, #tpu.memory_space<vmem>>, vector<2x1x8x8xf32>
      %74 = vector.shape_cast %73 : vector<2x1x8x8xf32> to vector<2x8x8xf32>
      %75 = vector.shape_cast %72 : vector<2x8x8xf32> to vector<2x1x8x8xf32>
      tpu.vector_store %arg14[%c0_37, %c1, %c0_38, %c0_39], %75 {strides = array<i32>} : memref<2x4x8x8xf32, #tpu.memory_space<vmem>>, vector<2x1x8x8xf32>,
      %76 = arith.truncf %72 : vector<2x8x8xf32> to vector<2x8x8xbf16>
      %77 = vector.extract_strided_slice %34 {offsets = [0, 0, 8], sizes = [2, 8, 8], strides = [1, 1, 1]} : vector<2x8x32xbf16> to vector<2x8x8xbf16>
      %cst_40 = arith.constant dense<0.000000e+00> : vector<2x8x8xf32>
      %78 = tpu.matmul %76, %77, %cst_40 {dimension_numbers = #tpu.dot_dimension_numbers<[2], [1], [1], [2], [0, 0, 0, 1, 1, 2], [0], [0]>} : vector<2x8x8xbf16>, vector<2x8x8xbf16>, vector<2x8x8xf32> -> vector<2x8x8xf32>
      %79 = vector.shape_cast %78 : vector<2x8x8xf32> to vector<16x8xf32>
      %80 = arith.truncf %79 : vector<16x8xf32> to vector<16x8xbf16>
      %c8 = arith.constant 8 : index
      %c0_41 = arith.constant 0 : index
      %81 = vector.load %arg4[%c8, %c0_41] : memref<32x32xbf16, #tpu.memory_space<vmem>>, vector<8x32xbf16>
      %cst_42 = arith.constant dense<0.000000e+00> : vector<16x32xf32>
      %82 = tpu.matmul %80, %81, %cst_42 {dimension_numbers = #tpu.dot_dimension_numbers<[1], [0], [0], [1], [0, 0, 1, 1], [], []>} : vector<16x8xbf16>, vector<8x32xbf16>, vector<16x32xf32> -> vector<16x32xf32>
      %83 = arith.addf %59, %82 : vector<16x32xf32>
      %84 = vector.extract_strided_slice %28 {offsets = [0, 0, 16], sizes = [2, 8, 8], strides = [1, 1, 1]} : vector<2x8x32xbf16> to vector<2x8x8xbf16>
      %85 = vector.extract_strided_slice %31 {offsets = [0, 0, 16], sizes = [2, 8, 8], strides = [1, 1, 1]} : vector<2x8x32xbf16> to vector<2x8x8xbf16>
      %cst_43 = arith.constant dense<0.000000e+00> : vector<2x8x8xf32>
      %86 = tpu.matmul %84, %85, %cst_43 {dimension_numbers = #tpu.dot_dimension_numbers<[2], [2], [1], [1], [0, 0, 0, 1, 1, 1], [0], [0]>} : vector<2x8x8xbf16>, vector<2x8x8xbf16>, vector<2x8x8xf32> -> vector<2x8x8xf32>
      %cst_44 = arith.constant dense<0xFF800000> : vector<2x8xf32>
      %87 = vector.multi_reduction <maximumf>, %86, %cst_44 [2] : vector<2x8x8xf32> to vector<2x8xf32>
      %88 = vector.shape_cast %87 : vector<2x8xf32> to vector<2x8x1xf32>
      %89 = vector.broadcast %88 : vector<2x8x1xf32> to vector<2x8x8xf32>
      %90 = arith.subf %86, %89 : vector<2x8x8xf32>
      %91 = math.exp %90 : vector<2x8x8xf32>
      %cst_45 = arith.constant dense<0.000000e+00> : vector<2x8xf32>
      %92 = vector.multi_reduction <add>, %91, %cst_45 [2] : vector<2x8x8xf32> to vector<2x8xf32>
      %93 = vector.shape_cast %92 : vector<2x8xf32> to vector<2x8x1xf32>
      %94 = tpu.reciprocal %93 : vector<2x8x1xf32> -> vector<2x8x1xf32>
      %95 = vector.broadcast %94 : vector<2x8x1xf32> to vector<2x8x8xf32>
      %96 = arith.mulf %91, %95 : vector<2x8x8xf32>
      %c0_46 = arith.constant 0 : index
      %c2 = arith.constant 2 : index
      %c0_47 = arith.constant 0 : index
      %c0_48 = arith.constant 0 : index
      %97 = vector.load %arg14[%c0_46, %c2, %c0_47, %c0_48] : memref<2x4x8x8xf32, #tpu.memory_space<vmem>>, vector<2x1x8x8xf32>
      %98 = vector.shape_cast %97 : vector<2x1x8x8xf32> to vector<2x8x8xf32>
      %99 = vector.shape_cast %96 : vector<2x8x8xf32> to vector<2x1x8x8xf32>
      tpu.vector_store %arg14[%c0_46, %c2, %c0_47, %c0_48], %99 {strides = array<i32>} : memref<2x4x8x8xf32, #tpu.memory_space<vmem>>, vector<2x1x8x8xf32>,
      %100 = arith.truncf %96 : vector<2x8x8xf32> to vector<2x8x8xbf16>
      %101 = vector.extract_strided_slice %34 {offsets = [0, 0, 16], sizes = [2, 8, 8], strides = [1, 1, 1]} : vector<2x8x32xbf16> to vector<2x8x8xbf16>
      %cst_49 = arith.constant dense<0.000000e+00> : vector<2x8x8xf32>
      %102 = tpu.matmul %100, %101, %cst_49 {dimension_numbers = #tpu.dot_dimension_numbers<[2], [1], [1], [2], [0, 0, 0, 1, 1, 2], [0], [0]>} : vector<2x8x8xbf16>, vector<2x8x8xbf16>, vector<2x8x8xf32> -> vector<2x8x8xf32>
      %103 = vector.shape_cast %102 : vector<2x8x8xf32> to vector<16x8xf32>
      %104 = arith.truncf %103 : vector<16x8xf32> to vector<16x8xbf16>
      %c16 = arith.constant 16 : index
      %c0_50 = arith.constant 0 : index
      %105 = vector.load %arg4[%c16, %c0_50] : memref<32x32xbf16, #tpu.memory_space<vmem>>, vector<8x32xbf16>
      %cst_51 = arith.constant dense<0.000000e+00> : vector<16x32xf32>
      %106 = tpu.matmul %104, %105, %cst_51 {dimension_numbers = #tpu.dot_dimension_numbers<[1], [0], [0], [1], [0, 0, 1, 1], [], []>} : vector<16x8xbf16>, vector<8x32xbf16>, vector<16x32xf32> -> vector<16x32xf32>
      %107 = arith.addf %83, %106 : vector<16x32xf32>
      %108 = vector.extract_strided_slice %28 {offsets = [0, 0, 24], sizes = [2, 8, 8], strides = [1, 1, 1]} : vector<2x8x32xbf16> to vector<2x8x8xbf16>
      %109 = vector.extract_strided_slice %31 {offsets = [0, 0, 24], sizes = [2, 8, 8], strides = [1, 1, 1]} : vector<2x8x32xbf16> to vector<2x8x8xbf16>
      %cst_52 = arith.constant dense<0.000000e+00> : vector<2x8x8xf32>
      %110 = tpu.matmul %108, %109, %cst_52 {dimension_numbers = #tpu.dot_dimension_numbers<[2], [2], [1], [1], [0, 0, 0, 1, 1, 1], [0], [0]>} : vector<2x8x8xbf16>, vector<2x8x8xbf16>, vector<2x8x8xf32> -> vector<2x8x8xf32>
      %cst_53 = arith.constant dense<0xFF800000> : vector<2x8xf32>
      %111 = vector.multi_reduction <maximumf>, %110, %cst_53 [2] : vector<2x8x8xf32> to vector<2x8xf32>
      %112 = vector.shape_cast %111 : vector<2x8xf32> to vector<2x8x1xf32>
      %113 = vector.broadcast %112 : vector<2x8x1xf32> to vector<2x8x8xf32>
      %114 = arith.subf %110, %113 : vector<2x8x8xf32>
      %115 = math.exp %114 : vector<2x8x8xf32>
      %cst_54 = arith.constant dense<0.000000e+00> : vector<2x8xf32>
      %116 = vector.multi_reduction <add>, %115, %cst_54 [2] : vector<2x8x8xf32> to vector<2x8xf32>
      %117 = vector.shape_cast %116 : vector<2x8xf32> to vector<2x8x1xf32>
      %118 = tpu.reciprocal %117 : vector<2x8x1xf32> -> vector<2x8x1xf32>
      %119 = vector.broadcast %118 : vector<2x8x1xf32> to vector<2x8x8xf32>
      %120 = arith.mulf %115, %119 : vector<2x8x8xf32>
      %c0_55 = arith.constant 0 : index
      %c3 = arith.constant 3 : index
      %c0_56 = arith.constant 0 : index
      %c0_57 = arith.constant 0 : index
      %121 = vector.load %arg14[%c0_55, %c3, %c0_56, %c0_57] : memref<2x4x8x8xf32, #tpu.memory_space<vmem>>, vector<2x1x8x8xf32>
      %122 = vector.shape_cast %121 : vector<2x1x8x8xf32> to vector<2x8x8xf32>
      %123 = vector.shape_cast %120 : vector<2x8x8xf32> to vector<2x1x8x8xf32>
      tpu.vector_store %arg14[%c0_55, %c3, %c0_56, %c0_57], %123 {strides = array<i32>} : memref<2x4x8x8xf32, #tpu.memory_space<vmem>>, vector<2x1x8x8xf32>,
      %124 = arith.truncf %120 : vector<2x8x8xf32> to vector<2x8x8xbf16>
      %125 = vector.extract_strided_slice %34 {offsets = [0, 0, 24], sizes = [2, 8, 8], strides = [1, 1, 1]} : vector<2x8x32xbf16> to vector<2x8x8xbf16>
      %cst_58 = arith.constant dense<0.000000e+00> : vector<2x8x8xf32>
      %126 = tpu.matmul %124, %125, %cst_58 {dimension_numbers = #tpu.dot_dimension_numbers<[2], [1], [1], [2], [0, 0, 0, 1, 1, 2], [0], [0]>} : vector<2x8x8xbf16>, vector<2x8x8xbf16>, vector<2x8x8xf32> -> vector<2x8x8xf32>
      %127 = vector.shape_cast %126 : vector<2x8x8xf32> to vector<16x8xf32>
      %128 = arith.truncf %127 : vector<16x8xf32> to vector<16x8xbf16>
      %c24 = arith.constant 24 : index
      %c0_59 = arith.constant 0 : index
      %129 = vector.load %arg4[%c24, %c0_59] : memref<32x32xbf16, #tpu.memory_space<vmem>>, vector<8x32xbf16>
      %cst_60 = arith.constant dense<0.000000e+00> : vector<16x32xf32>
      %130 = tpu.matmul %128, %129, %cst_60 {dimension_numbers = #tpu.dot_dimension_numbers<[1], [0], [0], [1], [0, 0, 1, 1], [], []>} : vector<16x8xbf16>, vector<8x32xbf16>, vector<16x32xf32> -> vector<16x32xf32>
      %131 = arith.addf %107, %130 : vector<16x32xf32>
      %132 = arith.addf %22, %131 : vector<16x32xf32>
      %cst_61 = arith.constant dense<0.000000e+00> : vector<16xf32>
      %133 = vector.multi_reduction <add>, %132, %cst_61 [1] : vector<16x32xf32> to vector<16xf32>
      %134 = vector.shape_cast %133 : vector<16xf32> to vector<16x1xf32>
      %cst_62 = arith.constant 3.200000e+01 : f32
      %135 = vector.broadcast %cst_62 : f32 to vector<16x1xf32>
      %136 = arith.divf %134, %135 : vector<16x1xf32>
      %137 = vector.broadcast %136 : vector<16x1xf32> to vector<16x32xf32>
      %138 = arith.subf %132, %137 : vector<16x32xf32>
      %139 = arith.mulf %138, %138 : vector<16x32xf32>
      %cst_63 = arith.constant dense<0.000000e+00> : vector<16xf32>
      %140 = vector.multi_reduction <add>, %139, %cst_63 [1] : vector<16x32xf32> to vector<16xf32>
      %141 = vector.shape_cast %140 : vector<16xf32> to vector<16x1xf32>
      %cst_64 = arith.constant 3.200000e+01 : f32
      %142 = vector.broadcast %cst_64 : f32 to vector<16x1xf32>
      %143 = arith.divf %141, %142 : vector<16x1xf32>
      %144 = vector.broadcast %136 : vector<16x1xf32> to vector<16x32xf32>
      %145 = arith.subf %132, %144 : vector<16x32xf32>
      %cst_65 = arith.constant 9.99999974E-6 : f32
      %146 = vector.broadcast %cst_65 : f32 to vector<16x1xf32>
      %147 = arith.addf %143, %146 : vector<16x1xf32>
      %148 = math.rsqrt %147 : vector<16x1xf32>
      %149 = vector.broadcast %148 : vector<16x1xf32> to vector<16x32xf32>
      %150 = arith.mulf %145, %149 : vector<16x32xf32>
      %c0_66 = arith.constant 0 : index
      %c0_67 = arith.constant 0 : index
      %151 = vector.load %arg9[%c0_66, %c0_67] : memref<1x32xf32, #tpu.memory_space<vmem>>, vector<1x32xf32>
      %152 = vector.broadcast %151 : vector<1x32xf32> to vector<16x32xf32>
      %153 = arith.mulf %150, %152 : vector<16x32xf32>
      %c0_68 = arith.constant 0 : index
      %c0_69 = arith.constant 0 : index
      %154 = vector.load %arg10[%c0_68, %c0_69] : memref<1x32xf32, #tpu.memory_space<vmem>>, vector<1x32xf32>
      %155 = vector.broadcast %154 : vector<1x32xf32> to vector<16x32xf32>
      %156 = arith.addf %153, %155 : vector<16x32xf32>
      %c0_70 = arith.constant 0 : index
      %c0_71 = arith.constant 0 : index
      %157 = vector.load %arg15[%c0_70, %c0_71] : memref<16x32xf32, #tpu.memory_space<vmem>>, vector<16x32xf32>
      tpu.vector_store %arg15[%c0_70, %c0_71], %156 {strides = array<i32>} : memref<16x32xf32, #tpu.memory_space<vmem>>, vector<16x32xf32>,
      %cst_72 = arith.constant 0.000000e+00 : f32
      %158 = vector.broadcast %cst_72 : f32 to vector<16x32xf32>
      %c0_73 = arith.constant 0 : index
      %c0_74 = arith.constant 0 : index
      %159 = vector.load %arg16[%c0_73, %c0_74] : memref<16x32xf32, #tpu.memory_space<vmem>>, vector<16x32xf32>
      tpu.vector_store %arg16[%c0_73, %c0_74], %158 {strides = array<i32>} : memref<16x32xf32, #tpu.memory_space<vmem>>, vector<16x32xf32>,
    } else {
    }
    %c0 = arith.constant 0 : index
    %c0_1 = arith.constant 0 : index
    %3 = vector.load %arg15[%c0, %c0_1] : memref<16x32xf32, #tpu.memory_space<vmem>>, vector<16x32xf32>
    %4 = arith.truncf %3 : vector<16x32xf32> to vector<16x32xbf16>
    %c0_2 = arith.constant 0 : index
    %c0_3 = arith.constant 0 : index
    %5 = vector.load %arg5[%c0_2, %c0_3] : memref<32x64xbf16, #tpu.memory_space<vmem>>, vector<32x64xbf16>
    %cst = arith.constant dense<0.000000e+00> : vector<16x64xf32>
    %6 = tpu.matmul %4, %5, %cst {dimension_numbers = #tpu.dot_dimension_numbers<[1], [0], [0], [1], [0, 0, 1, 1], [], []>} : vector<16x32xbf16>, vector<32x64xbf16>, vector<16x64xf32> -> vector<16x64xf32>
    %c0_4 = arith.constant 0 : index
    %c0_5 = arith.constant 0 : index
    %7 = vector.load %arg6[%c0_4, %c0_5] : memref<1x64xf32, #tpu.memory_space<vmem>>, vector<1x64xf32>
    %8 = vector.broadcast %7 : vector<1x64xf32> to vector<16x64xf32>
    %9 = arith.addf %6, %8 : vector<16x64xf32>
    %cst_6 = arith.constant 0.000000e+00 : f32
    %10 = vector.broadcast %cst_6 : f32 to vector<16x64xf32>
    %11 = arith.maximumf %9, %10 : vector<16x64xf32>
    %c0_7 = arith.constant 0 : index
    %c0_8 = arith.constant 0 : index
    %12 = vector.load %arg16[%c0_7, %c0_8] : memref<16x32xf32, #tpu.memory_space<vmem>>, vector<16x32xf32>
    %13 = arith.truncf %11 : vector<16x64xf32> to vector<16x64xbf16>
    %c0_9 = arith.constant 0 : index
    %c0_10 = arith.constant 0 : index
    %14 = vector.load %arg7[%c0_9, %c0_10] : memref<64x32xbf16, #tpu.memory_space<vmem>>, vector<64x32xbf16>
    %cst_11 = arith.constant dense<0.000000e+00> : vector<16x32xf32>
    %15 = tpu.matmul %13, %14, %cst_11 {dimension_numbers = #tpu.dot_dimension_numbers<[1], [0], [0], [1], [0, 0, 1, 1], [], []>} : vector<16x64xbf16>, vector<64x32xbf16>, vector<16x32xf32> -> vector<16x32xf32>
    %16 = arith.addf %12, %15 : vector<16x32xf32>
    %c0_12 = arith.constant 0 : index
    %c0_13 = arith.constant 0 : index
    %17 = vector.load %arg16[%c0_12, %c0_13] : memref<16x32xf32, #tpu.memory_space<vmem>>, vector<16x32xf32>
    tpu.vector_store %arg16[%c0_12, %c0_13], %16 {strides = array<i32>} : memref<16x32xf32, #tpu.memory_space<vmem>>, vector<16x32xf32>,
    %c0_i32_14 = arith.constant 0 : i32
    %18 = arith.cmpi eq, %arg1, %c0_i32_14 : i32
    %19 = arith.extui %18 : i1 to i32
    %c0_i32_15 = arith.constant 0 : i32
    %20 = arith.cmpi ne, %19, %c0_i32_15 : i32
    scf.if %20 {
      %c0_16 = arith.constant 0 : index
      %c0_17 = arith.constant 0 : index
      %c0_18 = arith.constant 0 : index
      %21 = vector.load %arg2[%c0_16, %c0_17, %c0_18] : memref<2x8x32xf32, #tpu.memory_space<vmem>>, vector<2x8x32xf32>
      %22 = vector.shape_cast %21 : vector<2x8x32xf32> to vector<16x32xf32>
      %c0_19 = arith.constant 0 : index
      %c0_20 = arith.constant 0 : index
      %23 = vector.load %arg15[%c0_19, %c0_20] : memref<16x32xf32, #tpu.memory_space<vmem>>, vector<16x32xf32>
      %c0_21 = arith.constant 0 : index
      %c0_22 = arith.constant 0 : index
      %24 = vector.load %arg16[%c0_21, %c0_22] : memref<16x32xf32, #tpu.memory_space<vmem>>, vector<16x32xf32>
      %25 = arith.addf %23, %24 : vector<16x32xf32>
      %c0_23 = arith.constant 0 : index
      %c0_24 = arith.constant 0 : index
      %26 = vector.load %arg8[%c0_23, %c0_24] : memref<1x32xf32, #tpu.memory_space<vmem>>, vector<1x32xf32>
      %27 = vector.broadcast %26 : vector<1x32xf32> to vector<16x32xf32>
      %28 = arith.addf %25, %27 : vector<16x32xf32>
      %cst_25 = arith.constant dense<0.000000e+00> : vector<16xf32>
      %29 = vector.multi_reduction <add>, %28, %cst_25 [1] : vector<16x32xf32> to vector<16xf32>
      %30 = vector.shape_cast %29 : vector<16xf32> to vector<16x1xf32>
      %cst_26 = arith.constant 3.200000e+01 : f32
      %31 = vector.broadcast %cst_26 : f32 to vector<16x1xf32>
      %32 = arith.divf %30, %31 : vector<16x1xf32>
      %33 = vector.broadcast %32 : vector<16x1xf32> to vector<16x32xf32>
      %34 = arith.subf %28, %33 : vector<16x32xf32>
      %35 = arith.mulf %34, %34 : vector<16x32xf32>
      %cst_27 = arith.constant dense<0.000000e+00> : vector<16xf32>
      %36 = vector.multi_reduction <add>, %35, %cst_27 [1] : vector<16x32xf32> to vector<16xf32>
      %37 = vector.shape_cast %36 : vector<16xf32> to vector<16x1xf32>
      %cst_28 = arith.constant 3.200000e+01 : f32
      %38 = vector.broadcast %cst_28 : f32 to vector<16x1xf32>
      %39 = arith.divf %37, %38 : vector<16x1xf32>
      %40 = vector.broadcast %32 : vector<16x1xf32> to vector<16x32xf32>
      %41 = arith.subf %28, %40 : vector<16x32xf32>
      %cst_29 = arith.constant 9.99999974E-6 : f32
      %42 = vector.broadcast %cst_29 : f32 to vector<16x1xf32>
      %43 = arith.addf %39, %42 : vector<16x1xf32>
      %44 = math.rsqrt %43 : vector<16x1xf32>
      %45 = vector.broadcast %44 : vector<16x1xf32> to vector<16x32xf32>
      %46 = arith.mulf %41, %45 : vector<16x32xf32>
      %c0_30 = arith.constant 0 : index
      %c0_31 = arith.constant 0 : index
      %47 = vector.load %arg11[%c0_30, %c0_31] : memref<1x32xf32, #tpu.memory_space<vmem>>, vector<1x32xf32>
      %48 = vector.broadcast %47 : vector<1x32xf32> to vector<16x32xf32>
      %49 = arith.mulf %46, %48 : vector<16x32xf32>
      %c0_32 = arith.constant 0 : index
      %c0_33 = arith.constant 0 : index
      %50 = vector.load %arg12[%c0_32, %c0_33] : memref<1x32xf32, #tpu.memory_space<vmem>>, vector<1x32xf32>
      %51 = vector.broadcast %50 : vector<1x32xf32> to vector<16x32xf32>
      %52 = arith.addf %49, %51 : vector<16x32xf32>
      %53 = arith.addf %52, %22 : vector<16x32xf32>
      %54 = vector.shape_cast %53 : vector<16x32xf32> to vector<2x8x32xf32>
      %c0_34 = arith.constant 0 : index
      %c0_35 = arith.constant 0 : index
      %c0_36 = arith.constant 0 : index
      %55 = vector.load %arg13[%c0_34, %c0_35, %c0_36] : memref<2x8x32xf32, #tpu.memory_space<vmem>>, vector<2x8x32xf32>
      tpu.vector_store %arg13[%c0_34, %c0_35, %c0_36], %54 {strides = array<i32>} : memref<2x8x32xf32, #tpu.memory_space<vmem>>, vector<2x8x32xf32>,
    } else {
    }
    return
  }
  func.func @transform_0(%arg0: i32, %arg1: i32) -> (i32, i32, i32) {
    %c0_i32 = arith.constant 0 : i32
    %c0_i32_0 = arith.constant 0 : i32
    %c0_i32_1 = arith.constant 0 : i32
    return %arg0, %c0_i32, %c0_i32_0 : i32, i32, i32
  }
  func.func @transform_1(%arg0: i32, %arg1: i32) -> (i32, i32) {
    %c0_i32 = arith.constant 0 : i32
    %c0_i32_0 = arith.constant 0 : i32
    %c0_i32_1 = arith.constant 0 : i32
    return %c0_i32, %c0_i32_0 : i32, i32
  }
  func.func @transform_2(%arg0: i32, %arg1: i32) -> (i32, i32) {
    %c0_i32 = arith.constant 0 : i32
    %c0_i32_0 = arith.constant 0 : i32
    %c0_i32_1 = arith.constant 0 : i32
    return %c0_i32, %c0_i32_0 : i32, i32
  }
  func.func @transform_3(%arg0: i32, %arg1: i32) -> (i32, i32) {
    %c0_i32 = arith.constant 0 : i32
    %c0_i32_0 = arith.constant 0 : i32
    return %c0_i32, %arg1 : i32, i32
  }
  func.func @transform_4(%arg0: i32, %arg1: i32) -> (i32, i32) {
    %c0_i32 = arith.constant 0 : i32
    %c0_i32_0 = arith.constant 0 : i32
    return %c0_i32, %arg1 : i32, i32
  }
  func.func @transform_5(%arg0: i32, %arg1: i32) -> (i32, i32) {
    %c0_i32 = arith.constant 0 : i32
    %c0_i32_0 = arith.constant 0 : i32
    return %arg1, %c0_i32 : i32, i32
  }
  func.func @transform_6(%arg0: i32, %arg1: i32) -> (i32, i32) {
    %c0_i32 = arith.constant 0 : i32
    %c0_i32_0 = arith.constant 0 : i32
    %c0_i32_1 = arith.constant 0 : i32
    return %c0_i32, %c0_i32_0 : i32, i32
  }
  func.func @transform_7(%arg0: i32, %arg1: i32) -> (i32, i32) {
    %c0_i32 = arith.constant 0 : i32
    %c0_i32_0 = arith.constant 0 : i32
    %c0_i32_1 = arith.constant 0 : i32
    return %c0_i32, %c0_i32_0 : i32, i32
  }
  func.func @transform_8(%arg0: i32, %arg1: i32) -> (i32, i32) {
    %c0_i32 = arith.constant 0 : i32
    %c0_i32_0 = arith.constant 0 : i32
    %c0_i32_1 = arith.constant 0 : i32
    return %c0_i32, %c0_i32_0 : i32, i32
  }
  func.func @transform_9(%arg0: i32, %arg1: i32) -> (i32, i32) {
    %c0_i32 = arith.constant 0 : i32
    %c0_i32_0 = arith.constant 0 : i32
    %c0_i32_1 = arith.constant 0 : i32
    return %c0_i32, %c0_i32_0 : i32, i32
  }
  func.func @transform_10(%arg0: i32, %arg1: i32) -> (i32, i32) {
    %c0_i32 = arith.constant 0 : i32
    %c0_i32_0 = arith.constant 0 : i32
    %c0_i32_1 = arith.constant 0 : i32
    return %c0_i32, %c0_i32_0 : i32, i32
  }
  func.func @transform_11(%arg0: i32, %arg1: i32) -> (i32, i32, i32) {
    %c0_i32 = arith.constant 0 : i32
    %c0_i32_0 = arith.constant 0 : i32
    %c0_i32_1 = arith.constant 0 : i32
    return %arg0, %c0_i32, %c0_i32_0 : i32, i32, i32
  }
  func.func @transform_12(%arg0: i32, %arg1: i32) -> (i32, i32, i32, i32) {
    %c0_i32 = arith.constant 0 : i32
    %c0_i32_0 = arith.constant 0 : i32
    %c0_i32_1 = arith.constant 0 : i32
    %c0_i32_2 = arith.constant 0 : i32
    return %arg0, %c0_i32, %c0_i32_0, %c0_i32_1 : i32, i32, i32, i32
  }
}

module attributes {stable_mosaic.version = 11 : i64} {
  func.func @_transformer_kernel(%arg0: i32, %arg1: i32, %arg2: memref<2x8x32xf32, #tpu.memory_space<vmem>>, %arg3: memref<32x96xbf16, #tpu.memory_space<vmem>>, %arg4: memref<32x32xbf16, #tpu.memory_space<vmem>>, %arg5: memref<32x64xbf16, #tpu.memory_space<vmem>>, %arg6: memref<1x64xf32, #tpu.memory_space<vmem>>, %arg7: memref<64x32xbf16, #tpu.memory_space<vmem>>, %arg8: memref<1x32xf32, #tpu.memory_space<vmem>>, %arg9: memref<1x32xf32, #tpu.memory_space<vmem>>, %arg10: memref<1x32xf32, #tpu.memory_space<vmem>>, %arg11: memref<1x32xf32, #tpu.memory_space<vmem>>, %arg12: memref<1x32xf32, #tpu.memory_space<vmem>>, %arg13: memref<2x8x32xf32, #tpu.memory_space<vmem>>, %arg14: memref<2x4x8x8xf32, #tpu.memory_space<vmem>>, %arg15: memref<16x32xf32, #tpu.memory_space<vmem>>, %arg16: memref<16x32xf32, #tpu.memory_space<vmem>>) attributes {dimension_semantics = [#tpu.dimension_semantics<parallel>, #tpu.dimension_semantics<arbitrary>], iteration_bounds = array<i64: 1, 1>, scalar_prefetch = 0 : i64, scratch_operands = 2 : i64, tpu.core_type = #tpu.core_type<tc>, window_params = [{transform_indices = @transform_0, window_bounds = array<i64: 2, 8, 32>}, {pipeline_mode = #tpu.pipeline_mode<synchronous>, transform_indices = @transform_1, window_bounds = array<i64: 32, 96>}, {pipeline_mode = #tpu.pipeline_mode<synchronous>, transform_indices = @transform_2, window_bounds = array<i64: 32, 32>}, {transform_indices = @transform_3, window_bounds = array<i64: 32, 64>}, {transform_indices = @transform_4, window_bounds = array<i64: 1, 64>}, {transform_indices = @transform_5, window_bounds = array<i64: 64, 32>}, {pipeline_mode = #tpu.pipeline_mode<synchronous>, transform_indices = @transform_6, window_bounds = array<i64: 1, 32>}, {pipeline_mode = #tpu.pipeline_mode<synchronous>, transform_indices = @transform_7, window_bounds = array<i64: 1, 32>}, {pipeline_mode = #tpu.pipeline_mode<synchronous>, transform_indices = @transform_8, window_bounds = array<i64: 1, 32>}, {pipeline_mode = #tpu.pipeline_mode<synchronous>, transform_indices = @transform_9, window_bounds = array<i64: 1, 32>}, {pipeline_mode = #tpu.pipeline_mode<synchronous>, transform_indices = @transform_10, window_bounds = array<i64: 1, 32>}, {transform_indices = @transform_11, window_bounds = array<i64: 2, 8, 32>}, {transform_indices = @transform_12, window_bounds = array<i64: 2, 4, 8, 8>}]} {
    %c0_i32 = arith.constant 0 : i32
    %0 = arith.cmpi eq, %arg1, %c0_i32 : i32
    %1 = arith.extui %0 : i1 to i32
    %c0_i32_0 = arith.constant 0 : i32
    %2 = arith.cmpi ne, %1, %c0_i32_0 : i32
    scf.if %2 {
      %c0_16 = arith.constant 0 : index
      %c0_17 = arith.constant 0 : index
      %c0_18 = arith.constant 0 : index
      %21 = vector.load %arg2[%c0_16, %c0_17, %c0_18] : memref<2x8x32xf32, #tpu.memory_space<vmem>>, vector<2x8x32xf32>
      %22 = vector.shape_cast %21 : vector<2x8x32xf32> to vector<16x32xf32>
      %23 = arith.truncf %22 : vector<16x32xf32> to vector<16x32xbf16>
      %c0_19 = arith.constant 0 : index
      %c0_20 = arith.constant 0 : index
      %24 = vector.load %arg3[%c0_19, %c0_20] : memref<32x96xbf16, #tpu.memory_space<vmem>>, vector<32x96xbf16>
      %cst_21 = arith.constant dense<0.000000e+00> : vector<16x96xf32>
      %25 = tpu.matmul %23, %24, %cst_21 {dimension_numbers = #tpu.dot_dimension_numbers<[1], [0], [0], [1], [0, 0, 1, 1], [], []>} : vector<16x32xbf16>, vector<32x96xbf16>, vector<16x96xf32> -> vector<16x96xf32>
      %26 = vector.extract_strided_slice %25 {offsets = [0, 0], sizes = [16, 32], strides = [1, 1]} : vector<16x96xf32> to vector<16x32xf32>
      %27 = vector.shape_cast %26 : vector<16x32xf32> to vector<2x8x32xf32>
      %28 = arith.truncf %27 : vector<2x8x32xf32> to vector<2x8x32xbf16>
      %29 = vector.extract_strided_slice %25 {offsets = [0, 32], sizes = [16, 32], strides = [1, 1]} : vector<16x96xf32> to vector<16x32xf32>
      %30 = vector.shape_cast %29 : vector<16x32xf32> to vector<2x8x32xf32>
      %31 = arith.truncf %30 : vector<2x8x32xf32> to vector<2x8x32xbf16>
      %32 = vector.extract_strided_slice %25 {offsets = [0, 64], sizes = [16, 32], strides = [1, 1]} : vector<16x96xf32> to vector<16x32xf32>
      %33 = vector.shape_cast %32 : vector<16x32xf32> to vector<2x8x32xf32>
      %34 = arith.truncf %33 : vector<2x8x32xf32> to vector<2x8x32xbf16>
      %cst_22 = arith.constant 0.000000e+00 : f32
      %35 = vector.broadcast %cst_22 : f32 to vector<16x32xf32>
      %36 = vector.extract_strided_slice %28 {offsets = [0, 0, 0], sizes = [2, 8, 8], strides = [1, 1, 1]} : vector<2x8x32xbf16> to vector<2x8x8xbf16>
      %37 = vector.extract_strided_slice %31 {offsets = [0, 0, 0], sizes = [2, 8, 8], strides = [1, 1, 1]} : vector<2x8x32xbf16> to vector<2x8x8xbf16>
      %cst_23 = arith.constant dense<0.000000e+00> : vector<2x8x8xf32>
      %38 = tpu.matmul %36, %37, %cst_23 {dimension_numbers = #tpu.dot_dimension_numbers<[2], [2], [1], [1], [0, 0, 0, 1, 1, 1], [0], [0]>} : vector<2x8x8xbf16>, vector<2x8x8xbf16>, vector<2x8x8xf32> -> vector<2x8x8xf32>
      %cst_24 = arith.constant dense<0xFF800000> : vector<2x8xf32>
      %39 = vector.multi_reduction <maximumf>, %38, %cst_24 [2] : vector<2x8x8xf32> to vector<2x8xf32>
      %40 = vector.shape_cast %39 : vector<2x8xf32> to vector<2x8x1xf32>
      %41 = vector.broadcast %40 : vector<2x8x1xf32> to vector<2x8x8xf32>
      %42 = arith.subf %38, %41 : vector<2x8x8xf32>
      %43 = math.exp %42 : vector<2x8x8xf32>
      %cst_25 = arith.constant dense<0.000000e+00> : vector<2x8xf32>
      %44 = vector.multi_reduction <add>, %43, %cst_25 [2] : vector<2x8x8xf32> to vector<2x8xf32>
      %45 = vector.shape_cast %44 : vector<2x8xf32> to vector<2x8x1xf32>
      %46 = tpu.reciprocal %45 : vector<2x8x1xf32> -> vector<2x8x1xf32>
      %47 = vector.broadcast %46 : vector<2x8x1xf32> to vector<2x8x8xf32>
      %48 = arith.mulf %43, %47 : vector<2x8x8xf32>
      %c0_26 = arith.constant 0 : index
      %c0_27 = arith.constant 0 : index
      %c0_28 = arith.constant 0 : index
      %c0_29 = arith.constant 0 : index
      %49 = vector.load %arg14[%c0_26, %c0_27, %c0_28, %c0_29] : memref<2x4x8x8xf32, #tpu.memory_space<vmem>>, vector<2x1x8x8xf32>
      %50 = vector.shape_cast %49 : vector<2x1x8x8xf32> to vector<2x8x8xf32>
      %51 = vector.shape_cast %48 : vector<2x8x8xf32> to vector<2x1x8x8xf32>
      tpu.vector_store %arg14[%c0_26, %c0_27, %c0_28, %c0_29], %51 {strides = array<i32>} : memref<2x4x8x8xf32, #tpu.memory_space<vmem>>, vector<2x1x8x8xf32>,
      %52 = arith.truncf %48 : vector<2x8x8xf32> to vector<2x8x8xbf16>
      %53 = vector.extract_strided_slice %34 {offsets = [0, 0, 0], sizes = [2, 8, 8], strides = [1, 1, 1]} : vector<2x8x32xbf16> to vector<2x8x8xbf16>
      %cst_30 = arith.constant dense<0.000000e+00> : vector<2x8x8xf32>
      %54 = tpu.matmul %52, %53, %cst_30 {dimension_numbers = #tpu.dot_dimension_numbers<[2], [1], [1], [2], [0, 0, 0, 1, 1, 2], [0], [0]>} : vector<2x8x8xbf16>, vector<2x8x8xbf16>, vector<2x8x8xf32> -> vector<2x8x8xf32>
      %55 = vector.shape_cast %54 : vector<2x8x8xf32> to vector<16x8xf32>
      %56 = arith.truncf %55 : vector<16x8xf32> to vector<16x8xbf16>
      %c0_31 = arith.constant 0 : index
      %c0_32 = arith.constant 0 : index
      %57 = vector.load %arg4[%c0_31, %c0_32] : memref<32x32xbf16, #tpu.memory_space<vmem>>, vector<8x32xbf16>
      %cst_33 = arith.constant dense<0.000000e+00> : vector<16x32xf32>
      %58 = tpu.matmul %56, %57, %cst_33 {dimension_numbers = #tpu.dot_dimension_numbers<[1], [0], [0], [1], [0, 0, 1, 1], [], []>} : vector<16x8xbf16>, vector<8x32xbf16>, vector<16x32xf32> -> vector<16x32xf32>
      %59 = arith.addf %35, %58 : vector<16x32xf32>
      %60 = vector.extract_strided_slice %28 {offsets = [0, 0, 8], sizes = [2, 8, 8], strides = [1, 1, 1]} : vector<2x8x32xbf16> to vector<2x8x8xbf16>
      %61 = vector.extract_strided_slice %31 {offsets = [0, 0, 8], sizes = [2, 8, 8], strides = [1, 1, 1]} : vector<2x8x32xbf16> to vector<2x8x8xbf16>
      %cst_34 = arith.constant dense<0.000000e+00> : vector<2x8x8xf32>
      %62 = tpu.matmul %60, %61, %cst_34 {dimension_numbers = #tpu.dot_dimension_numbers<[2], [2], [1], [1], [0, 0, 0, 1, 1, 1], [0], [0]>} : vector<2x8x8xbf16>, vector<2x8x8xbf16>, vector<2x8x8xf32> -> vector<2x8x8xf32>
      %cst_35 = arith.constant dense<0xFF800000> : vector<2x8xf32>
      %63 = vector.multi_reduction <maximumf>, %62, %cst_35 [2] : vector<2x8x8xf32> to vector<2x8xf32>
      %64 = vector.shape_cast %63 : vector<2x8xf32> to vector<2x8x1xf32>
      %65 = vector.broadcast %64 : vector<2x8x1xf32> to vector<2x8x8xf32>
      %66 = arith.subf %62, %65 : vector<2x8x8xf32>
      %67 = math.exp %66 : vector<2x8x8xf32>
      %cst_36 = arith.constant dense<0.000000e+00> : vector<2x8xf32>
      %68 = vector.multi_reduction <add>, %67, %cst_36 [2] : vector<2x8x8xf32> to vector<2x8xf32>
      %69 = vector.shape_cast %68 : vector<2x8xf32> to vector<2x8x1xf32>
      %70 = tpu.reciprocal %69 : vector<2x8x1xf32> -> vector<2x8x1xf32>
      %71 = vector.broadcast %70 : vector<2x8x1xf32> to vector<2x8x8xf32>
      %72 = arith.mulf %67, %71 : vector<2x8x8xf32>
      %c0_37 = arith.constant 0 : index
      %c1 = arith.constant 1 : index
      %c0_38 = arith.constant 0 : index
      %c0_39 = arith.constant 0 : index
      %73 = vector.load %arg14[%c0_37, %c1, %c0_38, %c0_39] : memref<2x4x8x8xf32, #tpu.memory_space<vmem>>, vector<2x1x8x8xf32>
      %74 = vector.shape_cast %73 : vector<2x1x8x8xf32> to vector<2x8x8xf32>
      %75 = vector.shape_cast %72 : vector<2x8x8xf32> to vector<2x1x8x8xf32>
      tpu.vector_store %arg14[%c0_37, %c1, %c0_38, %c0_39], %75 {strides = array<i32>} : memref<2x4x8x8xf32, #tpu.memory_space<vmem>>, vector<2x1x8x8xf32>,
      %76 = arith.truncf %72 : vector<2x8x8xf32> to vector<2x8x8xbf16>
      %77 = vector.extract_strided_slice %34 {offsets = [0, 0, 8], sizes = [2, 8, 8], strides = [1, 1, 1]} : vector<2x8x32xbf16> to vector<2x8x8xbf16>
      %cst_40 = arith.constant dense<0.000000e+00> : vector<2x8x8xf32>
      %78 = tpu.matmul %76, %77, %cst_40 {dimension_numbers = #tpu.dot_dimension_numbers<[2], [1], [1], [2], [0, 0, 0, 1, 1, 2], [0], [0]>} : vector<2x8x8xbf16>, vector<2x8x8xbf16>, vector<2x8x8xf32> -> vector<2x8x8xf32>
      %79 = vector.shape_cast %78 : vector<2x8x8xf32> to vector<16x8xf32>
      %80 = arith.truncf %79 : vector<16x8xf32> to vector<16x8xbf16>
      %c8 = arith.constant 8 : index
      %c0_41 = arith.constant 0 : index
      %81 = vector.load %arg4[%c8, %c0_41] : memref<32x32xbf16, #tpu.memory_space<vmem>>, vector<8x32xbf16>
      %cst_42 = arith.constant dense<0.000000e+00> : vector<16x32xf32>
      %82 = tpu.matmul %80, %81, %cst_42 {dimension_numbers = #tpu.dot_dimension_numbers<[1], [0], [0], [1], [0, 0, 1, 1], [], []>} : vector<16x8xbf16>, vector<8x32xbf16>, vector<16x32xf32> -> vector<16x32xf32>
      %83 = arith.addf %59, %82 : vector<16x32xf32>
      %84 = vector.extract_strided_slice %28 {offsets = [0, 0, 16], sizes = [2, 8, 8], strides = [1, 1, 1]} : vector<2x8x32xbf16> to vector<2x8x8xbf16>
      %85 = vector.extract_strided_slice %31 {offsets = [0, 0, 16], sizes = [2, 8, 8], strides = [1, 1, 1]} : vector<2x8x32xbf16> to vector<2x8x8xbf16>
      %cst_43 = arith.constant dense<0.000000e+00> : vector<2x8x8xf32>
      %86 = tpu.matmul %84, %85, %cst_43 {dimension_numbers = #tpu.dot_dimension_numbers<[2], [2], [1], [1], [0, 0, 0, 1, 1, 1], [0], [0]>} : vector<2x8x8xbf16>, vector<2x8x8xbf16>, vector<2x8x8xf32> -> vector<2x8x8xf32>
      %cst_44 = arith.constant dense<0xFF800000> : vector<2x8xf32>
      %87 = vector.multi_reduction <maximumf>, %86, %cst_44 [2] : vector<2x8x8xf32> to vector<2x8xf32>
      %88 = vector.shape_cast %87 : vector<2x8xf32> to vector<2x8x1xf32>
      %89 = vector.broadcast %88 : vector<2x8x1xf32> to vector<2x8x8xf32>
      %90 = arith.subf %86, %89 : vector<2x8x8xf32>
      %91 = math.exp %90 : vector<2x8x8xf32>
      %cst_45 = arith.constant dense<0.000000e+00> : vector<2x8xf32>
      %92 = vector.multi_reduction <add>, %91, %cst_45 [2] : vector<2x8x8xf32> to vector<2x8xf32>
      %93 = vector.shape_cast %92 : vector<2x8xf32> to vector<2x8x1xf32>
      %94 = tpu.reciprocal %93 : vector<2x8x1xf32> -> vector<2x8x1xf32>
      %95 = vector.broadcast %94 : vector<2x8x1xf32> to vector<2x8x8xf32>
      %96 = arith.mulf %91, %95 : vector<2x8x8xf32>
      %c0_46 = arith.constant 0 : index
      %c2 = arith.constant 2 : index
      %c0_47 = arith.constant 0 : index
      %c0_48 = arith.constant 0 : index
      %97 = vector.load %arg14[%c0_46, %c2, %c0_47, %c0_48] : memref<2x4x8x8xf32, #tpu.memory_space<vmem>>, vector<2x1x8x8xf32>
      %98 = vector.shape_cast %97 : vector<2x1x8x8xf32> to vector<2x8x8xf32>
      %99 = vector.shape_cast %96 : vector<2x8x8xf32> to vector<2x1x8x8xf32>
      tpu.vector_store %arg14[%c0_46, %c2, %c0_47, %c0_48], %99 {strides = array<i32>} : memref<2x4x8x8xf32, #tpu.memory_space<vmem>>, vector<2x1x8x8xf32>,
      %100 = arith.truncf %96 : vector<2x8x8xf32> to vector<2x8x8xbf16>
      %101 = vector.extract_strided_slice %34 {offsets = [0, 0, 16], sizes = [2, 8, 8], strides = [1, 1, 1]} : vector<2x8x32xbf16> to vector<2x8x8xbf16>
      %cst_49 = arith.constant dense<0.000000e+00> : vector<2x8x8xf32>
      %102 = tpu.matmul %100, %101, %cst_49 {dimension_numbers = #tpu.dot_dimension_numbers<[2], [1], [1], [2], [0, 0, 0, 1, 1, 2], [0], [0]>} : vector<2x8x8xbf16>, vector<2x8x8xbf16>, vector<2x8x8xf32> -> vector<2x8x8xf32>
      %103 = vector.shape_cast %102 : vector<2x8x8xf32> to vector<16x8xf32>
      %104 = arith.truncf %103 : vector<16x8xf32> to vector<16x8xbf16>
      %c16 = arith.constant 16 : index
      %c0_50 = arith.constant 0 : index
      %105 = vector.load %arg4[%c16, %c0_50] : memref<32x32xbf16, #tpu.memory_space<vmem>>, vector<8x32xbf16>
      %cst_51 = arith.constant dense<0.000000e+00> : vector<16x32xf32>
      %106 = tpu.matmul %104, %105, %cst_51 {dimension_numbers = #tpu.dot_dimension_numbers<[1], [0], [0], [1], [0, 0, 1, 1], [], []>} : vector<16x8xbf16>, vector<8x32xbf16>, vector<16x32xf32> -> vector<16x32xf32>
      %107 = arith.addf %83, %106 : vector<16x32xf32>
      %108 = vector.extract_strided_slice %28 {offsets = [0, 0, 24], sizes = [2, 8, 8], strides = [1, 1, 1]} : vector<2x8x32xbf16> to vector<2x8x8xbf16>
      %109 = vector.extract_strided_slice %31 {offsets = [0, 0, 24], sizes = [2, 8, 8], strides = [1, 1, 1]} : vector<2x8x32xbf16> to vector<2x8x8xbf16>
      %cst_52 = arith.constant dense<0.000000e+00> : vector<2x8x8xf32>
      %110 = tpu.matmul %108, %109, %cst_52 {dimension_numbers = #tpu.dot_dimension_numbers<[2], [2], [1], [1], [0, 0, 0, 1, 1, 1], [0], [0]>} : vector<2x8x8xbf16>, vector<2x8x8xbf16>, vector<2x8x8xf32> -> vector<2x8x8xf32>
      %cst_53 = arith.constant dense<0xFF800000> : vector<2x8xf32>
      %111 = vector.multi_reduction <maximumf>, %110, %cst_53 [2] : vector<2x8x8xf32> to vector<2x8xf32>
      %112 = vector.shape_cast %111 : vector<2x8xf32> to vector<2x8x1xf32>
      %113 = vector.broadcast %112 : vector<2x8x1xf32> to vector<2x8x8xf32>
      %114 = arith.subf %110, %113 : vector<2x8x8xf32>
      %115 = math.exp %114 : vector<2x8x8xf32>
      %cst_54 = arith.constant dense<0.000000e+00> : vector<2x8xf32>
      %116 = vector.multi_reduction <add>, %115, %cst_54 [2] : vector<2x8x8xf32> to vector<2x8xf32>
      %117 = vector.shape_cast %116 : vector<2x8xf32> to vector<2x8x1xf32>
      %118 = tpu.reciprocal %117 : vector<2x8x1xf32> -> vector<2x8x1xf32>
      %119 = vector.broadcast %118 : vector<2x8x1xf32> to vector<2x8x8xf32>
      %120 = arith.mulf %115, %119 : vector<2x8x8xf32>
      %c0_55 = arith.constant 0 : index
      %c3 = arith.constant 3 : index
      %c0_56 = arith.constant 0 : index
      %c0_57 = arith.constant 0 : index
      %121 = vector.load %arg14[%c0_55, %c3, %c0_56, %c0_57] : memref<2x4x8x8xf32, #tpu.memory_space<vmem>>, vector<2x1x8x8xf32>
      %122 = vector.shape_cast %121 : vector<2x1x8x8xf32> to vector<2x8x8xf32>
      %123 = vector.shape_cast %120 : vector<2x8x8xf32> to vector<2x1x8x8xf32>
      tpu.vector_store %arg14[%c0_55, %c3, %c0_56, %c0_57], %123 {strides = array<i32>} : memref<2x4x8x8xf32, #tpu.memory_space<vmem>>, vector<2x1x8x8xf32>,
      %124 = arith.truncf %120 : vector<2x8x8xf32> to vector<2x8x8xbf16>
      %125 = vector.extract_strided_slice %34 {offsets = [0, 0, 24], sizes = [2, 8, 8], strides = [1, 1, 1]} : vector<2x8x32xbf16> to vector<2x8x8xbf16>
      %cst_58 = arith.constant dense<0.000000e+00> : vector<2x8x8xf32>
      %126 = tpu.matmul %124, %125, %cst_58 {dimension_numbers = #tpu.dot_dimension_numbers<[2], [1], [1], [2], [0, 0, 0, 1, 1, 2], [0], [0]>} : vector<2x8x8xbf16>, vector<2x8x8xbf16>, vector<2x8x8xf32> -> vector<2x8x8xf32>
      %127 = vector.shape_cast %126 : vector<2x8x8xf32> to vector<16x8xf32>
      %128 = arith.truncf %127 : vector<16x8xf32> to vector<16x8xbf16>
      %c24 = arith.constant 24 : index
      %c0_59 = arith.constant 0 : index
      %129 = vector.load %arg4[%c24, %c0_59] : memref<32x32xbf16, #tpu.memory_space<vmem>>, vector<8x32xbf16>
      %cst_60 = arith.constant dense<0.000000e+00> : vector<16x32xf32>
      %130 = tpu.matmul %128, %129, %cst_60 {dimension_numbers = #tpu.dot_dimension_numbers<[1], [0], [0], [1], [0, 0, 1, 1], [], []>} : vector<16x8xbf16>, vector<8x32xbf16>, vector<16x32xf32> -> vector<16x32xf32>
      %131 = arith.addf %107, %130 : vector<16x32xf32>
      %132 = arith.addf %22, %131 : vector<16x32xf32>
      %cst_61 = arith.constant dense<0.000000e+00> : vector<16xf32>
      %133 = vector.multi_reduction <add>, %132, %cst_61 [1] : vector<16x32xf32> to vector<16xf32>
      %134 = vector.shape_cast %133 : vector<16xf32> to vector<16x1xf32>
      %cst_62 = arith.constant 3.200000e+01 : f32
      %135 = vector.broadcast %cst_62 : f32 to vector<16x1xf32>
      %136 = arith.divf %134, %135 : vector<16x1xf32>
      %137 = vector.broadcast %136 : vector<16x1xf32> to vector<16x32xf32>
      %138 = arith.subf %132, %137 : vector<16x32xf32>
      %139 = arith.mulf %138, %138 : vector<16x32xf32>
      %cst_63 = arith.constant dense<0.000000e+00> : vector<16xf32>
      %140 = vector.multi_reduction <add>, %139, %cst_63 [1] : vector<16x32xf32> to vector<16xf32>
      %141 = vector.shape_cast %140 : vector<16xf32> to vector<16x1xf32>
      %cst_64 = arith.constant 3.200000e+01 : f32
      %142 = vector.broadcast %cst_64 : f32 to vector<16x1xf32>
      %143 = arith.divf %141, %142 : vector<16x1xf32>
      %144 = vector.broadcast %136 : vector<16x1xf32> to vector<16x32xf32>
      %145 = arith.subf %132, %144 : vector<16x32xf32>
      %cst_65 = arith.constant 9.99999974E-6 : f32
      %146 = vector.broadcast %cst_65 : f32 to vector<16x1xf32>
      %147 = arith.addf %143, %146 : vector<16x1xf32>
      %148 = math.rsqrt %147 : vector<16x1xf32>
      %149 = vector.broadcast %148 : vector<16x1xf32> to vector<16x32xf32>
      %150 = arith.mulf %145, %149 : vector<16x32xf32>
      %c0_66 = arith.constant 0 : index
      %c0_67 = arith.constant 0 : index
      %151 = vector.load %arg9[%c0_66, %c0_67] : memref<1x32xf32, #tpu.memory_space<vmem>>, vector<1x32xf32>
      %152 = vector.broadcast %151 : vector<1x32xf32> to vector<16x32xf32>
      %153 = arith.mulf %150, %152 : vector<16x32xf32>
      %c0_68 = arith.constant 0 : index
      %c0_69 = arith.constant 0 : index
      %154 = vector.load %arg10[%c0_68, %c0_69] : memref<1x32xf32, #tpu.memory_space<vmem>>, vector<1x32xf32>
      %155 = vector.broadcast %154 : vector<1x32xf32> to vector<16x32xf32>
      %156 = arith.addf %153, %155 : vector<16x32xf32>
      %c0_70 = arith.constant 0 : index
      %c0_71 = arith.constant 0 : index
      %157 = vector.load %arg15[%c0_70, %c0_71] : memref<16x32xf32, #tpu.memory_space<vmem>>, vector<16x32xf32>
      tpu.vector_store %arg15[%c0_70, %c0_71], %156 {strides = array<i32>} : memref<16x32xf32, #tpu.memory_space<vmem>>, vector<16x32xf32>,
      %cst_72 = arith.constant 0.000000e+00 : f32
      %158 = vector.broadcast %cst_72 : f32 to vector<16x32xf32>
      %c0_73 = arith.constant 0 : index
      %c0_74 = arith.constant 0 : index
      %159 = vector.load %arg16[%c0_73, %c0_74] : memref<16x32xf32, #tpu.memory_space<vmem>>, vector<16x32xf32>
      tpu.vector_store %arg16[%c0_73, %c0_74], %158 {strides = array<i32>} : memref<16x32xf32, #tpu.memory_space<vmem>>, vector<16x32xf32>,
    } else {
    }
    %c0 = arith.constant 0 : index
    %c0_1 = arith.constant 0 : index
    %3 = vector.load %arg15[%c0, %c0_1] : memref<16x32xf32, #tpu.memory_space<vmem>>, vector<16x32xf32>
    %4 = arith.truncf %3 : vector<16x32xf32> to vector<16x32xbf16>
    %c0_2 = arith.constant 0 : index
    %c0_3 = arith.constant 0 : index
    %5 = vector.load %arg5[%c0_2, %c0_3] : memref<32x64xbf16, #tpu.memory_space<vmem>>, vector<32x64xbf16>
    %cst = arith.constant dense<0.000000e+00> : vector<16x64xf32>
    %6 = tpu.matmul %4, %5, %cst {dimension_numbers = #tpu.dot_dimension_numbers<[1], [0], [0], [1], [0, 0, 1, 1], [], []>} : vector<16x32xbf16>, vector<32x64xbf16>, vector<16x64xf32> -> vector<16x64xf32>
    %c0_4 = arith.constant 0 : index
    %c0_5 = arith.constant 0 : index
    %7 = vector.load %arg6[%c0_4, %c0_5] : memref<1x64xf32, #tpu.memory_space<vmem>>, vector<1x64xf32>
    %8 = vector.broadcast %7 : vector<1x64xf32> to vector<16x64xf32>
    %9 = arith.addf %6, %8 : vector<16x64xf32>
    %cst_6 = arith.constant 0.000000e+00 : f32
    %10 = vector.broadcast %cst_6 : f32 to vector<16x64xf32>
    %11 = arith.maximumf %9, %10 : vector<16x64xf32>
    %c0_7 = arith.constant 0 : index
    %c0_8 = arith.constant 0 : index
    %12 = vector.load %arg16[%c0_7, %c0_8] : memref<16x32xf32, #tpu.memory_space<vmem>>, vector<16x32xf32>
    %13 = arith.truncf %11 : vector<16x64xf32> to vector<16x64xbf16>
    %c0_9 = arith.constant 0 : index
    %c0_10 = arith.constant 0 : index
    %14 = vector.load %arg7[%c0_9, %c0_10] : memref<64x32xbf16, #tpu.memory_space<vmem>>, vector<64x32xbf16>
    %cst_11 = arith.constant dense<0.000000e+00> : vector<16x32xf32>
    %15 = tpu.matmul %13, %14, %cst_11 {dimension_numbers = #tpu.dot_dimension_numbers<[1], [0], [0], [1], [0, 0, 1, 1], [], []>} : vector<16x64xbf16>, vector<64x32xbf16>, vector<16x32xf32> -> vector<16x32xf32>
    %16 = arith.addf %12, %15 : vector<16x32xf32>
    %c0_12 = arith.constant 0 : index
    %c0_13 = arith.constant 0 : index
    %17 = vector.load %arg16[%c0_12, %c0_13] : memref<16x32xf32, #tpu.memory_space<vmem>>, vector<16x32xf32>
    tpu.vector_store %arg16[%c0_12, %c0_13], %16 {strides = array<i32>} : memref<16x32xf32, #tpu.memory_space<vmem>>, vector<16x32xf32>,
    %c0_i32_14 = arith.constant 0 : i32
    %18 = arith.cmpi eq, %arg1, %c0_i32_14 : i32
    %19 = arith.extui %18 : i1 to i32
    %c0_i32_15 = arith.constant 0 : i32
    %20 = arith.cmpi ne, %19, %c0_i32_15 : i32
    scf.if %20 {
      %c0_16 = arith.constant 0 : index
      %c0_17 = arith.constant 0 : index
      %c0_18 = arith.constant 0 : index
      %21 = vector.load %arg2[%c0_16, %c0_17, %c0_18] : memref<2x8x32xf32, #tpu.memory_space<vmem>>, vector<2x8x32xf32>
      %22 = vector.shape_cast %21 : vector<2x8x32xf32> to vector<16x32xf32>
      %c0_19 = arith.constant 0 : index
      %c0_20 = arith.constant 0 : index
      %23 = vector.load %arg15[%c0_19, %c0_20] : memref<16x32xf32, #tpu.memory_space<vmem>>, vector<16x32xf32>
      %c0_21 = arith.constant 0 : index
      %c0_22 = arith.constant 0 : index
      %24 = vector.load %arg16[%c0_21, %c0_22] : memref<16x32xf32, #tpu.memory_space<vmem>>, vector<16x32xf32>
      %25 = arith.addf %23, %24 : vector<16x32xf32>
      %c0_23 = arith.constant 0 : index
      %c0_24 = arith.constant 0 : index
      %26 = vector.load %arg8[%c0_23, %c0_24] : memref<1x32xf32, #tpu.memory_space<vmem>>, vector<1x32xf32>
      %27 = vector.broadcast %26 : vector<1x32xf32> to vector<16x32xf32>
      %28 = arith.addf %25, %27 : vector<16x32xf32>
      %cst_25 = arith.constant dense<0.000000e+00> : vector<16xf32>
      %29 = vector.multi_reduction <add>, %28, %cst_25 [1] : vector<16x32xf32> to vector<16xf32>
      %30 = vector.shape_cast %29 : vector<16xf32> to vector<16x1xf32>
      %cst_26 = arith.constant 3.200000e+01 : f32
      %31 = vector.broadcast %cst_26 : f32 to vector<16x1xf32>
      %32 = arith.divf %30, %31 : vector<16x1xf32>
      %33 = vector.broadcast %32 : vector<16x1xf32> to vector<16x32xf32>
      %34 = arith.subf %28, %33 : vector<16x32xf32>
      %35 = arith.mulf %34, %34 : vector<16x32xf32>
      %cst_27 = arith.constant dense<0.000000e+00> : vector<16xf32>
      %36 = vector.multi_reduction <add>, %35, %cst_27 [1] : vector<16x32xf32> to vector<16xf32>
      %37 = vector.shape_cast %36 : vector<16xf32> to vector<16x1xf32>
      %cst_28 = arith.constant 3.200000e+01 : f32
      %38 = vector.broadcast %cst_28 : f32 to vector<16x1xf32>
      %39 = arith.divf %37, %38 : vector<16x1xf32>
      %40 = vector.broadcast %32 : vector<16x1xf32> to vector<16x32xf32>
      %41 = arith.subf %28, %40 : vector<16x32xf32>
      %cst_29 = arith.constant 9.99999974E-6 : f32
      %42 = vector.broadcast %cst_29 : f32 to vector<16x1xf32>
      %43 = arith.addf %39, %42 : vector<16x1xf32>
      %44 = math.rsqrt %43 : vector<16x1xf32>
      %45 = vector.broadcast %44 : vector<16x1xf32> to vector<16x32xf32>
      %46 = arith.mulf %41, %45 : vector<16x32xf32>
      %c0_30 = arith.constant 0 : index
      %c0_31 = arith.constant 0 : index
      %47 = vector.load %arg11[%c0_30, %c0_31] : memref<1x32xf32, #tpu.memory_space<vmem>>, vector<1x32xf32>
      %48 = vector.broadcast %47 : vector<1x32xf32> to vector<16x32xf32>
      %49 = arith.mulf %46, %48 : vector<16x32xf32>
      %c0_32 = arith.constant 0 : index
      %c0_33 = arith.constant 0 : index
      %50 = vector.load %arg12[%c0_32, %c0_33] : memref<1x32xf32, #tpu.memory_space<vmem>>, vector<1x32xf32>
      %51 = vector.broadcast %50 : vector<1x32xf32> to vector<16x32xf32>
      %52 = arith.addf %49, %51 : vector<16x32xf32>
      %53 = arith.addf %52, %22 : vector<16x32xf32>
      %54 = vector.shape_cast %53 : vector<16x32xf32> to vector<2x8x32xf32>
      %c0_34 = arith.constant 0 : index
      %c0_35 = arith.constant 0 : index
      %c0_36 = arith.constant 0 : index
      %55 = vector.load %arg13[%c0_34, %c0_35, %c0_36] : memref<2x8x32xf32, #tpu.memory_space<vmem>>, vector<2x8x32xf32>
      tpu.vector_store %arg13[%c0_34, %c0_35, %c0_36], %54 {strides = array<i32>} : memref<2x8x32xf32, #tpu.memory_space<vmem>>, vector<2x8x32xf32>,
    } else {
    }
    return
  }
  func.func @transform_0(%arg0: i32, %arg1: i32) -> (i32, i32, i32) {
    %c0_i32 = arith.constant 0 : i32
    %c0_i32_0 = arith.constant 0 : i32
    %c0_i32_1 = arith.constant 0 : i32
    return %arg0, %c0_i32, %c0_i32_0 : i32, i32, i32
  }
  func.func @transform_1(%arg0: i32, %arg1: i32) -> (i32, i32) {
    %c0_i32 = arith.constant 0 : i32
    %c0_i32_0 = arith.constant 0 : i32
    %c0_i32_1 = arith.constant 0 : i32
    return %c0_i32, %c0_i32_0 : i32, i32
  }
  func.func @transform_2(%arg0: i32, %arg1: i32) -> (i32, i32) {
    %c0_i32 = arith.constant 0 : i32
    %c0_i32_0 = arith.constant 0 : i32
    %c0_i32_1 = arith.constant 0 : i32
    return %c0_i32, %c0_i32_0 : i32, i32
  }
  func.func @transform_3(%arg0: i32, %arg1: i32) -> (i32, i32) {
    %c0_i32 = arith.constant 0 : i32
    %c0_i32_0 = arith.constant 0 : i32
    return %c0_i32, %arg1 : i32, i32
  }
  func.func @transform_4(%arg0: i32, %arg1: i32) -> (i32, i32) {
    %c0_i32 = arith.constant 0 : i32
    %c0_i32_0 = arith.constant 0 : i32
    return %c0_i32, %arg1 : i32, i32
  }
  func.func @transform_5(%arg0: i32, %arg1: i32) -> (i32, i32) {
    %c0_i32 = arith.constant 0 : i32
    %c0_i32_0 = arith.constant 0 : i32
    return %arg1, %c0_i32 : i32, i32
  }
  func.func @transform_6(%arg0: i32, %arg1: i32) -> (i32, i32) {
    %c0_i32 = arith.constant 0 : i32
    %c0_i32_0 = arith.constant 0 : i32
    %c0_i32_1 = arith.constant 0 : i32
    return %c0_i32, %c0_i32_0 : i32, i32
  }
  func.func @transform_7(%arg0: i32, %arg1: i32) -> (i32, i32) {
    %c0_i32 = arith.constant 0 : i32
    %c0_i32_0 = arith.constant 0 : i32
    %c0_i32_1 = arith.constant 0 : i32
    return %c0_i32, %c0_i32_0 : i32, i32
  }
  func.func @transform_8(%arg0: i32, %arg1: i32) -> (i32, i32) {
    %c0_i32 = arith.constant 0 : i32
    %c0_i32_0 = arith.constant 0 : i32
    %c0_i32_1 = arith.constant 0 : i32
    return %c0_i32, %c0_i32_0 : i32, i32
  }
  func.func @transform_9(%arg0: i32, %arg1: i32) -> (i32, i32) {
    %c0_i32 = arith.constant 0 : i32
    %c0_i32_0 = arith.constant 0 : i32
    %c0_i32_1 = arith.constant 0 : i32
    return %c0_i32, %c0_i32_0 : i32, i32
  }
  func.func @transform_10(%arg0: i32, %arg1: i32) -> (i32, i32) {
    %c0_i32 = arith.constant 0 : i32
    %c0_i32_0 = arith.constant 0 : i32
    %c0_i32_1 = arith.constant 0 : i32
    return %c0_i32, %c0_i32_0 : i32, i32
  }
  func.func @transform_11(%arg0: i32, %arg1: i32) -> (i32, i32, i32) {
    %c0_i32 = arith.constant 0 : i32
    %c0_i32_0 = arith.constant 0 : i32
    %c0_i32_1 = arith.constant 0 : i32
    return %arg0, %c0_i32, %c0_i32_0 : i32, i32, i32
  }
  func.func @transform_12(%arg0: i32, %arg1: i32) -> (i32, i32, i32, i32) {
    %c0_i32 = arith.constant 0 : i32
    %c0_i32_0 = arith.constant 0 : i32
    %c0_i32_1 = arith.constant 0 : i32
    %c0_i32_2 = arith.constant 0 : i32
    return %arg0, %c0_i32, %c0_i32_0, %c0_i32_1 : i32, i32, i32, i32
  }
}

</mosaic_0001>

<llo_original>
// kernel: tpu_custom_call.1
$region0: #{tpu_custom_call.1}
  #allocation0 [shape = 'u32[]', space=smem, size = 0x4, offset = 0x4, fixed_abs, tag = 'smem constant byte address 0x4 - core index']
  #allocation1 [shape = 'u32[144,128]{1,0:T(1,128)}', space=vmem, size = 0x12000, scoped, tag = 'internal scratch']
  #allocation2 [shape = 'f32[16,32]{1,0:T(8,128)}', space=vmem, size = 0x2000, scoped, tag = 'scratch operand']
  #allocation3 [shape = 'f32[16,32]{1,0:T(8,128)}', space=vmem, size = 0x2000, scoped, tag = 'scratch operand']
  %s0 = inlined_call_operand.vmem [shape: f32[2,8,32], index: 0, kind: input, shape index: {}]
  %s1 = inlined_call_operand.vmem [shape: bf16[32,96], index: 1, kind: input, shape index: {}]
  %s2 = inlined_call_operand.vmem [shape: bf16[32,32], index: 2, kind: input, shape index: {}]
  %s3 = inlined_call_operand.hbm [shape: bf16[32,64], index: 3, kind: input, shape index: {}]
  %s4 = inlined_call_operand.vmem [shape: f32[1,64], index: 4, kind: input, shape index: {}]
  %s5 = inlined_call_operand.vmem [shape: bf16[64,32], index: 5, kind: input, shape index: {}]
  %s6 = inlined_call_operand.vmem [shape: f32[1,32], index: 6, kind: input, shape index: {}]
  %s7 = inlined_call_operand.vmem [shape: f32[1,32], index: 7, kind: input, shape index: {}]
  %s8 = inlined_call_operand.vmem [shape: f32[1,32], index: 8, kind: input, shape index: {}]
  %s9 = inlined_call_operand.vmem [shape: f32[1,32], index: 9, kind: input, shape index: {}]
  %s10 = inlined_call_operand.vmem [shape: f32[1,32], index: 10, kind: input, shape index: {}]
  %s11 = inlined_call_operand.hbm [shape: f32[2,8,32], index: 11, kind: output, shape index: {0}]
  %s12 = inlined_call_operand.hbm [shape: f32[2,4,8,8], index: 12, kind: output, shape index: {1}]
  %13 = xla_tuple %s11, %s12
  %s14 = sld [smem:[#allocation0]]
  $region74: #{tpu_custom_call.1} parent=0
    _
  %s16 = ssub.s32 1, %s14
  %s17 = scalar_select 0, %s16, %s14
  $region1: #{tpu_custom_call.1} parent=0
    #allocation4 [shape = 'u8[8192]{0}', space=vmem, size = 0x2000, scoped, tag = 'input window, operand 3, single buffered']
    #allocation5 [shape = 's32[1]{0}', space=sflag, size = 0x4, scoped, tag = 'scoped memory for tpu_custom_call.1']
    #allocation6 [shape = 's32[1]{0}', space=sflag, size = 0x4, scoped, tag = 'scoped memory for tpu_custom_call.1']
    #allocation7 [shape = 'u8[8192]{0}', space=vmem, size = 0x2000, scoped, tag = 'output window, operand 0, single buffered']
    #allocation8 [shape = 'u8[32768]{0}', space=vmem, size = 0x8000, scoped, tag = 'output window, operand 1, single buffered']
    #allocation9 [shape = 's32[1]{0}', space=sflag, size = 0x4, scoped, tag = 'scoped memory for tpu_custom_call.1']
    %18 = vsyncpa [#allocation5], 0
    %19 = vsyncpa [#allocation6], 0
    %20 = vsyncpa [#allocation9], 0
    // Predicated region
    $region2: #{tpu_custom_call.1} parent=1 // pred_check
      _
    $region3: #{tpu_custom_call.1} parent=1 // pred_check_branch
      %22 = sbr.rel (0) target = $region5
    $region4: #{tpu_custom_call.1} parent=1 // pred_region
      _
    $region5: #{tpu_custom_call.1} parent=1 // pred_fallthru
      _
    // Predicated region
    $region6: #{tpu_custom_call.1} parent=1 // pred_check
      _
    $region7: #{tpu_custom_call.1} parent=1 // pred_check_branch
      %24 = sbr.rel (0) target = $region9
    $region8: #{tpu_custom_call.1} parent=1 // pred_region
      _
    $region9: #{tpu_custom_call.1} parent=1 // pred_fallthru
      _
    // Predicated region
    $region10: #{tpu_custom_call.1} parent=1 // pred_check
      _
    $region11: #{tpu_custom_call.1} parent=1 // pred_check_branch
      %26 = sbr.rel (0) target = $region13
    $region12: #{tpu_custom_call.1} parent=1 // pred_region
      _
    $region13: #{tpu_custom_call.1} parent=1 // pred_fallthru
      _
    // Predicated region
    $region14: #{tpu_custom_call.1} parent=1 // pred_check
      _
    $region15: #{tpu_custom_call.1} parent=1 // pred_check_branch
      %28 = sbr.rel (0) target = $region17
    $region16: #{tpu_custom_call.1} parent=1 // pred_region
      %s30 = ssub.s32 256, 256
      %31 = vsyncadd [#allocation5], %s30
      %s32 = sshll.u32 [#allocation4], 4
      %s33 = int_to_ptr.vmem [resolvable:$true] %s32
      %38 = dma.hbm_to_vmem [thread:$0]  %s3, 256, %s33, [#allocation5], 64, 64, 4
    $region17: #{tpu_custom_call.1} parent=1 // pred_fallthru
      _
    // Predicated region
    $region18: #{tpu_custom_call.1} parent=1 // pred_check
      _
    $region19: #{tpu_custom_call.1} parent=1 // pred_check_branch
      %40 = sbr.rel (0) target = $region21
    $region20: #{tpu_custom_call.1} parent=1 // pred_region
      _
    $region21: #{tpu_custom_call.1} parent=1 // pred_fallthru
      _
    // Predicated region
    $region22: #{tpu_custom_call.1} parent=1 // pred_check
      _
    $region23: #{tpu_custom_call.1} parent=1 // pred_check_branch
      %42 = sbr.rel (0) target = $region25
    $region24: #{tpu_custom_call.1} parent=1 // pred_region
      _
    $region25: #{tpu_custom_call.1} parent=1 // pred_fallthru
      _
    // Predicated region
    $region26: #{tpu_custom_call.1} parent=1 // pred_check
      _
    $region27: #{tpu_custom_call.1} parent=1 // pred_check_branch
      %44 = sbr.rel (0) target = $region29
    $region28: #{tpu_custom_call.1} parent=1 // pred_region
      _
    $region29: #{tpu_custom_call.1} parent=1 // pred_fallthru
      _
    // Predicated region
    $region30: #{tpu_custom_call.1} parent=1 // pred_check
      _
    $region31: #{tpu_custom_call.1} parent=1 // pred_check_branch
      %46 = sbr.rel (0) target = $region33
    $region32: #{tpu_custom_call.1} parent=1 // pred_region
      _
    $region33: #{tpu_custom_call.1} parent=1 // pred_fallthru
      _
    // Predicated region
    $region34: #{tpu_custom_call.1} parent=1 // pred_check
      _
    $region35: #{tpu_custom_call.1} parent=1 // pred_check_branch
      %48 = sbr.rel (0) target = $region37
    $region36: #{tpu_custom_call.1} parent=1 // pred_region
      _
    $region37: #{tpu_custom_call.1} parent=1 // pred_fallthru
      _
    // Predicated region
    $region38: #{tpu_custom_call.1} parent=1 // pred_check
      _
    $region39: #{tpu_custom_call.1} parent=1 // pred_check_branch
      %50 = sbr.rel (0) target = $region41
    $region40: #{tpu_custom_call.1} parent=1 // pred_region
      _
    $region41: #{tpu_custom_call.1} parent=1 // pred_fallthru
      _
    // Predicated region
    $region42: #{tpu_custom_call.1} parent=1 // pred_check
      _
    $region43: #{tpu_custom_call.1} parent=1 // pred_check_branch
      %52 = sbr.rel (0) target = $region45
    $region44: #{tpu_custom_call.1} parent=1 // pred_region
      _
    $region45: #{tpu_custom_call.1} parent=1 // pred_fallthru
      _
    // Predicated region
    $region46: #{tpu_custom_call.1} parent=1 // pred_check
      _
    $region47: #{tpu_custom_call.1} parent=1 // pred_check_branch
      %54 = sbr.rel (0) target = $region49
    $region48: #{tpu_custom_call.1} parent=1 // pred_region
      %55 = dma.done [#allocation5], 256
    $region49: #{tpu_custom_call.1} parent=1 // pred_fallthru
      _
    %p57 = scmp.eq.s32.totalorder 0, 0
    // Predicated region
    $region50: #{tpu_custom_call.1} parent=1 // pred_check
      %p58 = pneg %p57
    $region51: #{tpu_custom_call.1} parent=1 // pred_check_branch
      %60 = sbr.rel (%p58) target = $region53
    $region52: #{tpu_custom_call.1} parent=1 // pred_region
      %v61 = vld [vmem:[%s0] sm:$0xff]
      %v62 = vld [vmem:[%s0 + $0x8] sm:$0xff]
      %v63 = vpack.c.bf16 %v62, %v61
      %v64 = vld [vmem:[%s1] sm:$0xf]
      %v65 = vld [vmem:[%s1 + $0x4] sm:$0xf]
      %v66 = vld [vmem:[%s1 + $0x8] sm:$0xf]
      %v67 = vld [vmem:[%s1 + $0xc] sm:$0xf]
      %v72 = vunpack.c.l.b16 %v64
      %v73 = vunpack.c.l.b16 %v65
      %v74 = vunpack.c.l.b16 %v66
      %v75 = vunpack.c.l.b16 %v67
      %v76 = vpack.c.b16 %v73, %v72
      %v77 = vpack.c.b16 %v75, %v74
      %vm80 = vcmask 261120
      %v82 = vsel %vm80, %v63, 0
      %84 = vmatprep.subr.bf16.mxu0 0
      %85 = vmatpush1.bf16.msra.mxu0 0
      %86 = vmatprep.subr.bf16.mxu0 0
      %87 = vmatpush1.bf16.msra.mxu0 0
      %88 = vmatprep.subr.bf16.mxu0 0
      %89 = vmatpush1.bf16.msra.mxu0 0
      %90 = vmatprep.subr.bf16.mxu0 0
      %91 = vmatpush1.bf16.msra.mxu0 0
      %92 = vmatprep.subr.bf16.mxu0 0
      %93 = vmatpush1.bf16.msra.mxu0 0
      %94 = vmatprep.subr.bf16.mxu0 0
      %95 = vmatpush1.bf16.msra.mxu0 0
      %96 = vmatprep.subr.bf16.mxu0 0
      %97 = vmatpush1.bf16.msra.mxu0 %v77
      %98 = vmatprep.subr.bf16.mxu0 0
      %99 = vmatpush1.bf16.msra.mxu0 %v76
      %100 = vmatprep.subr.bf16.mxu0 0
      %101 = vmatpush2.bf16.msra.mxu0 0
      %102 = vmatprep.subr.bf16.mxu0 0
      %103 = vmatpush2.bf16.msra.mxu0 0
      %104 = vmatprep.subr.bf16.mxu0 0
      %105 = vmatpush2.bf16.msra.mxu0 0
      %106 = vmatprep.subr.bf16.mxu0 0
      %107 = vmatpush2.bf16.msra.mxu0 0
      %108 = vmatprep.subr.bf16.mxu0 0
      %109 = vmatpush2.bf16.msra.mxu0 0
      %110 = vmatprep.subr.bf16.mxu0 0
      %111 = vmatpush2.bf16.msra.mxu0 0
      %112 = vmatprep.subr.bf16.mxu0 0
      %113 = vmatpush2.bf16.msra.mxu0 0
      %114 = vmatprep.subr.bf16.mxu0 0
      %115 = vmatpush2.bf16.msra.mxu0 0
      %116 = vmatprep.mubr.bf16.mxu0 0
      %117 = vmatmul.mubr.bf16.gmra.mxu0 %v82
      %v118 = vpop.f32.mrf.mxu0
      %v119 = vadd.f32 0.0, %v118
      %v120 = vpop.f32.mrf.mxu0
      %v121 = vpop.f32.mrf.mxu0
      %v122 = vadd.f32 0.0, %v121
      %v123 = vpop.f32.mrf.mxu0
      %124 = vdwg.mxu0
      %v125 = vpack.c.bf16 %v119, %v119
      %v126 = vpack.c.bf16 %v122, %v122
      %128 = vrot.lane.b32.xlu0 %v125, 96
      %v129 = vpop.permute.xlu0 %128
      %vm130 = vcmask 64512
      %v132 = vsel %vm130, %v125, 0
      %v135 = vsel %vm130, %v129, 0
      %137 = vmatprep.subr.bf16.mxu0 0
      %138 = vmatpush1.bf16.xpose.msra.mxu0 0
      %139 = vmatprep.subr.bf16.mxu0 0
      %140 = vmatpush1.bf16.xpose.msra.mxu0 0
      %141 = vmatprep.subr.bf16.mxu0 0
      %142 = vmatpush1.bf16.xpose.msra.mxu0 0
      %143 = vmatprep.subr.bf16.mxu0 0
      %144 = vmatpush1.bf16.xpose.msra.mxu0 0
      %145 = vmatprep.subr.bf16.mxu0 0
      %146 = vmatpush1.bf16.xpose.msra.mxu0 0
      %147 = vmatprep.subr.bf16.mxu0 0
      %148 = vmatpush1.bf16.xpose.msra.mxu0 0
      %149 = vmatprep.subr.bf16.mxu0 0
      %150 = vmatpush1.bf16.xpose.msra.mxu0 0
      %151 = vmatprep.subr.bf16.mxu0 0
      %152 = vmatpush1.bf16.xpose.msra.mxu0 %v135
      %153 = vmatprep.subr.bf16.mxu0 0
      %154 = vmatpush2.bf16.xpose.msra.mxu0 0
      %155 = vmatprep.subr.bf16.mxu0 0
      %156 = vmatpush2.bf16.xpose.msra.mxu0 0
      %157 = vmatprep.subr.bf16.mxu0 0
      %158 = vmatpush2.bf16.xpose.msra.mxu0 0
      %159 = vmatprep.subr.bf16.mxu0 0
      %160 = vmatpush2.bf16.xpose.msra.mxu0 0
      %161 = vmatprep.subr.bf16.mxu0 0
      %162 = vmatpush2.bf16.xpose.msra.mxu0 0
      %163 = vmatprep.subr.bf16.mxu0 0
      %164 = vmatpush2.bf16.xpose.msra.mxu0 0
      %165 = vmatprep.subr.bf16.mxu0 0
      %166 = vmatpush2.bf16.xpose.msra.mxu0 0
      %167 = vmatprep.subr.bf16.mxu0 0
      %168 = vmatpush2.bf16.xpose.msra.mxu0 0
      %169 = vmatprep.mubr.bf16.mxu0 0
      %170 = vmatmul.mubr.bf16.gmra.mxu0 %v132
      %v171 = vpop.f32.mrf.mxu0
      %v172 = vadd.f32 0.0, %v171
      %v173 = vpop.f32.mrf.mxu0
      %v174 = vpop.f32.mrf.mxu0
      %v175 = vpop.f32.mrf.mxu0
      %176 = vdwg.mxu0
      %178 = vrot.lane.b32.xlu0 %v126, 96
      %v179 = vpop.permute.xlu0 %178
      %v181 = vsel %vm130, %v126, 0
      %v184 = vsel %vm130, %v179, 0
      %186 = vmatprep.subr.bf16.mxu0 0
      %187 = vmatpush1.bf16.xpose.msra.mxu0 0
      %188 = vmatprep.subr.bf16.mxu0 0
      %189 = vmatpush1.bf16.xpose.msra.mxu0 0
      %190 = vmatprep.subr.bf16.mxu0 0
      %191 = vmatpush1.bf16.xpose.msra.mxu0 0
      %192 = vmatprep.subr.bf16.mxu0 0
      %193 = vmatpush1.bf16.xpose.msra.mxu0 0
      %194 = vmatprep.subr.bf16.mxu0 0
      %195 = vmatpush1.bf16.xpose.msra.mxu0 0
      %196 = vmatprep.subr.bf16.mxu0 0
      %197 = vmatpush1.bf16.xpose.msra.mxu0 0
      %198 = vmatprep.subr.bf16.mxu0 0
      %199 = vmatpush1.bf16.xpose.msra.mxu0 0
      %200 = vmatprep.subr.bf16.mxu0 0
      %201 = vmatpush1.bf16.xpose.msra.mxu0 %v184
      %202 = vmatprep.subr.bf16.mxu0 0
      %203 = vmatpush2.bf16.xpose.msra.mxu0 0
      %204 = vmatprep.subr.bf16.mxu0 0
      %205 = vmatpush2.bf16.xpose.msra.mxu0 0
      %206 = vmatprep.subr.bf16.mxu0 0
      %207 = vmatpush2.bf16.xpose.msra.mxu0 0
      %208 = vmatprep.subr.bf16.mxu0 0
      %209 = vmatpush2.bf16.xpose.msra.mxu0 0
      %210 = vmatprep.subr.bf16.mxu0 0
      %211 = vmatpush2.bf16.xpose.msra.mxu0 0
      %212 = vmatprep.subr.bf16.mxu0 0
      %213 = vmatpush2.bf16.xpose.msra.mxu0 0
      %214 = vmatprep.subr.bf16.mxu0 0
      %215 = vmatpush2.bf16.xpose.msra.mxu0 0
      %216 = vmatprep.subr.bf16.mxu0 0
      %217 = vmatpush2.bf16.xpose.msra.mxu0 0
      %218 = vmatprep.mubr.bf16.mxu0 0
      %219 = vmatmul.mubr.bf16.gmra.mxu0 %v181
      %v220 = vpop.f32.mrf.mxu0
      %v221 = vadd.f32 0.0, %v220
      %v222 = vpop.f32.mrf.mxu0
      %v223 = vpop.f32.mrf.mxu0
      %v224 = vpop.f32.mrf.mxu0
      %225 = vdwg.mxu0
      %v226 = vsel %vm130, %v172, -inf
      %227 = vmax.xlane.f32.xlu0 %v226
      %v228 = vpop.xlane.xlu0 %227
      %v229 = vsel %vm130, %v221, -inf
      %230 = vmax.xlane.f32.xlu0 %v229
      %v231 = vpop.xlane.xlu0 %230
      %v232 = vsub.f32 %v172, %v228
      %v233 = vsub.f32 %v221, %v231
      %v234 = vmul.f32 %v232, 1.442695
      %v235 = vpow.pop %v234
      %v236 = vmul.f32 %v233, 1.442695
      %v237 = vpow.pop %v236
      %v238 = vsel %vm130, %v235, 0.0
      %239 = vadd.xlane.f32.xlu0 %v238
      %v240 = vpop.xlane.xlu0 %239
      %v241 = vsel %vm130, %v237, 0.0
      %242 = vadd.xlane.f32.xlu0 %v241
      %v243 = vpop.xlane.xlu0 %242
      %v244 = vrcp.pop %v240
      %v245 = vrcp.pop %v243
      %v246 = vmul.f32 %v235, %v244
      %v247 = vmul.f32 %v237, %v245
      %248 = vst.msk [vmem:[#allocation8] sm:$0xff] %vm130, %v246
      %249 = vst.msk [vmem:[#allocation8 + $0x20] sm:$0xff] %vm130, %v247
      %v250 = vpack.c.bf16 %v246, %v246
      %v251 = vpack.c.bf16 %v247, %v247
      %252 = vrot.lane.b32.xlu0 %v125, 64
      %v253 = vpop.permute.xlu0 %252
      %v255 = vsel %vm130, %v250, 0
      %vm257 = vcmask 1043456
      %v259 = vsel %vm257, %v253, 0
      %261 = vmatprep.subr.bf16.mxu0 0
      %262 = vmatpush1.bf16.msra.mxu0 0
      %263 = vmatprep.subr.bf16.mxu0 0
      %264 = vmatpush1.bf16.msra.mxu0 0
      %265 = vmatprep.subr.bf16.mxu0 0
      %266 = vmatpush1.bf16.msra.mxu0 0
      %267 = vmatprep.subr.bf16.mxu0 0
      %268 = vmatpush1.bf16.msra.mxu0 0
      %269 = vmatprep.subr.bf16.mxu0 0
      %270 = vmatpush1.bf16.msra.mxu0 0
      %271 = vmatprep.subr.bf16.mxu0 0
      %272 = vmatpush1.bf16.msra.mxu0 0
      %273 = vmatprep.subr.bf16.mxu0 0
      %274 = vmatpush1.bf16.msra.mxu0 0
      %275 = vmatprep.subr.bf16.mxu0 0
      %276 = vmatpush1.bf16.msra.mxu0 %v259
      %277 = vmatprep.subr.bf16.mxu0 0
      %278 = vmatpush2.bf16.msra.mxu0 0
      %279 = vmatprep.subr.bf16.mxu0 0
      %280 = vmatpush2.bf16.msra.mxu0 0
      %281 = vmatprep.subr.bf16.mxu0 0
      %282 = vmatpush2.bf16.msra.mxu0 0
      %283 = vmatprep.subr.bf16.mxu0 0
      %284 = vmatpush2.bf16.msra.mxu0 0
      %285 = vmatprep.subr.bf16.mxu0 0
      %286 = vmatpush2.bf16.msra.mxu0 0
      %287 = vmatprep.subr.bf16.mxu0 0
      %288 = vmatpush2.bf16.msra.mxu0 0
      %289 = vmatprep.subr.bf16.mxu0 0
      %290 = vmatpush2.bf16.msra.mxu0 0
      %291 = vmatprep.subr.bf16.mxu0 0
      %292 = vmatpush2.bf16.msra.mxu0 0
      %293 = vmatprep.mubr.bf16.mxu0 0
      %294 = vmatmul.mubr.bf16.gmra.mxu0 %v255
      %v295 = vpop.f32.mrf.mxu0
      %v296 = vadd.f32 0.0, %v295
      %v297 = vpop.f32.mrf.mxu0
      %v298 = vpop.f32.mrf.mxu0
      %v299 = vpop.f32.mrf.mxu0
      %300 = vdwg.mxu0
      %301 = vrot.lane.b32.xlu0 %v126, 64
      %v302 = vpop.permute.xlu0 %301
      %v304 = vsel %vm130, %v251, 0
      %v307 = vsel %vm257, %v302, 0
      %309 = vmatprep.subr.bf16.mxu0 0
      %310 = vmatpush1.bf16.msra.mxu0 0
      %311 = vmatprep.subr.bf16.mxu0 0
      %312 = vmatpush1.bf16.msra.mxu0 0
      %313 = vmatprep.subr.bf16.mxu0 0
      %314 = vmatpush1.bf16.msra.mxu0 0
      %315 = vmatprep.subr.bf16.mxu0 0
      %316 = vmatpush1.bf16.msra.mxu0 0
      %317 = vmatprep.subr.bf16.mxu0 0
      %318 = vmatpush1.bf16.msra.mxu0 0
      %319 = vmatprep.subr.bf16.mxu0 0
      %320 = vmatpush1.bf16.msra.mxu0 0
      %321 = vmatprep.subr.bf16.mxu0 0
      %322 = vmatpush1.bf16.msra.mxu0 0
      %323 = vmatprep.subr.bf16.mxu0 0
      %324 = vmatpush1.bf16.msra.mxu0 %v307
      %325 = vmatprep.subr.bf16.mxu0 0
      %326 = vmatpush2.bf16.msra.mxu0 0
      %327 = vmatprep.subr.bf16.mxu0 0
      %328 = vmatpush2.bf16.msra.mxu0 0
      %329 = vmatprep.subr.bf16.mxu0 0
      %330 = vmatpush2.bf16.msra.mxu0 0
      %331 = vmatprep.subr.bf16.mxu0 0
      %332 = vmatpush2.bf16.msra.mxu0 0
      %333 = vmatprep.subr.bf16.mxu0 0
      %334 = vmatpush2.bf16.msra.mxu0 0
      %335 = vmatprep.subr.bf16.mxu0 0
      %336 = vmatpush2.bf16.msra.mxu0 0
      %337 = vmatprep.subr.bf16.mxu0 0
      %338 = vmatpush2.bf16.msra.mxu0 0
      %339 = vmatprep.subr.bf16.mxu0 0
      %340 = vmatpush2.bf16.msra.mxu0 0
      %341 = vmatprep.mubr.bf16.mxu0 0
      %342 = vmatmul.mubr.bf16.gmra.mxu0 %v304
      %v343 = vpop.f32.mrf.mxu0
      %v344 = vadd.f32 0.0, %v343
      %v345 = vpop.f32.mrf.mxu0
      %v346 = vpop.f32.mrf.mxu0
      %v347 = vpop.f32.mrf.mxu0
      %348 = vdwg.mxu0
      %v349 = vpack.c.bf16 %v344, %v296
      %v350 = vld [vmem:[%s2] sm:$0xf]
      %351 = vrot.lane.b32.xlu0 %v125, 120
      %v352 = vpop.permute.xlu0 %351
      %353 = vrot.lane.b32.xlu0 %v125, 88
      %v354 = vpop.permute.xlu0 %353
      %v356 = vsel %vm130, %v352, 0
      %v359 = vsel %vm130, %v354, 0
      %361 = vmatprep.subr.bf16.mxu0 0
      %362 = vmatpush1.bf16.xpose.msra.mxu0 0
      %363 = vmatprep.subr.bf16.mxu0 0
      %364 = vmatpush1.bf16.xpose.msra.mxu0 0
      %365 = vmatprep.subr.bf16.mxu0 0
      %366 = vmatpush1.bf16.xpose.msra.mxu0 0
      %367 = vmatprep.subr.bf16.mxu0 0
      %368 = vmatpush1.bf16.xpose.msra.mxu0 0
      %369 = vmatprep.subr.bf16.mxu0 0
      %370 = vmatpush1.bf16.xpose.msra.mxu0 0
      %371 = vmatprep.subr.bf16.mxu0 0
      %372 = vmatpush1.bf16.xpose.msra.mxu0 0
      %373 = vmatprep.subr.bf16.mxu0 0
      %374 = vmatpush1.bf16.xpose.msra.mxu0 0
      %375 = vmatprep.subr.bf16.mxu0 0
      %376 = vmatpush1.bf16.xpose.msra.mxu0 %v359
      %377 = vmatprep.subr.bf16.mxu0 0
      %378 = vmatpush2.bf16.xpose.msra.mxu0 0
      %379 = vmatprep.subr.bf16.mxu0 0
      %380 = vmatpush2.bf16.xpose.msra.mxu0 0
      %381 = vmatprep.subr.bf16.mxu0 0
      %382 = vmatpush2.bf16.xpose.msra.mxu0 0
      %383 = vmatprep.subr.bf16.mxu0 0
      %384 = vmatpush2.bf16.xpose.msra.mxu0 0
      %385 = vmatprep.subr.bf16.mxu0 0
      %386 = vmatpush2.bf16.xpose.msra.mxu0 0
      %387 = vmatprep.subr.bf16.mxu0 0
      %388 = vmatpush2.bf16.xpose.msra.mxu0 0
      %389 = vmatprep.subr.bf16.mxu0 0
      %390 = vmatpush2.bf16.xpose.msra.mxu0 0
      %391 = vmatprep.subr.bf16.mxu0 0
      %392 = vmatpush2.bf16.xpose.msra.mxu0 0
      %393 = vmatprep.mubr.bf16.mxu0 0
      %394 = vmatmul.mubr.bf16.gmra.mxu0 %v356
      %v395 = vpop.f32.mrf.mxu0
      %v396 = vadd.f32 0.0, %v395
      %v397 = vpop.f32.mrf.mxu0
      %v398 = vpop.f32.mrf.mxu0
      %v399 = vpop.f32.mrf.mxu0
      %400 = vdwg.mxu0
      %401 = vrot.lane.b32.xlu0 %v126, 120
      %v402 = vpop.permute.xlu0 %401
      %403 = vrot.lane.b32.xlu0 %v126, 88
      %v404 = vpop.permute.xlu0 %403
      %v406 = vsel %vm130, %v402, 0
      %v409 = vsel %vm130, %v404, 0
      %411 = vmatprep.subr.bf16.mxu0 0
      %412 = vmatpush1.bf16.xpose.msra.mxu0 0
      %413 = vmatprep.subr.bf16.mxu0 0
      %414 = vmatpush1.bf16.xpose.msra.mxu0 0
      %415 = vmatprep.subr.bf16.mxu0 0
      %416 = vmatpush1.bf16.xpose.msra.mxu0 0
      %417 = vmatprep.subr.bf16.mxu0 0
      %418 = vmatpush1.bf16.xpose.msra.mxu0 0
      %419 = vmatprep.subr.bf16.mxu0 0
      %420 = vmatpush1.bf16.xpose.msra.mxu0 0
      %421 = vmatprep.subr.bf16.mxu0 0
      %422 = vmatpush1.bf16.xpose.msra.mxu0 0
      %423 = vmatprep.subr.bf16.mxu0 0
      %424 = vmatpush1.bf16.xpose.msra.mxu0 0
      %425 = vmatprep.subr.bf16.mxu0 0
      %426 = vmatpush1.bf16.xpose.msra.mxu0 %v409
      %427 = vmatprep.subr.bf16.mxu0 0
      %428 = vmatpush2.bf16.xpose.msra.mxu0 0
      %429 = vmatprep.subr.bf16.mxu0 0
      %430 = vmatpush2.bf16.xpose.msra.mxu0 0
      %431 = vmatprep.subr.bf16.mxu0 0
      %432 = vmatpush2.bf16.xpose.msra.mxu0 0
      %433 = vmatprep.subr.bf16.mxu0 0
      %434 = vmatpush2.bf16.xpose.msra.mxu0 0
      %435 = vmatprep.subr.bf16.mxu0 0
      %436 = vmatpush2.bf16.xpose.msra.mxu0 0
      %437 = vmatprep.subr.bf16.mxu0 0
      %438 = vmatpush2.bf16.xpose.msra.mxu0 0
      %439 = vmatprep.subr.bf16.mxu0 0
      %440 = vmatpush2.bf16.xpose.msra.mxu0 0
      %441 = vmatprep.subr.bf16.mxu0 0
      %442 = vmatpush2.bf16.xpose.msra.mxu0 0
      %443 = vmatprep.mubr.bf16.mxu0 0
      %444 = vmatmul.mubr.bf16.gmra.mxu0 %v406
      %v445 = vpop.f32.mrf.mxu0
      %v446 = vadd.f32 0.0, %v445
      %v447 = vpop.f32.mrf.mxu0
      %v448 = vpop.f32.mrf.mxu0
      %v449 = vpop.f32.mrf.mxu0
      %450 = vdwg.mxu0
      %v451 = vsel %vm130, %v396, -inf
      %452 = vmax.xlane.f32.xlu0 %v451
      %v453 = vpop.xlane.xlu0 %452
      %v454 = vsel %vm130, %v446, -inf
      %455 = vmax.xlane.f32.xlu0 %v454
      %v456 = vpop.xlane.xlu0 %455
      %v457 = vsub.f32 %v396, %v453
      %v458 = vsub.f32 %v446, %v456
      %v459 = vmul.f32 %v457, 1.442695
      %v460 = vpow.pop %v459
      %v461 = vmul.f32 %v458, 1.442695
      %v462 = vpow.pop %v461
      %v463 = vsel %vm130, %v460, 0.0
      %464 = vadd.xlane.f32.xlu0 %v463
      %v465 = vpop.xlane.xlu0 %464
      %v466 = vsel %vm130, %v462, 0.0
      %467 = vadd.xlane.f32.xlu0 %v466
      %v468 = vpop.xlane.xlu0 %467
      %v469 = vrcp.pop %v465
      %v470 = vrcp.pop %v468
      %v471 = vmul.f32 %v460, %v469
      %v472 = vmul.f32 %v462, %v470
      %s473 = scalar_lea.vmem [#allocation8], 8
      %474 = vst.msk [vmem:[%s473] sm:$0xff] %vm130, %v471
      %475 = vst.msk [vmem:[%s473 + $0x20] sm:$0xff] %vm130, %v472
      %v476 = vpack.c.bf16 %v471, %v471
      %v477 = vpack.c.bf16 %v472, %v472
      %478 = vrot.lane.b32.xlu0 %v125, 56
      %v479 = vpop.permute.xlu0 %478
      %v481 = vsel %vm130, %v476, 0
      %v484 = vsel %vm257, %v479, 0
      %486 = vmatprep.subr.bf16.mxu0 0
      %487 = vmatpush1.bf16.msra.mxu0 0
      %488 = vmatprep.subr.bf16.mxu0 0
      %489 = vmatpush1.bf16.msra.mxu0 0
      %490 = vmatprep.subr.bf16.mxu0 0
      %491 = vmatpush1.bf16.msra.mxu0 0
      %492 = vmatprep.subr.bf16.mxu0 0
      %493 = vmatpush1.bf16.msra.mxu0 0
      %494 = vmatprep.subr.bf16.mxu0 0
      %495 = vmatpush1.bf16.msra.mxu0 0
      %496 = vmatprep.subr.bf16.mxu0 0
      %497 = vmatpush1.bf16.msra.mxu0 0
      %498 = vmatprep.subr.bf16.mxu0 0
      %499 = vmatpush1.bf16.msra.mxu0 0
      %500 = vmatprep.subr.bf16.mxu0 0
      %501 = vmatpush1.bf16.msra.mxu0 %v484
      %502 = vmatprep.subr.bf16.mxu0 0
      %503 = vmatpush2.bf16.msra.mxu0 0
      %504 = vmatprep.subr.bf16.mxu0 0
      %505 = vmatpush2.bf16.msra.mxu0 0
      %506 = vmatprep.subr.bf16.mxu0 0
      %507 = vmatpush2.bf16.msra.mxu0 0
      %508 = vmatprep.subr.bf16.mxu0 0
      %509 = vmatpush2.bf16.msra.mxu0 0
      %510 = vmatprep.subr.bf16.mxu0 0
      %511 = vmatpush2.bf16.msra.mxu0 0
      %512 = vmatprep.subr.bf16.mxu0 0
      %513 = vmatpush2.bf16.msra.mxu0 0
      %514 = vmatprep.subr.bf16.mxu0 0
      %515 = vmatpush2.bf16.msra.mxu0 0
      %516 = vmatprep.subr.bf16.mxu0 0
      %517 = vmatpush2.bf16.msra.mxu0 0
      %518 = vmatprep.mubr.bf16.mxu0 0
      %519 = vmatmul.mubr.bf16.gmra.mxu0 %v481
      %v520 = vpop.f32.mrf.mxu0
      %v521 = vadd.f32 0.0, %v520
      %v522 = vpop.f32.mrf.mxu0
      %v523 = vpop.f32.mrf.mxu0
      %v524 = vpop.f32.mrf.mxu0
      %525 = vdwg.mxu0
      %526 = vrot.lane.b32.xlu0 %v126, 56
      %v527 = vpop.permute.xlu0 %526
      %v529 = vsel %vm130, %v477, 0
      %v532 = vsel %vm257, %v527, 0
      %534 = vmatprep.subr.bf16.mxu0 0
      %535 = vmatpush1.bf16.msra.mxu0 0
      %536 = vmatprep.subr.bf16.mxu0 0
      %537 = vmatpush1.bf16.msra.mxu0 0
      %538 = vmatprep.subr.bf16.mxu0 0
      %539 = vmatpush1.bf16.msra.mxu0 0
      %540 = vmatprep.subr.bf16.mxu0 0
      %541 = vmatpush1.bf16.msra.mxu0 0
      %542 = vmatprep.subr.bf16.mxu0 0
      %543 = vmatpush1.bf16.msra.mxu0 0
      %544 = vmatprep.subr.bf16.mxu0 0
      %545 = vmatpush1.bf16.msra.mxu0 0
      %546 = vmatprep.subr.bf16.mxu0 0
      %547 = vmatpush1.bf16.msra.mxu0 0
      %548 = vmatprep.subr.bf16.mxu0 0
      %549 = vmatpush1.bf16.msra.mxu0 %v532
      %550 = vmatprep.subr.bf16.mxu0 0
      %551 = vmatpush2.bf16.msra.mxu0 0
      %552 = vmatprep.subr.bf16.mxu0 0
      %553 = vmatpush2.bf16.msra.mxu0 0
      %554 = vmatprep.subr.bf16.mxu0 0
      %555 = vmatpush2.bf16.msra.mxu0 0
      %556 = vmatprep.subr.bf16.mxu0 0
      %557 = vmatpush2.bf16.msra.mxu0 0
      %558 = vmatprep.subr.bf16.mxu0 0
      %559 = vmatpush2.bf16.msra.mxu0 0
      %560 = vmatprep.subr.bf16.mxu0 0
      %561 = vmatpush2.bf16.msra.mxu0 0
      %562 = vmatprep.subr.bf16.mxu0 0
      %563 = vmatpush2.bf16.msra.mxu0 0
      %564 = vmatprep.subr.bf16.mxu0 0
      %565 = vmatpush2.bf16.msra.mxu0 0
      %566 = vmatprep.mubr.bf16.mxu0 0
      %567 = vmatmul.mubr.bf16.gmra.mxu0 %v529
      %v568 = vpop.f32.mrf.mxu0
      %v569 = vadd.f32 0.0, %v568
      %v570 = vpop.f32.mrf.mxu0
      %v571 = vpop.f32.mrf.mxu0
      %v572 = vpop.f32.mrf.mxu0
      %573 = vdwg.mxu0
      %v574 = vpack.c.bf16 %v569, %v521
      %v575 = vld [vmem:[%s2 + $0x4] sm:$0xf]
      %v577 = vsel %vm130, %v574, 0
      %v580 = vsel %vm257, %v575, 0
      %582 = vmatprep.subr.bf16.mxu0 0
      %583 = vmatpush1.bf16.msra.mxu0 0
      %584 = vmatprep.subr.bf16.mxu0 0
      %585 = vmatpush1.bf16.msra.mxu0 0
      %586 = vmatprep.subr.bf16.mxu0 0
      %587 = vmatpush1.bf16.msra.mxu0 0
      %588 = vmatprep.subr.bf16.mxu0 0
      %589 = vmatpush1.bf16.msra.mxu0 0
      %590 = vmatprep.subr.bf16.mxu0 0
      %591 = vmatpush1.bf16.msra.mxu0 0
      %592 = vmatprep.subr.bf16.mxu0 0
      %593 = vmatpush1.bf16.msra.mxu0 0
      %594 = vmatprep.subr.bf16.mxu0 0
      %595 = vmatpush1.bf16.msra.mxu0 0
      %596 = vmatprep.subr.bf16.mxu0 0
      %597 = vmatpush1.bf16.msra.mxu0 %v580
      %598 = vmatprep.subr.bf16.mxu0 0
      %599 = vmatpush2.bf16.msra.mxu0 0
      %600 = vmatprep.subr.bf16.mxu0 0
      %601 = vmatpush2.bf16.msra.mxu0 0
      %602 = vmatprep.subr.bf16.mxu0 0
      %603 = vmatpush2.bf16.msra.mxu0 0
      %604 = vmatprep.subr.bf16.mxu0 0
      %605 = vmatpush2.bf16.msra.mxu0 0
      %606 = vmatprep.subr.bf16.mxu0 0
      %607 = vmatpush2.bf16.msra.mxu0 0
      %608 = vmatprep.subr.bf16.mxu0 0
      %609 = vmatpush2.bf16.msra.mxu0 0
      %610 = vmatprep.subr.bf16.mxu0 0
      %611 = vmatpush2.bf16.msra.mxu0 0
      %612 = vmatprep.subr.bf16.mxu0 0
      %613 = vmatpush2.bf16.msra.mxu0 0
      %614 = vmatprep.mubr.bf16.mxu0 0
      %615 = vmatmul.mubr.bf16.gmra.mxu0 %v577
      %v616 = vpop.f32.mrf.mxu0
      %v617 = vadd.f32 0.0, %v616
      %v618 = vpop.f32.mrf.mxu0
      %v619 = vpop.f32.mrf.mxu0
      %v620 = vadd.f32 0.0, %v619
      %v621 = vpop.f32.mrf.mxu0
      %622 = vdwg.mxu0
      %v624 = vsel %vm130, %v349, 0
      %v627 = vsel %vm257, %v350, 0
      %629 = vmatprep.subr.bf16.mxu0 0
      %630 = vmatpush1.bf16.msra.mxu0 0
      %631 = vmatprep.subr.bf16.mxu0 0
      %632 = vmatpush1.bf16.msra.mxu0 0
      %633 = vmatprep.subr.bf16.mxu0 0
      %634 = vmatpush1.bf16.msra.mxu0 0
      %635 = vmatprep.subr.bf16.mxu0 0
      %636 = vmatpush1.bf16.msra.mxu0 0
      %637 = vmatprep.subr.bf16.mxu0 0
      %638 = vmatpush1.bf16.msra.mxu0 0
      %639 = vmatprep.subr.bf16.mxu0 0
      %640 = vmatpush1.bf16.msra.mxu0 0
      %641 = vmatprep.subr.bf16.mxu0 0
      %642 = vmatpush1.bf16.msra.mxu0 0
      %643 = vmatprep.subr.bf16.mxu0 0
      %644 = vmatpush1.bf16.msra.mxu0 %v627
      %645 = vmatprep.subr.bf16.mxu0 0
      %646 = vmatpush2.bf16.msra.mxu0 0
      %647 = vmatprep.subr.bf16.mxu0 0
      %648 = vmatpush2.bf16.msra.mxu0 0
      %649 = vmatprep.subr.bf16.mxu0 0
      %650 = vmatpush2.bf16.msra.mxu0 0
      %651 = vmatprep.subr.bf16.mxu0 0
      %652 = vmatpush2.bf16.msra.mxu0 0
      %653 = vmatprep.subr.bf16.mxu0 0
      %654 = vmatpush2.bf16.msra.mxu0 0
      %655 = vmatprep.subr.bf16.mxu0 0
      %656 = vmatpush2.bf16.msra.mxu0 0
      %657 = vmatprep.subr.bf16.mxu0 0
      %658 = vmatpush2.bf16.msra.mxu0 0
      %659 = vmatprep.subr.bf16.mxu0 0
      %660 = vmatpush2.bf16.msra.mxu0 0
      %661 = vmatprep.mubr.bf16.mxu0 0
      %662 = vmatmul.mubr.bf16.gmra.mxu0 %v624
      %v663 = vpop.f32.mrf.mxu0
      %v664 = vadd.f32 %v617, %v663
      %v665 = vpop.f32.mrf.mxu0
      %v666 = vpop.f32.mrf.mxu0
      %v667 = vadd.f32 %v620, %v666
      %v668 = vpop.f32.mrf.mxu0
      %669 = vdwg.mxu0
      %670 = vrot.lane.b32.xlu0 %v125, 112
      %v671 = vpop.permute.xlu0 %670
      %672 = vrot.lane.b32.xlu0 %v125, 80
      %v673 = vpop.permute.xlu0 %672
      %v675 = vsel %vm130, %v671, 0
      %v678 = vsel %vm130, %v673, 0
      %680 = vmatprep.subr.bf16.mxu0 0
      %681 = vmatpush1.bf16.xpose.msra.mxu0 0
      %682 = vmatprep.subr.bf16.mxu0 0
      %683 = vmatpush1.bf16.xpose.msra.mxu0 0
      %684 = vmatprep.subr.bf16.mxu0 0
      %685 = vmatpush1.bf16.xpose.msra.mxu0 0
      %686 = vmatprep.subr.bf16.mxu0 0
      %687 = vmatpush1.bf16.xpose.msra.mxu0 0
      %688 = vmatprep.subr.bf16.mxu0 0
      %689 = vmatpush1.bf16.xpose.msra.mxu0 0
      %690 = vmatprep.subr.bf16.mxu0 0
      %691 = vmatpush1.bf16.xpose.msra.mxu0 0
      %692 = vmatprep.subr.bf16.mxu0 0
      %693 = vmatpush1.bf16.xpose.msra.mxu0 0
      %694 = vmatprep.subr.bf16.mxu0 0
      %695 = vmatpush1.bf16.xpose.msra.mxu0 %v678
      %696 = vmatprep.subr.bf16.mxu0 0
      %697 = vmatpush2.bf16.xpose.msra.mxu0 0
      %698 = vmatprep.subr.bf16.mxu0 0
      %699 = vmatpush2.bf16.xpose.msra.mxu0 0
      %700 = vmatprep.subr.bf16.mxu0 0
      %701 = vmatpush2.bf16.xpose.msra.mxu0 0
      %702 = vmatprep.subr.bf16.mxu0 0
      %703 = vmatpush2.bf16.xpose.msra.mxu0 0
      %704 = vmatprep.subr.bf16.mxu0 0
      %705 = vmatpush2.bf16.xpose.msra.mxu0 0
      %706 = vmatprep.subr.bf16.mxu0 0
      %707 = vmatpush2.bf16.xpose.msra.mxu0 0
      %708 = vmatprep.subr.bf16.mxu0 0
      %709 = vmatpush2.bf16.xpose.msra.mxu0 0
      %710 = vmatprep.subr.bf16.mxu0 0
      %711 = vmatpush2.bf16.xpose.msra.mxu0 0
      %712 = vmatprep.mubr.bf16.mxu0 0
      %713 = vmatmul.mubr.bf16.gmra.mxu0 %v675
      %v714 = vpop.f32.mrf.mxu0
      %v715 = vadd.f32 0.0, %v714
      %v716 = vpop.f32.mrf.mxu0
      %v717 = vpop.f32.mrf.mxu0
      %v718 = vpop.f32.mrf.mxu0
      %719 = vdwg.mxu0
      %720 = vrot.lane.b32.xlu0 %v126, 112
      %v721 = vpop.permute.xlu0 %720
      %722 = vrot.lane.b32.xlu0 %v126, 80
      %v723 = vpop.permute.xlu0 %722
      %v725 = vsel %vm130, %v721, 0
      %v728 = vsel %vm130, %v723, 0
      %730 = vmatprep.subr.bf16.mxu0 0
      %731 = vmatpush1.bf16.xpose.msra.mxu0 0
      %732 = vmatprep.subr.bf16.mxu0 0
      %733 = vmatpush1.bf16.xpose.msra.mxu0 0
      %734 = vmatprep.subr.bf16.mxu0 0
      %735 = vmatpush1.bf16.xpose.msra.mxu0 0
      %736 = vmatprep.subr.bf16.mxu0 0
      %737 = vmatpush1.bf16.xpose.msra.mxu0 0
      %738 = vmatprep.subr.bf16.mxu0 0
      %739 = vmatpush1.bf16.xpose.msra.mxu0 0
      %740 = vmatprep.subr.bf16.mxu0 0
      %741 = vmatpush1.bf16.xpose.msra.mxu0 0
      %742 = vmatprep.subr.bf16.mxu0 0
      %743 = vmatpush1.bf16.xpose.msra.mxu0 0
      %744 = vmatprep.subr.bf16.mxu0 0
      %745 = vmatpush1.bf16.xpose.msra.mxu0 %v728
      %746 = vmatprep.subr.bf16.mxu0 0
      %747 = vmatpush2.bf16.xpose.msra.mxu0 0
      %748 = vmatprep.subr.bf16.mxu0 0
      %749 = vmatpush2.bf16.xpose.msra.mxu0 0
      %750 = vmatprep.subr.bf16.mxu0 0
      %751 = vmatpush2.bf16.xpose.msra.mxu0 0
      %752 = vmatprep.subr.bf16.mxu0 0
      %753 = vmatpush2.bf16.xpose.msra.mxu0 0
      %754 = vmatprep.subr.bf16.mxu0 0
      %755 = vmatpush2.bf16.xpose.msra.mxu0 0
      %756 = vmatprep.subr.bf16.mxu0 0
      %757 = vmatpush2.bf16.xpose.msra.mxu0 0
      %758 = vmatprep.subr.bf16.mxu0 0
      %759 = vmatpush2.bf16.xpose.msra.mxu0 0
      %760 = vmatprep.subr.bf16.mxu0 0
      %761 = vmatpush2.bf16.xpose.msra.mxu0 0
      %762 = vmatprep.mubr.bf16.mxu0 0
      %763 = vmatmul.mubr.bf16.gmra.mxu0 %v725
      %v764 = vpop.f32.mrf.mxu0
      %v765 = vadd.f32 0.0, %v764
      %v766 = vpop.f32.mrf.mxu0
      %v767 = vpop.f32.mrf.mxu0
      %v768 = vpop.f32.mrf.mxu0
      %769 = vdwg.mxu0
      %v770 = vsel %vm130, %v715, -inf
      %771 = vmax.xlane.f32.xlu0 %v770
      %v772 = vpop.xlane.xlu0 %771
      %v773 = vsel %vm130, %v765, -inf
      %774 = vmax.xlane.f32.xlu0 %v773
      %v775 = vpop.xlane.xlu0 %774
      %v776 = vsub.f32 %v715, %v772
      %v777 = vsub.f32 %v765, %v775
      %v778 = vmul.f32 %v776, 1.442695
      %v779 = vpow.pop %v778
      %v780 = vmul.f32 %v777, 1.442695
      %v781 = vpow.pop %v780
      %v782 = vsel %vm130, %v779, 0.0
      %783 = vadd.xlane.f32.xlu0 %v782
      %v784 = vpop.xlane.xlu0 %783
      %v785 = vsel %vm130, %v781, 0.0
      %786 = vadd.xlane.f32.xlu0 %v785
      %v787 = vpop.xlane.xlu0 %786
      %v788 = vrcp.pop %v784
      %v789 = vrcp.pop %v787
      %v790 = vmul.f32 %v779, %v788
      %v791 = vmul.f32 %v781, %v789
      %s792 = scalar_lea.vmem [#allocation8], 16
      %793 = vst.msk [vmem:[%s792] sm:$0xff] %vm130, %v790
      %794 = vst.msk [vmem:[%s792 + $0x20] sm:$0xff] %vm130, %v791
      %v795 = vpack.c.bf16 %v790, %v790
      %v796 = vpack.c.bf16 %v791, %v791
      %797 = vrot.lane.b32.xlu0 %v125, 48
      %v798 = vpop.permute.xlu0 %797
      %v800 = vsel %vm130, %v795, 0
      %v803 = vsel %vm257, %v798, 0
      %805 = vmatprep.subr.bf16.mxu0 0
      %806 = vmatpush1.bf16.msra.mxu0 0
      %807 = vmatprep.subr.bf16.mxu0 0
      %808 = vmatpush1.bf16.msra.mxu0 0
      %809 = vmatprep.subr.bf16.mxu0 0
      %810 = vmatpush1.bf16.msra.mxu0 0
      %811 = vmatprep.subr.bf16.mxu0 0
      %812 = vmatpush1.bf16.msra.mxu0 0
      %813 = vmatprep.subr.bf16.mxu0 0
      %814 = vmatpush1.bf16.msra.mxu0 0
      %815 = vmatprep.subr.bf16.mxu0 0
      %816 = vmatpush1.bf16.msra.mxu0 0
      %817 = vmatprep.subr.bf16.mxu0 0
      %818 = vmatpush1.bf16.msra.mxu0 0
      %819 = vmatprep.subr.bf16.mxu0 0
      %820 = vmatpush1.bf16.msra.mxu0 %v803
      %821 = vmatprep.subr.bf16.mxu0 0
      %822 = vmatpush2.bf16.msra.mxu0 0
      %823 = vmatprep.subr.bf16.mxu0 0
      %824 = vmatpush2.bf16.msra.mxu0 0
      %825 = vmatprep.subr.bf16.mxu0 0
      %826 = vmatpush2.bf16.msra.mxu0 0
      %827 = vmatprep.subr.bf16.mxu0 0
      %828 = vmatpush2.bf16.msra.mxu0 0
      %829 = vmatprep.subr.bf16.mxu0 0
      %830 = vmatpush2.bf16.msra.mxu0 0
      %831 = vmatprep.subr.bf16.mxu0 0
      %832 = vmatpush2.bf16.msra.mxu0 0
      %833 = vmatprep.subr.bf16.mxu0 0
      %834 = vmatpush2.bf16.msra.mxu0 0
      %835 = vmatprep.subr.bf16.mxu0 0
      %836 = vmatpush2.bf16.msra.mxu0 0
      %837 = vmatprep.mubr.bf16.mxu0 0
      %838 = vmatmul.mubr.bf16.gmra.mxu0 %v800
      %v839 = vpop.f32.mrf.mxu0
      %v840 = vadd.f32 0.0, %v839
      %v841 = vpop.f32.mrf.mxu0
      %v842 = vpop.f32.mrf.mxu0
      %v843 = vpop.f32.mrf.mxu0
      %844 = vdwg.mxu0
      %845 = vrot.lane.b32.xlu0 %v126, 48
      %v846 = vpop.permute.xlu0 %845
      %v848 = vsel %vm130, %v796, 0
      %v851 = vsel %vm257, %v846, 0
      %853 = vmatprep.subr.bf16.mxu0 0
      %854 = vmatpush1.bf16.msra.mxu0 0
      %855 = vmatprep.subr.bf16.mxu0 0
      %856 = vmatpush1.bf16.msra.mxu0 0
      %857 = vmatprep.subr.bf16.mxu0 0
      %858 = vmatpush1.bf16.msra.mxu0 0
      %859 = vmatprep.subr.bf16.mxu0 0
      %860 = vmatpush1.bf16.msra.mxu0 0
      %861 = vmatprep.subr.bf16.mxu0 0
      %862 = vmatpush1.bf16.msra.mxu0 0
      %863 = vmatprep.subr.bf16.mxu0 0
      %864 = vmatpush1.bf16.msra.mxu0 0
      %865 = vmatprep.subr.bf16.mxu0 0
      %866 = vmatpush1.bf16.msra.mxu0 0
      %867 = vmatprep.subr.bf16.mxu0 0
      %868 = vmatpush1.bf16.msra.mxu0 %v851
      %869 = vmatprep.subr.bf16.mxu0 0
      %870 = vmatpush2.bf16.msra.mxu0 0
      %871 = vmatprep.subr.bf16.mxu0 0
      %872 = vmatpush2.bf16.msra.mxu0 0
      %873 = vmatprep.subr.bf16.mxu0 0
      %874 = vmatpush2.bf16.msra.mxu0 0
      %875 = vmatprep.subr.bf16.mxu0 0
      %876 = vmatpush2.bf16.msra.mxu0 0
      %877 = vmatprep.subr.bf16.mxu0 0
      %878 = vmatpush2.bf16.msra.mxu0 0
      %879 = vmatprep.subr.bf16.mxu0 0
      %880 = vmatpush2.bf16.msra.mxu0 0
      %881 = vmatprep.subr.bf16.mxu0 0
      %882 = vmatpush2.bf16.msra.mxu0 0
      %883 = vmatprep.subr.bf16.mxu0 0
      %884 = vmatpush2.bf16.msra.mxu0 0
      %885 = vmatprep.mubr.bf16.mxu0 0
      %886 = vmatmul.mubr.bf16.gmra.mxu0 %v848
      %v887 = vpop.f32.mrf.mxu0
      %v888 = vadd.f32 0.0, %v887
      %v889 = vpop.f32.mrf.mxu0
      %v890 = vpop.f32.mrf.mxu0
      %v891 = vpop.f32.mrf.mxu0
      %892 = vdwg.mxu0
      %v893 = vpack.c.bf16 %v888, %v840
      %v894 = vld [vmem:[%s2 + $0x8] sm:$0xf]
      %v896 = vsel %vm130, %v893, 0
      %v899 = vsel %vm257, %v894, 0
      %901 = vmatprep.subr.bf16.mxu0 0
      %902 = vmatpush1.bf16.msra.mxu0 0
      %903 = vmatprep.subr.bf16.mxu0 0
      %904 = vmatpush1.bf16.msra.mxu0 0
      %905 = vmatprep.subr.bf16.mxu0 0
      %906 = vmatpush1.bf16.msra.mxu0 0
      %907 = vmatprep.subr.bf16.mxu0 0
      %908 = vmatpush1.bf16.msra.mxu0 0
      %909 = vmatprep.subr.bf16.mxu0 0
      %910 = vmatpush1.bf16.msra.mxu0 0
      %911 = vmatprep.subr.bf16.mxu0 0
      %912 = vmatpush1.bf16.msra.mxu0 0
      %913 = vmatprep.subr.bf16.mxu0 0
      %914 = vmatpush1.bf16.msra.mxu0 0
      %915 = vmatprep.subr.bf16.mxu0 0
      %916 = vmatpush1.bf16.msra.mxu0 %v899
      %917 = vmatprep.subr.bf16.mxu0 0
      %918 = vmatpush2.bf16.msra.mxu0 0
      %919 = vmatprep.subr.bf16.mxu0 0
      %920 = vmatpush2.bf16.msra.mxu0 0
      %921 = vmatprep.subr.bf16.mxu0 0
      %922 = vmatpush2.bf16.msra.mxu0 0
      %923 = vmatprep.subr.bf16.mxu0 0
      %924 = vmatpush2.bf16.msra.mxu0 0
      %925 = vmatprep.subr.bf16.mxu0 0
      %926 = vmatpush2.bf16.msra.mxu0 0
      %927 = vmatprep.subr.bf16.mxu0 0
      %928 = vmatpush2.bf16.msra.mxu0 0
      %929 = vmatprep.subr.bf16.mxu0 0
      %930 = vmatpush2.bf16.msra.mxu0 0
      %931 = vmatprep.subr.bf16.mxu0 0
      %932 = vmatpush2.bf16.msra.mxu0 0
      %933 = vmatprep.mubr.bf16.mxu0 0
      %934 = vmatmul.mubr.bf16.gmra.mxu0 %v896
      %v935 = vpop.f32.mrf.mxu0
      %v936 = vadd.f32 0.0, %v935
      %v937 = vpop.f32.mrf.mxu0
      %v938 = vpop.f32.mrf.mxu0
      %v939 = vadd.f32 0.0, %v938
      %v940 = vpop.f32.mrf.mxu0
      %941 = vdwg.mxu0
      %v942 = vadd.f32 %v664, %v936
      %v943 = vadd.f32 %v667, %v939
      %944 = vrot.lane.b32.xlu0 %v125, 104
      %v945 = vpop.permute.xlu0 %944
      %946 = vrot.lane.b32.xlu0 %v125, 72
      %v947 = vpop.permute.xlu0 %946
      %v949 = vsel %vm130, %v945, 0
      %v952 = vsel %vm130, %v947, 0
      %954 = vmatprep.subr.bf16.mxu0 0
      %955 = vmatpush1.bf16.xpose.msra.mxu0 0
      %956 = vmatprep.subr.bf16.mxu0 0
      %957 = vmatpush1.bf16.xpose.msra.mxu0 0
      %958 = vmatprep.subr.bf16.mxu0 0
      %959 = vmatpush1.bf16.xpose.msra.mxu0 0
      %960 = vmatprep.subr.bf16.mxu0 0
      %961 = vmatpush1.bf16.xpose.msra.mxu0 0
      %962 = vmatprep.subr.bf16.mxu0 0
      %963 = vmatpush1.bf16.xpose.msra.mxu0 0
      %964 = vmatprep.subr.bf16.mxu0 0
      %965 = vmatpush1.bf16.xpose.msra.mxu0 0
      %966 = vmatprep.subr.bf16.mxu0 0
      %967 = vmatpush1.bf16.xpose.msra.mxu0 0
      %968 = vmatprep.subr.bf16.mxu0 0
      %969 = vmatpush1.bf16.xpose.msra.mxu0 %v952
      %970 = vmatprep.subr.bf16.mxu0 0
      %971 = vmatpush2.bf16.xpose.msra.mxu0 0
      %972 = vmatprep.subr.bf16.mxu0 0
      %973 = vmatpush2.bf16.xpose.msra.mxu0 0
      %974 = vmatprep.subr.bf16.mxu0 0
      %975 = vmatpush2.bf16.xpose.msra.mxu0 0
      %976 = vmatprep.subr.bf16.mxu0 0
      %977 = vmatpush2.bf16.xpose.msra.mxu0 0
      %978 = vmatprep.subr.bf16.mxu0 0
      %979 = vmatpush2.bf16.xpose.msra.mxu0 0
      %980 = vmatprep.subr.bf16.mxu0 0
      %981 = vmatpush2.bf16.xpose.msra.mxu0 0
      %982 = vmatprep.subr.bf16.mxu0 0
      %983 = vmatpush2.bf16.xpose.msra.mxu0 0
      %984 = vmatprep.subr.bf16.mxu0 0
      %985 = vmatpush2.bf16.xpose.msra.mxu0 0
      %986 = vmatprep.mubr.bf16.mxu0 0
      %987 = vmatmul.mubr.bf16.gmra.mxu0 %v949
      %v988 = vpop.f32.mrf.mxu0
      %v989 = vadd.f32 0.0, %v988
      %v990 = vpop.f32.mrf.mxu0
      %v991 = vpop.f32.mrf.mxu0
      %v992 = vpop.f32.mrf.mxu0
      %993 = vdwg.mxu0
      %994 = vrot.lane.b32.xlu0 %v126, 104
      %v995 = vpop.permute.xlu0 %994
      %996 = vrot.lane.b32.xlu0 %v126, 72
      %v997 = vpop.permute.xlu0 %996
      %v999 = vsel %vm130, %v995, 0
      %v1002 = vsel %vm130, %v997, 0
      %1004 = vmatprep.subr.bf16.mxu0 0
      %1005 = vmatpush1.bf16.xpose.msra.mxu0 0
      %1006 = vmatprep.subr.bf16.mxu0 0
      %1007 = vmatpush1.bf16.xpose.msra.mxu0 0
      %1008 = vmatprep.subr.bf16.mxu0 0
      %1009 = vmatpush1.bf16.xpose.msra.mxu0 0
      %1010 = vmatprep.subr.bf16.mxu0 0
      %1011 = vmatpush1.bf16.xpose.msra.mxu0 0
      %1012 = vmatprep.subr.bf16.mxu0 0
      %1013 = vmatpush1.bf16.xpose.msra.mxu0 0
      %1014 = vmatprep.subr.bf16.mxu0 0
      %1015 = vmatpush1.bf16.xpose.msra.mxu0 0
      %1016 = vmatprep.subr.bf16.mxu0 0
      %1017 = vmatpush1.bf16.xpose.msra.mxu0 0
      %1018 = vmatprep.subr.bf16.mxu0 0
      %1019 = vmatpush1.bf16.xpose.msra.mxu0 %v1002
      %1020 = vmatprep.subr.bf16.mxu0 0
      %1021 = vmatpush2.bf16.xpose.msra.mxu0 0
      %1022 = vmatprep.subr.bf16.mxu0 0
      %1023 = vmatpush2.bf16.xpose.msra.mxu0 0
      %1024 = vmatprep.subr.bf16.mxu0 0
      %1025 = vmatpush2.bf16.xpose.msra.mxu0 0
      %1026 = vmatprep.subr.bf16.mxu0 0
      %1027 = vmatpush2.bf16.xpose.msra.mxu0 0
      %1028 = vmatprep.subr.bf16.mxu0 0
      %1029 = vmatpush2.bf16.xpose.msra.mxu0 0
      %1030 = vmatprep.subr.bf16.mxu0 0
      %1031 = vmatpush2.bf16.xpose.msra.mxu0 0
      %1032 = vmatprep.subr.bf16.mxu0 0
      %1033 = vmatpush2.bf16.xpose.msra.mxu0 0
      %1034 = vmatprep.subr.bf16.mxu0 0
      %1035 = vmatpush2.bf16.xpose.msra.mxu0 0
      %1036 = vmatprep.mubr.bf16.mxu0 0
      %1037 = vmatmul.mubr.bf16.gmra.mxu0 %v999
      %v1038 = vpop.f32.mrf.mxu0
      %v1039 = vadd.f32 0.0, %v1038
      %v1040 = vpop.f32.mrf.mxu0
      %v1041 = vpop.f32.mrf.mxu0
      %v1042 = vpop.f32.mrf.mxu0
      %1043 = vdwg.mxu0
      %v1044 = vsel %vm130, %v989, -inf
      %1045 = vmax.xlane.f32.xlu0 %v1044
      %v1046 = vpop.xlane.xlu0 %1045
      %v1047 = vsel %vm130, %v1039, -inf
      %1048 = vmax.xlane.f32.xlu0 %v1047
      %v1049 = vpop.xlane.xlu0 %1048
      %v1050 = vsub.f32 %v989, %v1046
      %v1051 = vsub.f32 %v1039, %v1049
      %v1052 = vmul.f32 %v1050, 1.442695
      %v1053 = vpow.pop %v1052
      %v1054 = vmul.f32 %v1051, 1.442695
      %v1055 = vpow.pop %v1054
      %v1056 = vsel %vm130, %v1053, 0.0
      %1057 = vadd.xlane.f32.xlu0 %v1056
      %v1058 = vpop.xlane.xlu0 %1057
      %v1059 = vsel %vm130, %v1055, 0.0
      %1060 = vadd.xlane.f32.xlu0 %v1059
      %v1061 = vpop.xlane.xlu0 %1060
      %v1062 = vrcp.pop %v1058
      %v1063 = vrcp.pop %v1061
      %v1064 = vmul.f32 %v1053, %v1062
      %v1065 = vmul.f32 %v1055, %v1063
      %s1066 = scalar_lea.vmem [#allocation8], 24
      %1067 = vst.msk [vmem:[%s1066] sm:$0xff] %vm130, %v1064
      %1068 = vst.msk [vmem:[%s1066 + $0x20] sm:$0xff] %vm130, %v1065
      %v1069 = vpack.c.bf16 %v1064, %v1064
      %v1070 = vpack.c.bf16 %v1065, %v1065
      %1071 = vrot.lane.b32.xlu0 %v125, 40
      %v1072 = vpop.permute.xlu0 %1071
      %v1074 = vsel %vm130, %v1069, 0
      %v1077 = vsel %vm257, %v1072, 0
      %1079 = vmatprep.subr.bf16.mxu0 0
      %1080 = vmatpush1.bf16.msra.mxu0 0
      %1081 = vmatprep.subr.bf16.mxu0 0
      %1082 = vmatpush1.bf16.msra.mxu0 0
      %1083 = vmatprep.subr.bf16.mxu0 0
      %1084 = vmatpush1.bf16.msra.mxu0 0
      %1085 = vmatprep.subr.bf16.mxu0 0
      %1086 = vmatpush1.bf16.msra.mxu0 0
      %1087 = vmatprep.subr.bf16.mxu0 0
      %1088 = vmatpush1.bf16.msra.mxu0 0
      %1089 = vmatprep.subr.bf16.mxu0 0
      %1090 = vmatpush1.bf16.msra.mxu0 0
      %1091 = vmatprep.subr.bf16.mxu0 0
      %1092 = vmatpush1.bf16.msra.mxu0 0
      %1093 = vmatprep.subr.bf16.mxu0 0
      %1094 = vmatpush1.bf16.msra.mxu0 %v1077
      %1095 = vmatprep.subr.bf16.mxu0 0
      %1096 = vmatpush2.bf16.msra.mxu0 0
      %1097 = vmatprep.subr.bf16.mxu0 0
      %1098 = vmatpush2.bf16.msra.mxu0 0
      %1099 = vmatprep.subr.bf16.mxu0 0
      %1100 = vmatpush2.bf16.msra.mxu0 0
      %1101 = vmatprep.subr.bf16.mxu0 0
      %1102 = vmatpush2.bf16.msra.mxu0 0
      %1103 = vmatprep.subr.bf16.mxu0 0
      %1104 = vmatpush2.bf16.msra.mxu0 0
      %1105 = vmatprep.subr.bf16.mxu0 0
      %1106 = vmatpush2.bf16.msra.mxu0 0
      %1107 = vmatprep.subr.bf16.mxu0 0
      %1108 = vmatpush2.bf16.msra.mxu0 0
      %1109 = vmatprep.subr.bf16.mxu0 0
      %1110 = vmatpush2.bf16.msra.mxu0 0
      %1111 = vmatprep.mubr.bf16.mxu0 0
      %1112 = vmatmul.mubr.bf16.gmra.mxu0 %v1074
      %v1113 = vpop.f32.mrf.mxu0
      %v1114 = vadd.f32 0.0, %v1113
      %v1115 = vpop.f32.mrf.mxu0
      %v1116 = vpop.f32.mrf.mxu0
      %v1117 = vpop.f32.mrf.mxu0
      %1118 = vdwg.mxu0
      %1119 = vrot.lane.b32.xlu0 %v126, 40
      %v1120 = vpop.permute.xlu0 %1119
      %v1122 = vsel %vm130, %v1070, 0
      %v1125 = vsel %vm257, %v1120, 0
      %1127 = vmatprep.subr.bf16.mxu0 0
      %1128 = vmatpush1.bf16.msra.mxu0 0
      %1129 = vmatprep.subr.bf16.mxu0 0
      %1130 = vmatpush1.bf16.msra.mxu0 0
      %1131 = vmatprep.subr.bf16.mxu0 0
      %1132 = vmatpush1.bf16.msra.mxu0 0
      %1133 = vmatprep.subr.bf16.mxu0 0
      %1134 = vmatpush1.bf16.msra.mxu0 0
      %1135 = vmatprep.subr.bf16.mxu0 0
      %1136 = vmatpush1.bf16.msra.mxu0 0
      %1137 = vmatprep.subr.bf16.mxu0 0
      %1138 = vmatpush1.bf16.msra.mxu0 0
      %1139 = vmatprep.subr.bf16.mxu0 0
      %1140 = vmatpush1.bf16.msra.mxu0 0
      %1141 = vmatprep.subr.bf16.mxu0 0
      %1142 = vmatpush1.bf16.msra.mxu0 %v1125
      %1143 = vmatprep.subr.bf16.mxu0 0
      %1144 = vmatpush2.bf16.msra.mxu0 0
      %1145 = vmatprep.subr.bf16.mxu0 0
      %1146 = vmatpush2.bf16.msra.mxu0 0
      %1147 = vmatprep.subr.bf16.mxu0 0
      %1148 = vmatpush2.bf16.msra.mxu0 0
      %1149 = vmatprep.subr.bf16.mxu0 0
      %1150 = vmatpush2.bf16.msra.mxu0 0
      %1151 = vmatprep.subr.bf16.mxu0 0
      %1152 = vmatpush2.bf16.msra.mxu0 0
      %1153 = vmatprep.subr.bf16.mxu0 0
      %1154 = vmatpush2.bf16.msra.mxu0 0
      %1155 = vmatprep.subr.bf16.mxu0 0
      %1156 = vmatpush2.bf16.msra.mxu0 0
      %1157 = vmatprep.subr.bf16.mxu0 0
      %1158 = vmatpush2.bf16.msra.mxu0 0
      %1159 = vmatprep.mubr.bf16.mxu0 0
      %1160 = vmatmul.mubr.bf16.gmra.mxu0 %v1122
      %v1161 = vpop.f32.mrf.mxu0
      %v1162 = vadd.f32 0.0, %v1161
      %v1163 = vpop.f32.mrf.mxu0
      %v1164 = vpop.f32.mrf.mxu0
      %v1165 = vpop.f32.mrf.mxu0
      %1166 = vdwg.mxu0
      %v1167 = vpack.c.bf16 %v1162, %v1114
      %v1168 = vld [vmem:[%s2 + $0xc] sm:$0xf]
      %v1170 = vsel %vm130, %v1167, 0
      %v1173 = vsel %vm257, %v1168, 0
      %1175 = vmatprep.subr.bf16.mxu0 0
      %1176 = vmatpush1.bf16.msra.mxu0 0
      %1177 = vmatprep.subr.bf16.mxu0 0
      %1178 = vmatpush1.bf16.msra.mxu0 0
      %1179 = vmatprep.subr.bf16.mxu0 0
      %1180 = vmatpush1.bf16.msra.mxu0 0
      %1181 = vmatprep.subr.bf16.mxu0 0
      %1182 = vmatpush1.bf16.msra.mxu0 0
      %1183 = vmatprep.subr.bf16.mxu0 0
      %1184 = vmatpush1.bf16.msra.mxu0 0
      %1185 = vmatprep.subr.bf16.mxu0 0
      %1186 = vmatpush1.bf16.msra.mxu0 0
      %1187 = vmatprep.subr.bf16.mxu0 0
      %1188 = vmatpush1.bf16.msra.mxu0 0
      %1189 = vmatprep.subr.bf16.mxu0 0
      %1190 = vmatpush1.bf16.msra.mxu0 %v1173
      %1191 = vmatprep.subr.bf16.mxu0 0
      %1192 = vmatpush2.bf16.msra.mxu0 0
      %1193 = vmatprep.subr.bf16.mxu0 0
      %1194 = vmatpush2.bf16.msra.mxu0 0
      %1195 = vmatprep.subr.bf16.mxu0 0
      %1196 = vmatpush2.bf16.msra.mxu0 0
      %1197 = vmatprep.subr.bf16.mxu0 0
      %1198 = vmatpush2.bf16.msra.mxu0 0
      %1199 = vmatprep.subr.bf16.mxu0 0
      %1200 = vmatpush2.bf16.msra.mxu0 0
      %1201 = vmatprep.subr.bf16.mxu0 0
      %1202 = vmatpush2.bf16.msra.mxu0 0
      %1203 = vmatprep.subr.bf16.mxu0 0
      %1204 = vmatpush2.bf16.msra.mxu0 0
      %1205 = vmatprep.subr.bf16.mxu0 0
      %1206 = vmatpush2.bf16.msra.mxu0 0
      %1207 = vmatprep.mubr.bf16.mxu0 0
      %1208 = vmatmul.mubr.bf16.gmra.mxu0 %v1170
      %v1209 = vpop.f32.mrf.mxu0
      %v1210 = vadd.f32 0.0, %v1209
      %v1211 = vpop.f32.mrf.mxu0
      %v1212 = vpop.f32.mrf.mxu0
      %v1213 = vadd.f32 0.0, %v1212
      %v1214 = vpop.f32.mrf.mxu0
      %1215 = vdwg.mxu0
      %v1216 = vadd.f32 %v942, %v1210
      %v1217 = vadd.f32 %v943, %v1213
      %v1218 = vadd.f32 %v61, %v1216
      %v1219 = vadd.f32 %v62, %v1217
      %v1220 = vsel %vm80, %v1218, 0.0
      %1221 = vadd.xlane.f32.xlu0 %v1220
      %v1222 = vpop.xlane.xlu0 %1221
      %v1223 = vsel %vm80, %v1219, 0.0
      %1224 = vadd.xlane.f32.xlu0 %v1223
      %v1225 = vpop.xlane.xlu0 %1224
      %v1226 = vrcp.pop 32.0
      %v1227 = vmul.f32 %v1222, %v1226
      %v1228 = vmul.f32 %v1225, %v1226
      %v1229 = vsub.f32 %v1218, %v1227
      %v1230 = vsub.f32 %v1219, %v1228
      %v1231 = vmul.f32 %v1229, %v1229
      %v1232 = vmul.f32 %v1230, %v1230
      %v1233 = vsel %vm80, %v1231, 0.0
      %1234 = vadd.xlane.f32.xlu0 %v1233
      %v1235 = vpop.xlane.xlu0 %1234
      %v1236 = vsel %vm80, %v1232, 0.0
      %1237 = vadd.xlane.f32.xlu0 %v1236
      %v1238 = vpop.xlane.xlu0 %1237
      %v1239 = vmul.f32 %v1235, %v1226
      %v1240 = vmul.f32 %v1238, %v1226
      %v1241 = vadd.f32 %v1239, 1e-05
      %v1242 = vadd.f32 %v1240, 1e-05
      %v1243 = vrsqrt.pop %v1241
      %v1244 = vrsqrt.pop %v1242
      %v1245 = vmul.f32 %v1229, %v1243
      %v1246 = vmul.f32 %v1230, %v1244
      %v1247 = vld [vmem:[%s7] sm:$0x1]
      %v1249 = vlaneseq
      %v1250 = vshrl.u32 %v1249, 7
      %v1251 = vsub.s32 0, %v1250
      %v1252 = vrot.slane %v1247, %v1251
      %v1254 = vmul.f32 %v1245, %v1252
      %v1255 = vmul.f32 %v1246, %v1252
      %v1256 = vld [vmem:[%s8] sm:$0x1]
      %v1258 = vlaneseq
      %v1259 = vshrl.u32 %v1258, 7
      %v1260 = vsub.s32 0, %v1259
      %v1261 = vrot.slane %v1256, %v1260
      %v1263 = vadd.f32 %v1254, %v1261
      %v1264 = vadd.f32 %v1255, %v1261
      %1265 = vst.msk [vmem:[#allocation2] sm:$0xff] %vm80, %v1263
      %1266 = vst.msk [vmem:[#allocation2 + $0x8] sm:$0xff] %vm80, %v1264
      %1267 = vst.msk [vmem:[#allocation3] sm:$0xff] %vm80, 0.0
      %1268 = vst.msk [vmem:[#allocation3 + $0x8] sm:$0xff] %vm80, 0.0
    $region53: #{tpu_custom_call.1} parent=1 // pred_fallthru
      _
    %v1269 = vld [vmem:[#allocation2] sm:$0xff]
    %v1270 = vld [vmem:[#allocation2 + $0x8] sm:$0xff]
    %v1271 = vpack.c.bf16 %v1270, %v1269
    %v1272 = vld [vmem:[#allocation4] sm:$0xf]
    %v1273 = vld [vmem:[#allocation4 + $0x4] sm:$0xf]
    %v1274 = vld [vmem:[#allocation4 + $0x8] sm:$0xf]
    %v1275 = vld [vmem:[#allocation4 + $0xc] sm:$0xf]
    %v1276 = vld [vmem:[%s4] sm:$0x1]
    %v1278 = vlaneseq
    %v1279 = vshrl.u32 %v1278, 7
    %v1280 = vsub.s32 0, %v1279
    %v1281 = vrot.slane %v1276, %v1280
    %v1287 = vunpack.c.l.b16 %v1272
    %v1288 = vunpack.c.l.b16 %v1273
    %v1289 = vunpack.c.l.b16 %v1274
    %v1290 = vunpack.c.l.b16 %v1275
    %v1291 = vpack.c.b16 %v1288, %v1287
    %v1292 = vpack.c.b16 %v1290, %v1289
    %vm1295 = vcmask 261120
    %v1297 = vsel %vm1295, %v1271, 0
    %1299 = vmatprep.subr.bf16.mxu0 0
    %1300 = vmatpush1.bf16.msra.mxu0 0
    %1301 = vmatprep.subr.bf16.mxu0 0
    %1302 = vmatpush1.bf16.msra.mxu0 0
    %1303 = vmatprep.subr.bf16.mxu0 0
    %1304 = vmatpush1.bf16.msra.mxu0 0
    %1305 = vmatprep.subr.bf16.mxu0 0
    %1306 = vmatpush1.bf16.msra.mxu0 0
    %1307 = vmatprep.subr.bf16.mxu0 0
    %1308 = vmatpush1.bf16.msra.mxu0 0
    %1309 = vmatprep.subr.bf16.mxu0 0
    %1310 = vmatpush1.bf16.msra.mxu0 0
    %1311 = vmatprep.subr.bf16.mxu0 0
    %1312 = vmatpush1.bf16.msra.mxu0 %v1292
    %1313 = vmatprep.subr.bf16.mxu0 0
    %1314 = vmatpush1.bf16.msra.mxu0 %v1291
    %1315 = vmatprep.subr.bf16.mxu0 0
    %1316 = vmatpush2.bf16.msra.mxu0 0
    %1317 = vmatprep.subr.bf16.mxu0 0
    %1318 = vmatpush2.bf16.msra.mxu0 0
    %1319 = vmatprep.subr.bf16.mxu0 0
    %1320 = vmatpush2.bf16.msra.mxu0 0
    %1321 = vmatprep.subr.bf16.mxu0 0
    %1322 = vmatpush2.bf16.msra.mxu0 0
    %1323 = vmatprep.subr.bf16.mxu0 0
    %1324 = vmatpush2.bf16.msra.mxu0 0
    %1325 = vmatprep.subr.bf16.mxu0 0
    %1326 = vmatpush2.bf16.msra.mxu0 0
    %1327 = vmatprep.subr.bf16.mxu0 0
    %1328 = vmatpush2.bf16.msra.mxu0 0
    %1329 = vmatprep.subr.bf16.mxu0 0
    %1330 = vmatpush2.bf16.msra.mxu0 0
    %1331 = vmatprep.mubr.bf16.mxu0 0
    %1332 = vmatmul.mubr.bf16.gmra.mxu0 %v1297
    %v1333 = vpop.f32.mrf.mxu0
    %v1334 = vadd.f32 %v1281, %v1333
    %v1335 = vpop.f32.mrf.mxu0
    %v1336 = vpop.f32.mrf.mxu0
    %v1337 = vadd.f32 %v1281, %v1336
    %v1338 = vpop.f32.mrf.mxu0
    %1339 = vdwg.mxu0
    %v1340 = vmax.f32 %v1334, 0.0
    %v1341 = vmax.f32 %v1337, 0.0
    %v1342 = vld [vmem:[#allocation3] sm:$0xff]
    %v1343 = vld [vmem:[#allocation3 + $0x8] sm:$0xff]
    %v1344 = vpack.c.bf16 %v1341, %v1340
    %v1345 = vld [vmem:[%s5] sm:$0xf]
    %v1346 = vld [vmem:[%s5 + $0x4] sm:$0xf]
    %v1347 = vld [vmem:[%s5 + $0x8] sm:$0xf]
    %v1348 = vld [vmem:[%s5 + $0xc] sm:$0xf]
    %v1349 = vld [vmem:[%s5 + $0x10] sm:$0xf]
    %v1350 = vld [vmem:[%s5 + $0x14] sm:$0xf]
    %v1351 = vld [vmem:[%s5 + $0x18] sm:$0xf]
    %v1352 = vld [vmem:[%s5 + $0x1c] sm:$0xf]
    %v1361 = vunpack.c.l.b16 %v1345
    %v1362 = vunpack.c.l.b16 %v1346
    %v1363 = vunpack.c.l.b16 %v1347
    %v1364 = vunpack.c.l.b16 %v1348
    %v1365 = vunpack.c.l.b16 %v1349
    %v1366 = vunpack.c.l.b16 %v1350
    %v1367 = vunpack.c.l.b16 %v1351
    %v1368 = vunpack.c.l.b16 %v1352
    %v1369 = vpack.c.b16 %v1362, %v1361
    %v1370 = vpack.c.b16 %v1364, %v1363
    %v1371 = vpack.c.b16 %v1366, %v1365
    %v1372 = vpack.c.b16 %v1368, %v1367
    %vm1377 = vcmask 523264
    %v1379 = vsel %vm1377, %v1344, 0
    %1381 = vmatprep.subr.bf16.mxu0 0
    %1382 = vmatpush1.bf16.msra.mxu0 0
    %1383 = vmatprep.subr.bf16.mxu0 0
    %1384 = vmatpush1.bf16.msra.mxu0 0
    %1385 = vmatprep.subr.bf16.mxu0 0
    %1386 = vmatpush1.bf16.msra.mxu0 0
    %1387 = vmatprep.subr.bf16.mxu0 0
    %1388 = vmatpush1.bf16.msra.mxu0 0
    %1389 = vmatprep.subr.bf16.mxu0 0
    %1390 = vmatpush1.bf16.msra.mxu0 %v1372
    %1391 = vmatprep.subr.bf16.mxu0 0
    %1392 = vmatpush1.bf16.msra.mxu0 %v1371
    %1393 = vmatprep.subr.bf16.mxu0 0
    %1394 = vmatpush1.bf16.msra.mxu0 %v1370
    %1395 = vmatprep.subr.bf16.mxu0 0
    %1396 = vmatpush1.bf16.msra.mxu0 %v1369
    %1397 = vmatprep.subr.bf16.mxu0 0
    %1398 = vmatpush2.bf16.msra.mxu0 0
    %1399 = vmatprep.subr.bf16.mxu0 0
    %1400 = vmatpush2.bf16.msra.mxu0 0
    %1401 = vmatprep.subr.bf16.mxu0 0
    %1402 = vmatpush2.bf16.msra.mxu0 0
    %1403 = vmatprep.subr.bf16.mxu0 0
    %1404 = vmatpush2.bf16.msra.mxu0 0
    %1405 = vmatprep.subr.bf16.mxu0 0
    %1406 = vmatpush2.bf16.msra.mxu0 0
    %1407 = vmatprep.subr.bf16.mxu0 0
    %1408 = vmatpush2.bf16.msra.mxu0 0
    %1409 = vmatprep.subr.bf16.mxu0 0
    %1410 = vmatpush2.bf16.msra.mxu0 0
    %1411 = vmatprep.subr.bf16.mxu0 0
    %1412 = vmatpush2.bf16.msra.mxu0 0
    %1413 = vmatprep.mubr.bf16.mxu0 0
    %1414 = vmatmul.mubr.bf16.gmra.mxu0 %v1379
    %v1415 = vpop.f32.mrf.mxu0
    %v1416 = vadd.f32 0.0, %v1415
    %v1417 = vpop.f32.mrf.mxu0
    %v1418 = vpop.f32.mrf.mxu0
    %v1419 = vadd.f32 0.0, %v1418
    %v1420 = vpop.f32.mrf.mxu0
    %1421 = vdwg.mxu0
    %v1422 = vadd.f32 %v1342, %v1416
    %v1423 = vadd.f32 %v1343, %v1419
    %1424 = vst.msk [vmem:[#allocation3] sm:$0xff] %vm1295, %v1422
    %1425 = vst.msk [vmem:[#allocation3 + $0x8] sm:$0xff] %vm1295, %v1423
    // Predicated region
    $region54: #{tpu_custom_call.1} parent=1 // pred_check
      %p1426 = pneg %p57
    $region55: #{tpu_custom_call.1} parent=1 // pred_check_branch
      %1428 = sbr.rel (%p1426) target = $region57
    $region56: #{tpu_custom_call.1} parent=1 // pred_region
      %v1429 = vld [vmem:[%s0] sm:$0xff]
      %v1430 = vld [vmem:[%s0 + $0x8] sm:$0xff]
      %v1431 = vld [vmem:[#allocation2] sm:$0xff]
      %v1432 = vld [vmem:[#allocation2 + $0x8] sm:$0xff]
      %v1433 = vld [vmem:[#allocation3] sm:$0xff]
      %v1434 = vld [vmem:[#allocation3 + $0x8] sm:$0xff]
      %v1435 = vadd.f32 %v1431, %v1433
      %v1436 = vadd.f32 %v1432, %v1434
      %v1437 = vld [vmem:[%s6] sm:$0x1]
      %v1439 = vlaneseq
      %v1440 = vshrl.u32 %v1439, 7
      %v1441 = vsub.s32 0, %v1440
      %v1442 = vrot.slane %v1437, %v1441
      %v1444 = vadd.f32 %v1435, %v1442
      %v1445 = vadd.f32 %v1436, %v1442
      %v1446 = vsel %vm1295, %v1444, 0.0
      %1447 = vadd.xlane.f32.xlu0 %v1446
      %v1448 = vpop.xlane.xlu0 %1447
      %v1449 = vsel %vm1295, %v1445, 0.0
      %1450 = vadd.xlane.f32.xlu0 %v1449
      %v1451 = vpop.xlane.xlu0 %1450
      %v1452 = vrcp.pop 32.0
      %v1453 = vmul.f32 %v1448, %v1452
      %v1454 = vmul.f32 %v1451, %v1452
      %v1455 = vsub.f32 %v1444, %v1453
      %v1456 = vsub.f32 %v1445, %v1454
      %v1457 = vmul.f32 %v1455, %v1455
      %v1458 = vmul.f32 %v1456, %v1456
      %v1459 = vsel %vm1295, %v1457, 0.0
      %1460 = vadd.xlane.f32.xlu0 %v1459
      %v1461 = vpop.xlane.xlu0 %1460
      %v1462 = vsel %vm1295, %v1458, 0.0
      %1463 = vadd.xlane.f32.xlu0 %v1462
      %v1464 = vpop.xlane.xlu0 %1463
      %v1465 = vmul.f32 %v1461, %v1452
      %v1466 = vmul.f32 %v1464, %v1452
      %v1467 = vadd.f32 %v1465, 1e-05
      %v1468 = vadd.f32 %v1466, 1e-05
      %v1469 = vrsqrt.pop %v1467
      %v1470 = vrsqrt.pop %v1468
      %v1471 = vmul.f32 %v1455, %v1469
      %v1472 = vmul.f32 %v1456, %v1470
      %v1473 = vld [vmem:[%s9] sm:$0x1]
      %v1475 = vlaneseq
      %v1476 = vshrl.u32 %v1475, 7
      %v1477 = vsub.s32 0, %v1476
      %v1478 = vrot.slane %v1473, %v1477
      %v1480 = vmul.f32 %v1471, %v1478
      %v1481 = vmul.f32 %v1472, %v1478
      %v1482 = vld [vmem:[%s10] sm:$0x1]
      %v1484 = vlaneseq
      %v1485 = vshrl.u32 %v1484, 7
      %v1486 = vsub.s32 0, %v1485
      %v1487 = vrot.slane %v1482, %v1486
      %v1489 = vadd.f32 %v1480, %v1487
      %v1490 = vadd.f32 %v1481, %v1487
      %v1491 = vadd.f32 %v1489, %v1429
      %v1492 = vadd.f32 %v1490, %v1430
      %1493 = vst.msk [vmem:[#allocation7] sm:$0xff] %vm1295, %v1491
      %1494 = vst.msk [vmem:[#allocation7 + $0x8] sm:$0xff] %vm1295, %v1492
    $region57: #{tpu_custom_call.1} parent=1 // pred_fallthru
      _
    // Predicated region
    $region58: #{tpu_custom_call.1} parent=1 // pred_check
      _
    $region59: #{tpu_custom_call.1} parent=1 // pred_check_branch
      %1496 = sbr.rel (0) target = $region61
    $region60: #{tpu_custom_call.1} parent=1 // pred_region
      %s1498 = ssub.s32 256, 256
      %1499 = vsyncadd [#allocation6], %s1498
      %s1500 = sshll.u32 [#allocation7], 4
      %s1501 = int_to_ptr.vmem [resolvable:$true] %s1500
      %1506 = dma.vmem_to_hbm [thread:$0]  %s1501, 256, %s11, [#allocation6], 128, 128, 8
    $region61: #{tpu_custom_call.1} parent=1 // pred_fallthru
      _
    // Predicated region
    $region62: #{tpu_custom_call.1} parent=1 // pred_check
      _
    $region63: #{tpu_custom_call.1} parent=1 // pred_check_branch
      %1508 = sbr.rel (0) target = $region65
    $region64: #{tpu_custom_call.1} parent=1 // pred_region
      %s1510 = ssub.s32 1024, 1024
      %1511 = vsyncadd [#allocation9], %s1510
      %s1512 = sshll.u32 [#allocation8], 4
      %s1513 = int_to_ptr.vmem [resolvable:$true] %s1512
      %1518 = dma.vmem_to_hbm [thread:$0]  %s1513, 1024, %s12, [#allocation9], 128, 128, 8
    $region65: #{tpu_custom_call.1} parent=1 // pred_fallthru
      _
    // Predicated region
    $region66: #{tpu_custom_call.1} parent=1 // pred_check
      _
    $region67: #{tpu_custom_call.1} parent=1 // pred_check_branch
      %1520 = sbr.rel (0) target = $region69
    $region68: #{tpu_custom_call.1} parent=1 // pred_region
      %1521 = dma.done [#allocation6], 256
    $region69: #{tpu_custom_call.1} parent=1 // pred_fallthru
      _
    // Predicated region
    $region70: #{tpu_custom_call.1} parent=1 // pred_check
      _
    $region71: #{tpu_custom_call.1} parent=1 // pred_check_branch
      %1523 = sbr.rel (0) target = $region73
    $region72: #{tpu_custom_call.1} parent=1 // pred_region
      %1524 = dma.done [#allocation9], 1024
    $region73: #{tpu_custom_call.1} parent=1 // pred_fallthru
      _
    %1525 = vsyncpa [#allocation5], 1
    %1526 = vsyncpa [#allocation6], 1
    %1527 = vsyncpa [#allocation9], 1

// kernel: tpu_custom_call.1
$region0: #{tpu_custom_call.1}
  #allocation0 [shape = 'u32[]', space=smem, size = 0x4, offset = 0x4, fixed_abs, tag = 'smem constant byte address 0x4 - core index']
  #allocation1 [shape = 'u32[144,128]{1,0:T(1,128)}', space=vmem, size = 0x12000, scoped, tag = 'internal scratch']
  #allocation2 [shape = 'f32[16,32]{1,0:T(8,128)}', space=vmem, size = 0x2000, scoped, tag = 'scratch operand']
  #allocation3 [shape = 'f32[16,32]{1,0:T(8,128)}', space=vmem, size = 0x2000, scoped, tag = 'scratch operand']
  %s0 = inlined_call_operand.vmem [shape: f32[2,8,32], index: 0, kind: input, shape index: {}]
  %s1 = inlined_call_operand.vmem [shape: bf16[32,96], index: 1, kind: input, shape index: {}]
  %s2 = inlined_call_operand.vmem [shape: bf16[32,32], index: 2, kind: input, shape index: {}]
  %s3 = inlined_call_operand.hbm [shape: bf16[32,64], index: 3, kind: input, shape index: {}]
  %s4 = inlined_call_operand.vmem [shape: f32[1,64], index: 4, kind: input, shape index: {}]
  %s5 = inlined_call_operand.vmem [shape: bf16[64,32], index: 5, kind: input, shape index: {}]
  %s6 = inlined_call_operand.vmem [shape: f32[1,32], index: 6, kind: input, shape index: {}]
  %s7 = inlined_call_operand.vmem [shape: f32[1,32], index: 7, kind: input, shape index: {}]
  %s8 = inlined_call_operand.vmem [shape: f32[1,32], index: 8, kind: input, shape index: {}]
  %s9 = inlined_call_operand.vmem [shape: f32[1,32], index: 9, kind: input, shape index: {}]
  %s10 = inlined_call_operand.vmem [shape: f32[1,32], index: 10, kind: input, shape index: {}]
  %s11 = inlined_call_operand.hbm [shape: f32[2,8,32], index: 11, kind: output, shape index: {0}]
  %s12 = inlined_call_operand.hbm [shape: f32[2,4,8,8], index: 12, kind: output, shape index: {1}]
  %13 = xla_tuple %s11, %s12
  %s14 = sld [smem:[#allocation0]]
  $region74: #{tpu_custom_call.1} parent=0
    _
  %s16 = ssub.s32 1, %s14
  %s17 = scalar_select 0, %s16, %s14
  $region1: #{tpu_custom_call.1} parent=0
    #allocation4 [shape = 'u8[8192]{0}', space=vmem, size = 0x2000, scoped, tag = 'input window, operand 3, single buffered']
    #allocation5 [shape = 's32[1]{0}', space=sflag, size = 0x4, scoped, tag = 'scoped memory for tpu_custom_call.1']
    #allocation6 [shape = 's32[1]{0}', space=sflag, size = 0x4, scoped, tag = 'scoped memory for tpu_custom_call.1']
    #allocation7 [shape = 'u8[8192]{0}', space=vmem, size = 0x2000, scoped, tag = 'output window, operand 0, single buffered']
    #allocation8 [shape = 'u8[32768]{0}', space=vmem, size = 0x8000, scoped, tag = 'output window, operand 1, single buffered']
    #allocation9 [shape = 's32[1]{0}', space=sflag, size = 0x4, scoped, tag = 'scoped memory for tpu_custom_call.1']
    %18 = vsyncpa [#allocation5], 0
    %19 = vsyncpa [#allocation6], 0
    %20 = vsyncpa [#allocation9], 0
    // Predicated region
    $region2: #{tpu_custom_call.1} parent=1 // pred_check
      _
    $region3: #{tpu_custom_call.1} parent=1 // pred_check_branch
      %22 = sbr.rel (0) target = $region5
    $region4: #{tpu_custom_call.1} parent=1 // pred_region
      _
    $region5: #{tpu_custom_call.1} parent=1 // pred_fallthru
      _
    // Predicated region
    $region6: #{tpu_custom_call.1} parent=1 // pred_check
      _
    $region7: #{tpu_custom_call.1} parent=1 // pred_check_branch
      %24 = sbr.rel (0) target = $region9
    $region8: #{tpu_custom_call.1} parent=1 // pred_region
      _
    $region9: #{tpu_custom_call.1} parent=1 // pred_fallthru
      _
    // Predicated region
    $region10: #{tpu_custom_call.1} parent=1 // pred_check
      _
    $region11: #{tpu_custom_call.1} parent=1 // pred_check_branch
      %26 = sbr.rel (0) target = $region13
    $region12: #{tpu_custom_call.1} parent=1 // pred_region
      _
    $region13: #{tpu_custom_call.1} parent=1 // pred_fallthru
      _
    // Predicated region
    $region14: #{tpu_custom_call.1} parent=1 // pred_check
      _
    $region15: #{tpu_custom_call.1} parent=1 // pred_check_branch
      %28 = sbr.rel (0) target = $region17
    $region16: #{tpu_custom_call.1} parent=1 // pred_region
      %s30 = ssub.s32 256, 256
      %31 = vsyncadd [#allocation5], %s30
      %s32 = sshll.u32 [#allocation4], 4
      %s33 = int_to_ptr.vmem [resolvable:$true] %s32
      %38 = dma.hbm_to_vmem [thread:$0]  %s3, 256, %s33, [#allocation5], 64, 64, 4
    $region17: #{tpu_custom_call.1} parent=1 // pred_fallthru
      _
    // Predicated region
    $region18: #{tpu_custom_call.1} parent=1 // pred_check
      _
    $region19: #{tpu_custom_call.1} parent=1 // pred_check_branch
      %40 = sbr.rel (0) target = $region21
    $region20: #{tpu_custom_call.1} parent=1 // pred_region
      _
    $region21: #{tpu_custom_call.1} parent=1 // pred_fallthru
      _
    // Predicated region
    $region22: #{tpu_custom_call.1} parent=1 // pred_check
      _
    $region23: #{tpu_custom_call.1} parent=1 // pred_check_branch
      %42 = sbr.rel (0) target = $region25
    $region24: #{tpu_custom_call.1} parent=1 // pred_region
      _
    $region25: #{tpu_custom_call.1} parent=1 // pred_fallthru
      _
    // Predicated region
    $region26: #{tpu_custom_call.1} parent=1 // pred_check
      _
    $region27: #{tpu_custom_call.1} parent=1 // pred_check_branch
      %44 = sbr.rel (0) target = $region29
    $region28: #{tpu_custom_call.1} parent=1 // pred_region
      _
    $region29: #{tpu_custom_call.1} parent=1 // pred_fallthru
      _
    // Predicated region
    $region30: #{tpu_custom_call.1} parent=1 // pred_check
      _
    $region31: #{tpu_custom_call.1} parent=1 // pred_check_branch
      %46 = sbr.rel (0) target = $region33
    $region32: #{tpu_custom_call.1} parent=1 // pred_region
      _
    $region33: #{tpu_custom_call.1} parent=1 // pred_fallthru
      _
    // Predicated region
    $region34: #{tpu_custom_call.1} parent=1 // pred_check
      _
    $region35: #{tpu_custom_call.1} parent=1 // pred_check_branch
      %48 = sbr.rel (0) target = $region37
    $region36: #{tpu_custom_call.1} parent=1 // pred_region
      _
    $region37: #{tpu_custom_call.1} parent=1 // pred_fallthru
      _
    // Predicated region
    $region38: #{tpu_custom_call.1} parent=1 // pred_check
      _
    $region39: #{tpu_custom_call.1} parent=1 // pred_check_branch
      %50 = sbr.rel (0) target = $region41
    $region40: #{tpu_custom_call.1} parent=1 // pred_region
      _
    $region41: #{tpu_custom_call.1} parent=1 // pred_fallthru
      _
    // Predicated region
    $region42: #{tpu_custom_call.1} parent=1 // pred_check
      _
    $region43: #{tpu_custom_call.1} parent=1 // pred_check_branch
      %52 = sbr.rel (0) target = $region45
    $region44: #{tpu_custom_call.1} parent=1 // pred_region
      _
    $region45: #{tpu_custom_call.1} parent=1 // pred_fallthru
      _
    // Predicated region
    $region46: #{tpu_custom_call.1} parent=1 // pred_check
      _
    $region47: #{tpu_custom_call.1} parent=1 // pred_check_branch
      %54 = sbr.rel (0) target = $region49
    $region48: #{tpu_custom_call.1} parent=1 // pred_region
      %55 = dma.done [#allocation5], 256
    $region49: #{tpu_custom_call.1} parent=1 // pred_fallthru
      _
    %p57 = scmp.eq.s32.totalorder 0, 0
    // Predicated region
    $region50: #{tpu_custom_call.1} parent=1 // pred_check
      %p58 = pneg %p57
    $region51: #{tpu_custom_call.1} parent=1 // pred_check_branch
      %60 = sbr.rel (%p58) target = $region53
    $region52: #{tpu_custom_call.1} parent=1 // pred_region
      %v61 = vld [vmem:[%s0] sm:$0xff]
      %v62 = vld [vmem:[%s0 + $0x8] sm:$0xff]
      %v63 = vpack.c.bf16 %v62, %v61
      %v64 = vld [vmem:[%s1] sm:$0xf]
      %v65 = vld [vmem:[%s1 + $0x4] sm:$0xf]
      %v66 = vld [vmem:[%s1 + $0x8] sm:$0xf]
      %v67 = vld [vmem:[%s1 + $0xc] sm:$0xf]
      %v72 = vunpack.c.l.b16 %v64
      %v73 = vunpack.c.l.b16 %v65
      %v74 = vunpack.c.l.b16 %v66
      %v75 = vunpack.c.l.b16 %v67
      %v76 = vpack.c.b16 %v73, %v72
      %v77 = vpack.c.b16 %v75, %v74
      %vm80 = vcmask 261120
      %v82 = vsel %vm80, %v63, 0
      %84 = vmatprep.subr.bf16.mxu0 0
      %85 = vmatpush1.bf16.msra.mxu0 0
      %86 = vmatprep.subr.bf16.mxu0 0
      %87 = vmatpush1.bf16.msra.mxu0 0
      %88 = vmatprep.subr.bf16.mxu0 0
      %89 = vmatpush1.bf16.msra.mxu0 0
      %90 = vmatprep.subr.bf16.mxu0 0
      %91 = vmatpush1.bf16.msra.mxu0 0
      %92 = vmatprep.subr.bf16.mxu0 0
      %93 = vmatpush1.bf16.msra.mxu0 0
      %94 = vmatprep.subr.bf16.mxu0 0
      %95 = vmatpush1.bf16.msra.mxu0 0
      %96 = vmatprep.subr.bf16.mxu0 0
      %97 = vmatpush1.bf16.msra.mxu0 %v77
      %98 = vmatprep.subr.bf16.mxu0 0
      %99 = vmatpush1.bf16.msra.mxu0 %v76
      %100 = vmatprep.subr.bf16.mxu0 0
      %101 = vmatpush2.bf16.msra.mxu0 0
      %102 = vmatprep.subr.bf16.mxu0 0
      %103 = vmatpush2.bf16.msra.mxu0 0
      %104 = vmatprep.subr.bf16.mxu0 0
      %105 = vmatpush2.bf16.msra.mxu0 0
      %106 = vmatprep.subr.bf16.mxu0 0
      %107 = vmatpush2.bf16.msra.mxu0 0
      %108 = vmatprep.subr.bf16.mxu0 0
      %109 = vmatpush2.bf16.msra.mxu0 0
      %110 = vmatprep.subr.bf16.mxu0 0
      %111 = vmatpush2.bf16.msra.mxu0 0
      %112 = vmatprep.subr.bf16.mxu0 0
      %113 = vmatpush2.bf16.msra.mxu0 0
      %114 = vmatprep.subr.bf16.mxu0 0
      %115 = vmatpush2.bf16.msra.mxu0 0
      %116 = vmatprep.mubr.bf16.mxu0 0
      %117 = vmatmul.mubr.bf16.gmra.mxu0 %v82
      %v118 = vpop.f32.mrf.mxu0
      %v119 = vadd.f32 0.0, %v118
      %v120 = vpop.f32.mrf.mxu0
      %v121 = vpop.f32.mrf.mxu0
      %v122 = vadd.f32 0.0, %v121
      %v123 = vpop.f32.mrf.mxu0
      %124 = vdwg.mxu0
      %v125 = vpack.c.bf16 %v119, %v119
      %v126 = vpack.c.bf16 %v122, %v122
      %128 = vrot.lane.b32.xlu0 %v125, 96
      %v129 = vpop.permute.xlu0 %128
      %vm130 = vcmask 64512
      %v132 = vsel %vm130, %v125, 0
      %v135 = vsel %vm130, %v129, 0
      %137 = vmatprep.subr.bf16.mxu0 0
      %138 = vmatpush1.bf16.xpose.msra.mxu0 0
      %139 = vmatprep.subr.bf16.mxu0 0
      %140 = vmatpush1.bf16.xpose.msra.mxu0 0
      %141 = vmatprep.subr.bf16.mxu0 0
      %142 = vmatpush1.bf16.xpose.msra.mxu0 0
      %143 = vmatprep.subr.bf16.mxu0 0
      %144 = vmatpush1.bf16.xpose.msra.mxu0 0
      %145 = vmatprep.subr.bf16.mxu0 0
      %146 = vmatpush1.bf16.xpose.msra.mxu0 0
      %147 = vmatprep.subr.bf16.mxu0 0
      %148 = vmatpush1.bf16.xpose.msra.mxu0 0
      %149 = vmatprep.subr.bf16.mxu0 0
      %150 = vmatpush1.bf16.xpose.msra.mxu0 0
      %151 = vmatprep.subr.bf16.mxu0 0
      %152 = vmatpush1.bf16.xpose.msra.mxu0 %v135
      %153 = vmatprep.subr.bf16.mxu0 0
      %154 = vmatpush2.bf16.xpose.msra.mxu0 0
      %155 = vmatprep.subr.bf16.mxu0 0
      %156 = vmatpush2.bf16.xpose.msra.mxu0 0
      %157 = vmatprep.subr.bf16.mxu0 0
      %158 = vmatpush2.bf16.xpose.msra.mxu0 0
      %159 = vmatprep.subr.bf16.mxu0 0
      %160 = vmatpush2.bf16.xpose.msra.mxu0 0
      %161 = vmatprep.subr.bf16.mxu0 0
      %162 = vmatpush2.bf16.xpose.msra.mxu0 0
      %163 = vmatprep.subr.bf16.mxu0 0
      %164 = vmatpush2.bf16.xpose.msra.mxu0 0
      %165 = vmatprep.subr.bf16.mxu0 0
      %166 = vmatpush2.bf16.xpose.msra.mxu0 0
      %167 = vmatprep.subr.bf16.mxu0 0
      %168 = vmatpush2.bf16.xpose.msra.mxu0 0
      %169 = vmatprep.mubr.bf16.mxu0 0
      %170 = vmatmul.mubr.bf16.gmra.mxu0 %v132
      %v171 = vpop.f32.mrf.mxu0
      %v172 = vadd.f32 0.0, %v171
      %v173 = vpop.f32.mrf.mxu0
      %v174 = vpop.f32.mrf.mxu0
      %v175 = vpop.f32.mrf.mxu0
      %176 = vdwg.mxu0
      %178 = vrot.lane.b32.xlu0 %v126, 96
      %v179 = vpop.permute.xlu0 %178
      %v181 = vsel %vm130, %v126, 0
      %v184 = vsel %vm130, %v179, 0
      %186 = vmatprep.subr.bf16.mxu0 0
      %187 = vmatpush1.bf16.xpose.msra.mxu0 0
      %188 = vmatprep.subr.bf16.mxu0 0
      %189 = vmatpush1.bf16.xpose.msra.mxu0 0
      %190 = vmatprep.subr.bf16.mxu0 0
      %191 = vmatpush1.bf16.xpose.msra.mxu0 0
      %192 = vmatprep.subr.bf16.mxu0 0
      %193 = vmatpush1.bf16.xpose.msra.mxu0 0
      %194 = vmatprep.subr.bf16.mxu0 0
      %195 = vmatpush1.bf16.xpose.msra.mxu0 0
      %196 = vmatprep.subr.bf16.mxu0 0
      %197 = vmatpush1.bf16.xpose.msra.mxu0 0
      %198 = vmatprep.subr.bf16.mxu0 0
      %199 = vmatpush1.bf16.xpose.msra.mxu0 0
      %200 = vmatprep.subr.bf16.mxu0 0
      %201 = vmatpush1.bf16.xpose.msra.mxu0 %v184
      %202 = vmatprep.subr.bf16.mxu0 0
      %203 = vmatpush2.bf16.xpose.msra.mxu0 0
      %204 = vmatprep.subr.bf16.mxu0 0
      %205 = vmatpush2.bf16.xpose.msra.mxu0 0
      %206 = vmatprep.subr.bf16.mxu0 0
      %207 = vmatpush2.bf16.xpose.msra.mxu0 0
      %208 = vmatprep.subr.bf16.mxu0 0
      %209 = vmatpush2.bf16.xpose.msra.mxu0 0
      %210 = vmatprep.subr.bf16.mxu0 0
      %211 = vmatpush2.bf16.xpose.msra.mxu0 0
      %212 = vmatprep.subr.bf16.mxu0 0
      %213 = vmatpush2.bf16.xpose.msra.mxu0 0
      %214 = vmatprep.subr.bf16.mxu0 0
      %215 = vmatpush2.bf16.xpose.msra.mxu0 0
      %216 = vmatprep.subr.bf16.mxu0 0
      %217 = vmatpush2.bf16.xpose.msra.mxu0 0
      %218 = vmatprep.mubr.bf16.mxu0 0
      %219 = vmatmul.mubr.bf16.gmra.mxu0 %v181
      %v220 = vpop.f32.mrf.mxu0
      %v221 = vadd.f32 0.0, %v220
      %v222 = vpop.f32.mrf.mxu0
      %v223 = vpop.f32.mrf.mxu0
      %v224 = vpop.f32.mrf.mxu0
      %225 = vdwg.mxu0
      %v226 = vsel %vm130, %v172, -inf
      %227 = vmax.xlane.f32.xlu0 %v226
      %v228 = vpop.xlane.xlu0 %227
      %v229 = vsel %vm130, %v221, -inf
      %230 = vmax.xlane.f32.xlu0 %v229
      %v231 = vpop.xlane.xlu0 %230
      %v232 = vsub.f32 %v172, %v228
      %v233 = vsub.f32 %v221, %v231
      %v234 = vmul.f32 %v232, 1.442695
      %v235 = vpow.pop %v234
      %v236 = vmul.f32 %v233, 1.442695
      %v237 = vpow.pop %v236
      %v238 = vsel %vm130, %v235, 0.0
      %239 = vadd.xlane.f32.xlu0 %v238
      %v240 = vpop.xlane.xlu0 %239
      %v241 = vsel %vm130, %v237, 0.0
      %242 = vadd.xlane.f32.xlu0 %v241
      %v243 = vpop.xlane.xlu0 %242
      %v244 = vrcp.pop %v240
      %v245 = vrcp.pop %v243
      %v246 = vmul.f32 %v235, %v244
      %v247 = vmul.f32 %v237, %v245
      %248 = vst.msk [vmem:[#allocation8] sm:$0xff] %vm130, %v246
      %249 = vst.msk [vmem:[#allocation8 + $0x20] sm:$0xff] %vm130, %v247
      %v250 = vpack.c.bf16 %v246, %v246
      %v251 = vpack.c.bf16 %v247, %v247
      %252 = vrot.lane.b32.xlu0 %v125, 64
      %v253 = vpop.permute.xlu0 %252
      %v255 = vsel %vm130, %v250, 0
      %vm257 = vcmask 1043456
      %v259 = vsel %vm257, %v253, 0
      %261 = vmatprep.subr.bf16.mxu0 0
      %262 = vmatpush1.bf16.msra.mxu0 0
      %263 = vmatprep.subr.bf16.mxu0 0
      %264 = vmatpush1.bf16.msra.mxu0 0
      %265 = vmatprep.subr.bf16.mxu0 0
      %266 = vmatpush1.bf16.msra.mxu0 0
      %267 = vmatprep.subr.bf16.mxu0 0
      %268 = vmatpush1.bf16.msra.mxu0 0
      %269 = vmatprep.subr.bf16.mxu0 0
      %270 = vmatpush1.bf16.msra.mxu0 0
      %271 = vmatprep.subr.bf16.mxu0 0
      %272 = vmatpush1.bf16.msra.mxu0 0
      %273 = vmatprep.subr.bf16.mxu0 0
      %274 = vmatpush1.bf16.msra.mxu0 0
      %275 = vmatprep.subr.bf16.mxu0 0
      %276 = vmatpush1.bf16.msra.mxu0 %v259
      %277 = vmatprep.subr.bf16.mxu0 0
      %278 = vmatpush2.bf16.msra.mxu0 0
      %279 = vmatprep.subr.bf16.mxu0 0
      %280 = vmatpush2.bf16.msra.mxu0 0
      %281 = vmatprep.subr.bf16.mxu0 0
      %282 = vmatpush2.bf16.msra.mxu0 0
      %283 = vmatprep.subr.bf16.mxu0 0
      %284 = vmatpush2.bf16.msra.mxu0 0
      %285 = vmatprep.subr.bf16.mxu0 0
      %286 = vmatpush2.bf16.msra.mxu0 0
      %287 = vmatprep.subr.bf16.mxu0 0
      %288 = vmatpush2.bf16.msra.mxu0 0
      %289 = vmatprep.subr.bf16.mxu0 0
      %290 = vmatpush2.bf16.msra.mxu0 0
      %291 = vmatprep.subr.bf16.mxu0 0
      %292 = vmatpush2.bf16.msra.mxu0 0
      %293 = vmatprep.mubr.bf16.mxu0 0
      %294 = vmatmul.mubr.bf16.gmra.mxu0 %v255
      %v295 = vpop.f32.mrf.mxu0
      %v296 = vadd.f32 0.0, %v295
      %v297 = vpop.f32.mrf.mxu0
      %v298 = vpop.f32.mrf.mxu0
      %v299 = vpop.f32.mrf.mxu0
      %300 = vdwg.mxu0
      %301 = vrot.lane.b32.xlu0 %v126, 64
      %v302 = vpop.permute.xlu0 %301
      %v304 = vsel %vm130, %v251, 0
      %v307 = vsel %vm257, %v302, 0
      %309 = vmatprep.subr.bf16.mxu0 0
      %310 = vmatpush1.bf16.msra.mxu0 0
      %311 = vmatprep.subr.bf16.mxu0 0
      %312 = vmatpush1.bf16.msra.mxu0 0
      %313 = vmatprep.subr.bf16.mxu0 0
      %314 = vmatpush1.bf16.msra.mxu0 0
      %315 = vmatprep.subr.bf16.mxu0 0
      %316 = vmatpush1.bf16.msra.mxu0 0
      %317 = vmatprep.subr.bf16.mxu0 0
      %318 = vmatpush1.bf16.msra.mxu0 0
      %319 = vmatprep.subr.bf16.mxu0 0
      %320 = vmatpush1.bf16.msra.mxu0 0
      %321 = vmatprep.subr.bf16.mxu0 0
      %322 = vmatpush1.bf16.msra.mxu0 0
      %323 = vmatprep.subr.bf16.mxu0 0
      %324 = vmatpush1.bf16.msra.mxu0 %v307
      %325 = vmatprep.subr.bf16.mxu0 0
      %326 = vmatpush2.bf16.msra.mxu0 0
      %327 = vmatprep.subr.bf16.mxu0 0
      %328 = vmatpush2.bf16.msra.mxu0 0
      %329 = vmatprep.subr.bf16.mxu0 0
      %330 = vmatpush2.bf16.msra.mxu0 0
      %331 = vmatprep.subr.bf16.mxu0 0
      %332 = vmatpush2.bf16.msra.mxu0 0
      %333 = vmatprep.subr.bf16.mxu0 0
      %334 = vmatpush2.bf16.msra.mxu0 0
      %335 = vmatprep.subr.bf16.mxu0 0
      %336 = vmatpush2.bf16.msra.mxu0 0
      %337 = vmatprep.subr.bf16.mxu0 0
      %338 = vmatpush2.bf16.msra.mxu0 0
      %339 = vmatprep.subr.bf16.mxu0 0
      %340 = vmatpush2.bf16.msra.mxu0 0
      %341 = vmatprep.mubr.bf16.mxu0 0
      %342 = vmatmul.mubr.bf16.gmra.mxu0 %v304
      %v343 = vpop.f32.mrf.mxu0
      %v344 = vadd.f32 0.0, %v343
      %v345 = vpop.f32.mrf.mxu0
      %v346 = vpop.f32.mrf.mxu0
      %v347 = vpop.f32.mrf.mxu0
      %348 = vdwg.mxu0
      %v349 = vpack.c.bf16 %v344, %v296
      %v350 = vld [vmem:[%s2] sm:$0xf]
      %351 = vrot.lane.b32.xlu0 %v125, 120
      %v352 = vpop.permute.xlu0 %351
      %353 = vrot.lane.b32.xlu0 %v125, 88
      %v354 = vpop.permute.xlu0 %353
      %v356 = vsel %vm130, %v352, 0
      %v359 = vsel %vm130, %v354, 0
      %361 = vmatprep.subr.bf16.mxu0 0
      %362 = vmatpush1.bf16.xpose.msra.mxu0 0
      %363 = vmatprep.subr.bf16.mxu0 0
      %364 = vmatpush1.bf16.xpose.msra.mxu0 0
      %365 = vmatprep.subr.bf16.mxu0 0
      %366 = vmatpush1.bf16.xpose.msra.mxu0 0
      %367 = vmatprep.subr.bf16.mxu0 0
      %368 = vmatpush1.bf16.xpose.msra.mxu0 0
      %369 = vmatprep.subr.bf16.mxu0 0
      %370 = vmatpush1.bf16.xpose.msra.mxu0 0
      %371 = vmatprep.subr.bf16.mxu0 0
      %372 = vmatpush1.bf16.xpose.msra.mxu0 0
      %373 = vmatprep.subr.bf16.mxu0 0
      %374 = vmatpush1.bf16.xpose.msra.mxu0 0
      %375 = vmatprep.subr.bf16.mxu0 0
      %376 = vmatpush1.bf16.xpose.msra.mxu0 %v359
      %377 = vmatprep.subr.bf16.mxu0 0
      %378 = vmatpush2.bf16.xpose.msra.mxu0 0
      %379 = vmatprep.subr.bf16.mxu0 0
      %380 = vmatpush2.bf16.xpose.msra.mxu0 0
      %381 = vmatprep.subr.bf16.mxu0 0
      %382 = vmatpush2.bf16.xpose.msra.mxu0 0
      %383 = vmatprep.subr.bf16.mxu0 0
      %384 = vmatpush2.bf16.xpose.msra.mxu0 0
      %385 = vmatprep.subr.bf16.mxu0 0
      %386 = vmatpush2.bf16.xpose.msra.mxu0 0
      %387 = vmatprep.subr.bf16.mxu0 0
      %388 = vmatpush2.bf16.xpose.msra.mxu0 0
      %389 = vmatprep.subr.bf16.mxu0 0
      %390 = vmatpush2.bf16.xpose.msra.mxu0 0
      %391 = vmatprep.subr.bf16.mxu0 0
      %392 = vmatpush2.bf16.xpose.msra.mxu0 0
      %393 = vmatprep.mubr.bf16.mxu0 0
      %394 = vmatmul.mubr.bf16.gmra.mxu0 %v356
      %v395 = vpop.f32.mrf.mxu0
      %v396 = vadd.f32 0.0, %v395
      %v397 = vpop.f32.mrf.mxu0
      %v398 = vpop.f32.mrf.mxu0
      %v399 = vpop.f32.mrf.mxu0
      %400 = vdwg.mxu0
      %401 = vrot.lane.b32.xlu0 %v126, 120
      %v402 = vpop.permute.xlu0 %401
      %403 = vrot.lane.b32.xlu0 %v126, 88
      %v404 = vpop.permute.xlu0 %403
      %v406 = vsel %vm130, %v402, 0
      %v409 = vsel %vm130, %v404, 0
      %411 = vmatprep.subr.bf16.mxu0 0
      %412 = vmatpush1.bf16.xpose.msra.mxu0 0
      %413 = vmatprep.subr.bf16.mxu0 0
      %414 = vmatpush1.bf16.xpose.msra.mxu0 0
      %415 = vmatprep.subr.bf16.mxu0 0
      %416 = vmatpush1.bf16.xpose.msra.mxu0 0
      %417 = vmatprep.subr.bf16.mxu0 0
      %418 = vmatpush1.bf16.xpose.msra.mxu0 0
      %419 = vmatprep.subr.bf16.mxu0 0
      %420 = vmatpush1.bf16.xpose.msra.mxu0 0
      %421 = vmatprep.subr.bf16.mxu0 0
      %422 = vmatpush1.bf16.xpose.msra.mxu0 0
      %423 = vmatprep.subr.bf16.mxu0 0
      %424 = vmatpush1.bf16.xpose.msra.mxu0 0
      %425 = vmatprep.subr.bf16.mxu0 0
      %426 = vmatpush1.bf16.xpose.msra.mxu0 %v409
      %427 = vmatprep.subr.bf16.mxu0 0
      %428 = vmatpush2.bf16.xpose.msra.mxu0 0
      %429 = vmatprep.subr.bf16.mxu0 0
      %430 = vmatpush2.bf16.xpose.msra.mxu0 0
      %431 = vmatprep.subr.bf16.mxu0 0
      %432 = vmatpush2.bf16.xpose.msra.mxu0 0
      %433 = vmatprep.subr.bf16.mxu0 0
      %434 = vmatpush2.bf16.xpose.msra.mxu0 0
      %435 = vmatprep.subr.bf16.mxu0 0
      %436 = vmatpush2.bf16.xpose.msra.mxu0 0
      %437 = vmatprep.subr.bf16.mxu0 0
      %438 = vmatpush2.bf16.xpose.msra.mxu0 0
      %439 = vmatprep.subr.bf16.mxu0 0
      %440 = vmatpush2.bf16.xpose.msra.mxu0 0
      %441 = vmatprep.subr.bf16.mxu0 0
      %442 = vmatpush2.bf16.xpose.msra.mxu0 0
      %443 = vmatprep.mubr.bf16.mxu0 0
      %444 = vmatmul.mubr.bf16.gmra.mxu0 %v406
      %v445 = vpop.f32.mrf.mxu0
      %v446 = vadd.f32 0.0, %v445
      %v447 = vpop.f32.mrf.mxu0
      %v448 = vpop.f32.mrf.mxu0
      %v449 = vpop.f32.mrf.mxu0
      %450 = vdwg.mxu0
      %v451 = vsel %vm130, %v396, -inf
      %452 = vmax.xlane.f32.xlu0 %v451
      %v453 = vpop.xlane.xlu0 %452
      %v454 = vsel %vm130, %v446, -inf
      %455 = vmax.xlane.f32.xlu0 %v454
      %v456 = vpop.xlane.xlu0 %455
      %v457 = vsub.f32 %v396, %v453
      %v458 = vsub.f32 %v446, %v456
      %v459 = vmul.f32 %v457, 1.442695
      %v460 = vpow.pop %v459
      %v461 = vmul.f32 %v458, 1.442695
      %v462 = vpow.pop %v461
      %v463 = vsel %vm130, %v460, 0.0
      %464 = vadd.xlane.f32.xlu0 %v463
      %v465 = vpop.xlane.xlu0 %464
      %v466 = vsel %vm130, %v462, 0.0
      %467 = vadd.xlane.f32.xlu0 %v466
      %v468 = vpop.xlane.xlu0 %467
      %v469 = vrcp.pop %v465
      %v470 = vrcp.pop %v468
      %v471 = vmul.f32 %v460, %v469
      %v472 = vmul.f32 %v462, %v470
      %s473 = scalar_lea.vmem [#allocation8], 8
      %474 = vst.msk [vmem:[%s473] sm:$0xff] %vm130, %v471
      %475 = vst.msk [vmem:[%s473 + $0x20] sm:$0xff] %vm130, %v472
      %v476 = vpack.c.bf16 %v471, %v471
      %v477 = vpack.c.bf16 %v472, %v472
      %478 = vrot.lane.b32.xlu0 %v125, 56
      %v479 = vpop.permute.xlu0 %478
      %v481 = vsel %vm130, %v476, 0
      %v484 = vsel %vm257, %v479, 0
      %486 = vmatprep.subr.bf16.mxu0 0
      %487 = vmatpush1.bf16.msra.mxu0 0
      %488 = vmatprep.subr.bf16.mxu0 0
      %489 = vmatpush1.bf16.msra.mxu0 0
      %490 = vmatprep.subr.bf16.mxu0 0
      %491 = vmatpush1.bf16.msra.mxu0 0
      %492 = vmatprep.subr.bf16.mxu0 0
      %493 = vmatpush1.bf16.msra.mxu0 0
      %494 = vmatprep.subr.bf16.mxu0 0
      %495 = vmatpush1.bf16.msra.mxu0 0
      %496 = vmatprep.subr.bf16.mxu0 0
      %497 = vmatpush1.bf16.msra.mxu0 0
      %498 = vmatprep.subr.bf16.mxu0 0
      %499 = vmatpush1.bf16.msra.mxu0 0
      %500 = vmatprep.subr.bf16.mxu0 0
      %501 = vmatpush1.bf16.msra.mxu0 %v484
      %502 = vmatprep.subr.bf16.mxu0 0
      %503 = vmatpush2.bf16.msra.mxu0 0
      %504 = vmatprep.subr.bf16.mxu0 0
      %505 = vmatpush2.bf16.msra.mxu0 0
      %506 = vmatprep.subr.bf16.mxu0 0
      %507 = vmatpush2.bf16.msra.mxu0 0
      %508 = vmatprep.subr.bf16.mxu0 0
      %509 = vmatpush2.bf16.msra.mxu0 0
      %510 = vmatprep.subr.bf16.mxu0 0
      %511 = vmatpush2.bf16.msra.mxu0 0
      %512 = vmatprep.subr.bf16.mxu0 0
      %513 = vmatpush2.bf16.msra.mxu0 0
      %514 = vmatprep.subr.bf16.mxu0 0
      %515 = vmatpush2.bf16.msra.mxu0 0
      %516 = vmatprep.subr.bf16.mxu0 0
      %517 = vmatpush2.bf16.msra.mxu0 0
      %518 = vmatprep.mubr.bf16.mxu0 0
      %519 = vmatmul.mubr.bf16.gmra.mxu0 %v481
      %v520 = vpop.f32.mrf.mxu0
      %v521 = vadd.f32 0.0, %v520
      %v522 = vpop.f32.mrf.mxu0
      %v523 = vpop.f32.mrf.mxu0
      %v524 = vpop.f32.mrf.mxu0
      %525 = vdwg.mxu0
      %526 = vrot.lane.b32.xlu0 %v126, 56
      %v527 = vpop.permute.xlu0 %526
      %v529 = vsel %vm130, %v477, 0
      %v532 = vsel %vm257, %v527, 0
      %534 = vmatprep.subr.bf16.mxu0 0
      %535 = vmatpush1.bf16.msra.mxu0 0
      %536 = vmatprep.subr.bf16.mxu0 0
      %537 = vmatpush1.bf16.msra.mxu0 0
      %538 = vmatprep.subr.bf16.mxu0 0
      %539 = vmatpush1.bf16.msra.mxu0 0
      %540 = vmatprep.subr.bf16.mxu0 0
      %541 = vmatpush1.bf16.msra.mxu0 0
      %542 = vmatprep.subr.bf16.mxu0 0
      %543 = vmatpush1.bf16.msra.mxu0 0
      %544 = vmatprep.subr.bf16.mxu0 0
      %545 = vmatpush1.bf16.msra.mxu0 0
      %546 = vmatprep.subr.bf16.mxu0 0
      %547 = vmatpush1.bf16.msra.mxu0 0
      %548 = vmatprep.subr.bf16.mxu0 0
      %549 = vmatpush1.bf16.msra.mxu0 %v532
      %550 = vmatprep.subr.bf16.mxu0 0
      %551 = vmatpush2.bf16.msra.mxu0 0
      %552 = vmatprep.subr.bf16.mxu0 0
      %553 = vmatpush2.bf16.msra.mxu0 0
      %554 = vmatprep.subr.bf16.mxu0 0
      %555 = vmatpush2.bf16.msra.mxu0 0
      %556 = vmatprep.subr.bf16.mxu0 0
      %557 = vmatpush2.bf16.msra.mxu0 0
      %558 = vmatprep.subr.bf16.mxu0 0
      %559 = vmatpush2.bf16.msra.mxu0 0
      %560 = vmatprep.subr.bf16.mxu0 0
      %561 = vmatpush2.bf16.msra.mxu0 0
      %562 = vmatprep.subr.bf16.mxu0 0
      %563 = vmatpush2.bf16.msra.mxu0 0
      %564 = vmatprep.subr.bf16.mxu0 0
      %565 = vmatpush2.bf16.msra.mxu0 0
      %566 = vmatprep.mubr.bf16.mxu0 0
      %567 = vmatmul.mubr.bf16.gmra.mxu0 %v529
      %v568 = vpop.f32.mrf.mxu0
      %v569 = vadd.f32 0.0, %v568
      %v570 = vpop.f32.mrf.mxu0
      %v571 = vpop.f32.mrf.mxu0
      %v572 = vpop.f32.mrf.mxu0
      %573 = vdwg.mxu0
      %v574 = vpack.c.bf16 %v569, %v521
      %v575 = vld [vmem:[%s2 + $0x4] sm:$0xf]
      %v577 = vsel %vm130, %v574, 0
      %v580 = vsel %vm257, %v575, 0
      %582 = vmatprep.subr.bf16.mxu0 0
      %583 = vmatpush1.bf16.msra.mxu0 0
      %584 = vmatprep.subr.bf16.mxu0 0
      %585 = vmatpush1.bf16.msra.mxu0 0
      %586 = vmatprep.subr.bf16.mxu0 0
      %587 = vmatpush1.bf16.msra.mxu0 0
      %588 = vmatprep.subr.bf16.mxu0 0
      %589 = vmatpush1.bf16.msra.mxu0 0
      %590 = vmatprep.subr.bf16.mxu0 0
      %591 = vmatpush1.bf16.msra.mxu0 0
      %592 = vmatprep.subr.bf16.mxu0 0
      %593 = vmatpush1.bf16.msra.mxu0 0
      %594 = vmatprep.subr.bf16.mxu0 0
      %595 = vmatpush1.bf16.msra.mxu0 0
      %596 = vmatprep.subr.bf16.mxu0 0
      %597 = vmatpush1.bf16.msra.mxu0 %v580
      %598 = vmatprep.subr.bf16.mxu0 0
      %599 = vmatpush2.bf16.msra.mxu0 0
      %600 = vmatprep.subr.bf16.mxu0 0
      %601 = vmatpush2.bf16.msra.mxu0 0
      %602 = vmatprep.subr.bf16.mxu0 0
      %603 = vmatpush2.bf16.msra.mxu0 0
      %604 = vmatprep.subr.bf16.mxu0 0
      %605 = vmatpush2.bf16.msra.mxu0 0
      %606 = vmatprep.subr.bf16.mxu0 0
      %607 = vmatpush2.bf16.msra.mxu0 0
      %608 = vmatprep.subr.bf16.mxu0 0
      %609 = vmatpush2.bf16.msra.mxu0 0
      %610 = vmatprep.subr.bf16.mxu0 0
      %611 = vmatpush2.bf16.msra.mxu0 0
      %612 = vmatprep.subr.bf16.mxu0 0
      %613 = vmatpush2.bf16.msra.mxu0 0
      %614 = vmatprep.mubr.bf16.mxu0 0
      %615 = vmatmul.mubr.bf16.gmra.mxu0 %v577
      %v616 = vpop.f32.mrf.mxu0
      %v617 = vadd.f32 0.0, %v616
      %v618 = vpop.f32.mrf.mxu0
      %v619 = vpop.f32.mrf.mxu0
      %v620 = vadd.f32 0.0, %v619
      %v621 = vpop.f32.mrf.mxu0
      %622 = vdwg.mxu0
      %v624 = vsel %vm130, %v349, 0
      %v627 = vsel %vm257, %v350, 0
      %629 = vmatprep.subr.bf16.mxu0 0
      %630 = vmatpush1.bf16.msra.mxu0 0
      %631 = vmatprep.subr.bf16.mxu0 0
      %632 = vmatpush1.bf16.msra.mxu0 0
      %633 = vmatprep.subr.bf16.mxu0 0
      %634 = vmatpush1.bf16.msra.mxu0 0
      %635 = vmatprep.subr.bf16.mxu0 0
      %636 = vmatpush1.bf16.msra.mxu0 0
      %637 = vmatprep.subr.bf16.mxu0 0
      %638 = vmatpush1.bf16.msra.mxu0 0
      %639 = vmatprep.subr.bf16.mxu0 0
      %640 = vmatpush1.bf16.msra.mxu0 0
      %641 = vmatprep.subr.bf16.mxu0 0
      %642 = vmatpush1.bf16.msra.mxu0 0
      %643 = vmatprep.subr.bf16.mxu0 0
      %644 = vmatpush1.bf16.msra.mxu0 %v627
      %645 = vmatprep.subr.bf16.mxu0 0
      %646 = vmatpush2.bf16.msra.mxu0 0
      %647 = vmatprep.subr.bf16.mxu0 0
      %648 = vmatpush2.bf16.msra.mxu0 0
      %649 = vmatprep.subr.bf16.mxu0 0
      %650 = vmatpush2.bf16.msra.mxu0 0
      %651 = vmatprep.subr.bf16.mxu0 0
      %652 = vmatpush2.bf16.msra.mxu0 0
      %653 = vmatprep.subr.bf16.mxu0 0
      %654 = vmatpush2.bf16.msra.mxu0 0
      %655 = vmatprep.subr.bf16.mxu0 0
      %656 = vmatpush2.bf16.msra.mxu0 0
      %657 = vmatprep.subr.bf16.mxu0 0
      %658 = vmatpush2.bf16.msra.mxu0 0
      %659 = vmatprep.subr.bf16.mxu0 0
      %660 = vmatpush2.bf16.msra.mxu0 0
      %661 = vmatprep.mubr.bf16.mxu0 0
      %662 = vmatmul.mubr.bf16.gmra.mxu0 %v624
      %v663 = vpop.f32.mrf.mxu0
      %v664 = vadd.f32 %v617, %v663
      %v665 = vpop.f32.mrf.mxu0
      %v666 = vpop.f32.mrf.mxu0
      %v667 = vadd.f32 %v620, %v666
      %v668 = vpop.f32.mrf.mxu0
      %669 = vdwg.mxu0
      %670 = vrot.lane.b32.xlu0 %v125, 112
      %v671 = vpop.permute.xlu0 %670
      %672 = vrot.lane.b32.xlu0 %v125, 80
      %v673 = vpop.permute.xlu0 %672
      %v675 = vsel %vm130, %v671, 0
      %v678 = vsel %vm130, %v673, 0
      %680 = vmatprep.subr.bf16.mxu0 0
      %681 = vmatpush1.bf16.xpose.msra.mxu0 0
      %682 = vmatprep.subr.bf16.mxu0 0
      %683 = vmatpush1.bf16.xpose.msra.mxu0 0
      %684 = vmatprep.subr.bf16.mxu0 0
      %685 = vmatpush1.bf16.xpose.msra.mxu0 0
      %686 = vmatprep.subr.bf16.mxu0 0
      %687 = vmatpush1.bf16.xpose.msra.mxu0 0
      %688 = vmatprep.subr.bf16.mxu0 0
      %689 = vmatpush1.bf16.xpose.msra.mxu0 0
      %690 = vmatprep.subr.bf16.mxu0 0
      %691 = vmatpush1.bf16.xpose.msra.mxu0 0
      %692 = vmatprep.subr.bf16.mxu0 0
      %693 = vmatpush1.bf16.xpose.msra.mxu0 0
      %694 = vmatprep.subr.bf16.mxu0 0
      %695 = vmatpush1.bf16.xpose.msra.mxu0 %v678
      %696 = vmatprep.subr.bf16.mxu0 0
      %697 = vmatpush2.bf16.xpose.msra.mxu0 0
      %698 = vmatprep.subr.bf16.mxu0 0
      %699 = vmatpush2.bf16.xpose.msra.mxu0 0
      %700 = vmatprep.subr.bf16.mxu0 0
      %701 = vmatpush2.bf16.xpose.msra.mxu0 0
      %702 = vmatprep.subr.bf16.mxu0 0
      %703 = vmatpush2.bf16.xpose.msra.mxu0 0
      %704 = vmatprep.subr.bf16.mxu0 0
      %705 = vmatpush2.bf16.xpose.msra.mxu0 0
      %706 = vmatprep.subr.bf16.mxu0 0
      %707 = vmatpush2.bf16.xpose.msra.mxu0 0
      %708 = vmatprep.subr.bf16.mxu0 0
      %709 = vmatpush2.bf16.xpose.msra.mxu0 0
      %710 = vmatprep.subr.bf16.mxu0 0
      %711 = vmatpush2.bf16.xpose.msra.mxu0 0
      %712 = vmatprep.mubr.bf16.mxu0 0
      %713 = vmatmul.mubr.bf16.gmra.mxu0 %v675
      %v714 = vpop.f32.mrf.mxu0
      %v715 = vadd.f32 0.0, %v714
      %v716 = vpop.f32.mrf.mxu0
      %v717 = vpop.f32.mrf.mxu0
      %v718 = vpop.f32.mrf.mxu0
      %719 = vdwg.mxu0
      %720 = vrot.lane.b32.xlu0 %v126, 112
      %v721 = vpop.permute.xlu0 %720
      %722 = vrot.lane.b32.xlu0 %v126, 80
      %v723 = vpop.permute.xlu0 %722
      %v725 = vsel %vm130, %v721, 0
      %v728 = vsel %vm130, %v723, 0
      %730 = vmatprep.subr.bf16.mxu0 0
      %731 = vmatpush1.bf16.xpose.msra.mxu0 0
      %732 = vmatprep.subr.bf16.mxu0 0
      %733 = vmatpush1.bf16.xpose.msra.mxu0 0
      %734 = vmatprep.subr.bf16.mxu0 0
      %735 = vmatpush1.bf16.xpose.msra.mxu0 0
      %736 = vmatprep.subr.bf16.mxu0 0
      %737 = vmatpush1.bf16.xpose.msra.mxu0 0
      %738 = vmatprep.subr.bf16.mxu0 0
      %739 = vmatpush1.bf16.xpose.msra.mxu0 0
      %740 = vmatprep.subr.bf16.mxu0 0
      %741 = vmatpush1.bf16.xpose.msra.mxu0 0
      %742 = vmatprep.subr.bf16.mxu0 0
      %743 = vmatpush1.bf16.xpose.msra.mxu0 0
      %744 = vmatprep.subr.bf16.mxu0 0
      %745 = vmatpush1.bf16.xpose.msra.mxu0 %v728
      %746 = vmatprep.subr.bf16.mxu0 0
      %747 = vmatpush2.bf16.xpose.msra.mxu0 0
      %748 = vmatprep.subr.bf16.mxu0 0
      %749 = vmatpush2.bf16.xpose.msra.mxu0 0
      %750 = vmatprep.subr.bf16.mxu0 0
      %751 = vmatpush2.bf16.xpose.msra.mxu0 0
      %752 = vmatprep.subr.bf16.mxu0 0
      %753 = vmatpush2.bf16.xpose.msra.mxu0 0
      %754 = vmatprep.subr.bf16.mxu0 0
      %755 = vmatpush2.bf16.xpose.msra.mxu0 0
      %756 = vmatprep.subr.bf16.mxu0 0
      %757 = vmatpush2.bf16.xpose.msra.mxu0 0
      %758 = vmatprep.subr.bf16.mxu0 0
      %759 = vmatpush2.bf16.xpose.msra.mxu0 0
      %760 = vmatprep.subr.bf16.mxu0 0
      %761 = vmatpush2.bf16.xpose.msra.mxu0 0
      %762 = vmatprep.mubr.bf16.mxu0 0
      %763 = vmatmul.mubr.bf16.gmra.mxu0 %v725
      %v764 = vpop.f32.mrf.mxu0
      %v765 = vadd.f32 0.0, %v764
      %v766 = vpop.f32.mrf.mxu0
      %v767 = vpop.f32.mrf.mxu0
      %v768 = vpop.f32.mrf.mxu0
      %769 = vdwg.mxu0
      %v770 = vsel %vm130, %v715, -inf
      %771 = vmax.xlane.f32.xlu0 %v770
      %v772 = vpop.xlane.xlu0 %771
      %v773 = vsel %vm130, %v765, -inf
      %774 = vmax.xlane.f32.xlu0 %v773
      %v775 = vpop.xlane.xlu0 %774
      %v776 = vsub.f32 %v715, %v772
      %v777 = vsub.f32 %v765, %v775
      %v778 = vmul.f32 %v776, 1.442695
      %v779 = vpow.pop %v778
      %v780 = vmul.f32 %v777, 1.442695
      %v781 = vpow.pop %v780
      %v782 = vsel %vm130, %v779, 0.0
      %783 = vadd.xlane.f32.xlu0 %v782
      %v784 = vpop.xlane.xlu0 %783
      %v785 = vsel %vm130, %v781, 0.0
      %786 = vadd.xlane.f32.xlu0 %v785
      %v787 = vpop.xlane.xlu0 %786
      %v788 = vrcp.pop %v784
      %v789 = vrcp.pop %v787
      %v790 = vmul.f32 %v779, %v788
      %v791 = vmul.f32 %v781, %v789
      %s792 = scalar_lea.vmem [#allocation8], 16
      %793 = vst.msk [vmem:[%s792] sm:$0xff] %vm130, %v790
      %794 = vst.msk [vmem:[%s792 + $0x20] sm:$0xff] %vm130, %v791
      %v795 = vpack.c.bf16 %v790, %v790
      %v796 = vpack.c.bf16 %v791, %v791
      %797 = vrot.lane.b32.xlu0 %v125, 48
      %v798 = vpop.permute.xlu0 %797
      %v800 = vsel %vm130, %v795, 0
      %v803 = vsel %vm257, %v798, 0
      %805 = vmatprep.subr.bf16.mxu0 0
      %806 = vmatpush1.bf16.msra.mxu0 0
      %807 = vmatprep.subr.bf16.mxu0 0
      %808 = vmatpush1.bf16.msra.mxu0 0
      %809 = vmatprep.subr.bf16.mxu0 0
      %810 = vmatpush1.bf16.msra.mxu0 0
      %811 = vmatprep.subr.bf16.mxu0 0
      %812 = vmatpush1.bf16.msra.mxu0 0
      %813 = vmatprep.subr.bf16.mxu0 0
      %814 = vmatpush1.bf16.msra.mxu0 0
      %815 = vmatprep.subr.bf16.mxu0 0
      %816 = vmatpush1.bf16.msra.mxu0 0
      %817 = vmatprep.subr.bf16.mxu0 0
      %818 = vmatpush1.bf16.msra.mxu0 0
      %819 = vmatprep.subr.bf16.mxu0 0
      %820 = vmatpush1.bf16.msra.mxu0 %v803
      %821 = vmatprep.subr.bf16.mxu0 0
      %822 = vmatpush2.bf16.msra.mxu0 0
      %823 = vmatprep.subr.bf16.mxu0 0
      %824 = vmatpush2.bf16.msra.mxu0 0
      %825 = vmatprep.subr.bf16.mxu0 0
      %826 = vmatpush2.bf16.msra.mxu0 0
      %827 = vmatprep.subr.bf16.mxu0 0
      %828 = vmatpush2.bf16.msra.mxu0 0
      %829 = vmatprep.subr.bf16.mxu0 0
      %830 = vmatpush2.bf16.msra.mxu0 0
      %831 = vmatprep.subr.bf16.mxu0 0
      %832 = vmatpush2.bf16.msra.mxu0 0
      %833 = vmatprep.subr.bf16.mxu0 0
      %834 = vmatpush2.bf16.msra.mxu0 0
      %835 = vmatprep.subr.bf16.mxu0 0
      %836 = vmatpush2.bf16.msra.mxu0 0
      %837 = vmatprep.mubr.bf16.mxu0 0
      %838 = vmatmul.mubr.bf16.gmra.mxu0 %v800
      %v839 = vpop.f32.mrf.mxu0
      %v840 = vadd.f32 0.0, %v839
      %v841 = vpop.f32.mrf.mxu0
      %v842 = vpop.f32.mrf.mxu0
      %v843 = vpop.f32.mrf.mxu0
      %844 = vdwg.mxu0
      %845 = vrot.lane.b32.xlu0 %v126, 48
      %v846 = vpop.permute.xlu0 %845
      %v848 = vsel %vm130, %v796, 0
      %v851 = vsel %vm257, %v846, 0
      %853 = vmatprep.subr.bf16.mxu0 0
      %854 = vmatpush1.bf16.msra.mxu0 0
      %855 = vmatprep.subr.bf16.mxu0 0
      %856 = vmatpush1.bf16.msra.mxu0 0
      %857 = vmatprep.subr.bf16.mxu0 0
      %858 = vmatpush1.bf16.msra.mxu0 0
      %859 = vmatprep.subr.bf16.mxu0 0
      %860 = vmatpush1.bf16.msra.mxu0 0
      %861 = vmatprep.subr.bf16.mxu0 0
      %862 = vmatpush1.bf16.msra.mxu0 0
      %863 = vmatprep.subr.bf16.mxu0 0
      %864 = vmatpush1.bf16.msra.mxu0 0
      %865 = vmatprep.subr.bf16.mxu0 0
      %866 = vmatpush1.bf16.msra.mxu0 0
      %867 = vmatprep.subr.bf16.mxu0 0
      %868 = vmatpush1.bf16.msra.mxu0 %v851
      %869 = vmatprep.subr.bf16.mxu0 0
      %870 = vmatpush2.bf16.msra.mxu0 0
      %871 = vmatprep.subr.bf16.mxu0 0
      %872 = vmatpush2.bf16.msra.mxu0 0
      %873 = vmatprep.subr.bf16.mxu0 0
      %874 = vmatpush2.bf16.msra.mxu0 0
      %875 = vmatprep.subr.bf16.mxu0 0
      %876 = vmatpush2.bf16.msra.mxu0 0
      %877 = vmatprep.subr.bf16.mxu0 0
      %878 = vmatpush2.bf16.msra.mxu0 0
      %879 = vmatprep.subr.bf16.mxu0 0
      %880 = vmatpush2.bf16.msra.mxu0 0
      %881 = vmatprep.subr.bf16.mxu0 0
      %882 = vmatpush2.bf16.msra.mxu0 0
      %883 = vmatprep.subr.bf16.mxu0 0
      %884 = vmatpush2.bf16.msra.mxu0 0
      %885 = vmatprep.mubr.bf16.mxu0 0
      %886 = vmatmul.mubr.bf16.gmra.mxu0 %v848
      %v887 = vpop.f32.mrf.mxu0
      %v888 = vadd.f32 0.0, %v887
      %v889 = vpop.f32.mrf.mxu0
      %v890 = vpop.f32.mrf.mxu0
      %v891 = vpop.f32.mrf.mxu0
      %892 = vdwg.mxu0
      %v893 = vpack.c.bf16 %v888, %v840
      %v894 = vld [vmem:[%s2 + $0x8] sm:$0xf]
      %v896 = vsel %vm130, %v893, 0
      %v899 = vsel %vm257, %v894, 0
      %901 = vmatprep.subr.bf16.mxu0 0
      %902 = vmatpush1.bf16.msra.mxu0 0
      %903 = vmatprep.subr.bf16.mxu0 0
      %904 = vmatpush1.bf16.msra.mxu0 0
      %905 = vmatprep.subr.bf16.mxu0 0
      %906 = vmatpush1.bf16.msra.mxu0 0
      %907 = vmatprep.subr.bf16.mxu0 0
      %908 = vmatpush1.bf16.msra.mxu0 0
      %909 = vmatprep.subr.bf16.mxu0 0
      %910 = vmatpush1.bf16.msra.mxu0 0
      %911 = vmatprep.subr.bf16.mxu0 0
      %912 = vmatpush1.bf16.msra.mxu0 0
      %913 = vmatprep.subr.bf16.mxu0 0
      %914 = vmatpush1.bf16.msra.mxu0 0
      %915 = vmatprep.subr.bf16.mxu0 0
      %916 = vmatpush1.bf16.msra.mxu0 %v899
      %917 = vmatprep.subr.bf16.mxu0 0
      %918 = vmatpush2.bf16.msra.mxu0 0
      %919 = vmatprep.subr.bf16.mxu0 0
      %920 = vmatpush2.bf16.msra.mxu0 0
      %921 = vmatprep.subr.bf16.mxu0 0
      %922 = vmatpush2.bf16.msra.mxu0 0
      %923 = vmatprep.subr.bf16.mxu0 0
      %924 = vmatpush2.bf16.msra.mxu0 0
      %925 = vmatprep.subr.bf16.mxu0 0
      %926 = vmatpush2.bf16.msra.mxu0 0
      %927 = vmatprep.subr.bf16.mxu0 0
      %928 = vmatpush2.bf16.msra.mxu0 0
      %929 = vmatprep.subr.bf16.mxu0 0
      %930 = vmatpush2.bf16.msra.mxu0 0
      %931 = vmatprep.subr.bf16.mxu0 0
      %932 = vmatpush2.bf16.msra.mxu0 0
      %933 = vmatprep.mubr.bf16.mxu0 0
      %934 = vmatmul.mubr.bf16.gmra.mxu0 %v896
      %v935 = vpop.f32.mrf.mxu0
      %v936 = vadd.f32 0.0, %v935
      %v937 = vpop.f32.mrf.mxu0
      %v938 = vpop.f32.mrf.mxu0
      %v939 = vadd.f32 0.0, %v938
      %v940 = vpop.f32.mrf.mxu0
      %941 = vdwg.mxu0
      %v942 = vadd.f32 %v664, %v936
      %v943 = vadd.f32 %v667, %v939
      %944 = vrot.lane.b32.xlu0 %v125, 104
      %v945 = vpop.permute.xlu0 %944
      %946 = vrot.lane.b32.xlu0 %v125, 72
      %v947 = vpop.permute.xlu0 %946
      %v949 = vsel %vm130, %v945, 0
      %v952 = vsel %vm130, %v947, 0
      %954 = vmatprep.subr.bf16.mxu0 0
      %955 = vmatpush1.bf16.xpose.msra.mxu0 0
      %956 = vmatprep.subr.bf16.mxu0 0
      %957 = vmatpush1.bf16.xpose.msra.mxu0 0
      %958 = vmatprep.subr.bf16.mxu0 0
      %959 = vmatpush1.bf16.xpose.msra.mxu0 0
      %960 = vmatprep.subr.bf16.mxu0 0
      %961 = vmatpush1.bf16.xpose.msra.mxu0 0
      %962 = vmatprep.subr.bf16.mxu0 0
      %963 = vmatpush1.bf16.xpose.msra.mxu0 0
      %964 = vmatprep.subr.bf16.mxu0 0
      %965 = vmatpush1.bf16.xpose.msra.mxu0 0
      %966 = vmatprep.subr.bf16.mxu0 0
      %967 = vmatpush1.bf16.xpose.msra.mxu0 0
      %968 = vmatprep.subr.bf16.mxu0 0
      %969 = vmatpush1.bf16.xpose.msra.mxu0 %v952
      %970 = vmatprep.subr.bf16.mxu0 0
      %971 = vmatpush2.bf16.xpose.msra.mxu0 0
      %972 = vmatprep.subr.bf16.mxu0 0
      %973 = vmatpush2.bf16.xpose.msra.mxu0 0
      %974 = vmatprep.subr.bf16.mxu0 0
      %975 = vmatpush2.bf16.xpose.msra.mxu0 0
      %976 = vmatprep.subr.bf16.mxu0 0
      %977 = vmatpush2.bf16.xpose.msra.mxu0 0
      %978 = vmatprep.subr.bf16.mxu0 0
      %979 = vmatpush2.bf16.xpose.msra.mxu0 0
      %980 = vmatprep.subr.bf16.mxu0 0
      %981 = vmatpush2.bf16.xpose.msra.mxu0 0
      %982 = vmatprep.subr.bf16.mxu0 0
      %983 = vmatpush2.bf16.xpose.msra.mxu0 0
      %984 = vmatprep.subr.bf16.mxu0 0
      %985 = vmatpush2.bf16.xpose.msra.mxu0 0
      %986 = vmatprep.mubr.bf16.mxu0 0
      %987 = vmatmul.mubr.bf16.gmra.mxu0 %v949
      %v988 = vpop.f32.mrf.mxu0
      %v989 = vadd.f32 0.0, %v988
      %v990 = vpop.f32.mrf.mxu0
      %v991 = vpop.f32.mrf.mxu0
      %v992 = vpop.f32.mrf.mxu0
      %993 = vdwg.mxu0
      %994 = vrot.lane.b32.xlu0 %v126, 104
      %v995 = vpop.permute.xlu0 %994
      %996 = vrot.lane.b32.xlu0 %v126, 72
      %v997 = vpop.permute.xlu0 %996
      %v999 = vsel %vm130, %v995, 0
      %v1002 = vsel %vm130, %v997, 0
      %1004 = vmatprep.subr.bf16.mxu0 0
      %1005 = vmatpush1.bf16.xpose.msra.mxu0 0
      %1006 = vmatprep.subr.bf16.mxu0 0
      %1007 = vmatpush1.bf16.xpose.msra.mxu0 0
      %1008 = vmatprep.subr.bf16.mxu0 0
      %1009 = vmatpush1.bf16.xpose.msra.mxu0 0
      %1010 = vmatprep.subr.bf16.mxu0 0
      %1011 = vmatpush1.bf16.xpose.msra.mxu0 0
      %1012 = vmatprep.subr.bf16.mxu0 0
      %1013 = vmatpush1.bf16.xpose.msra.mxu0 0
      %1014 = vmatprep.subr.bf16.mxu0 0
      %1015 = vmatpush1.bf16.xpose.msra.mxu0 0
      %1016 = vmatprep.subr.bf16.mxu0 0
      %1017 = vmatpush1.bf16.xpose.msra.mxu0 0
      %1018 = vmatprep.subr.bf16.mxu0 0
      %1019 = vmatpush1.bf16.xpose.msra.mxu0 %v1002
      %1020 = vmatprep.subr.bf16.mxu0 0
      %1021 = vmatpush2.bf16.xpose.msra.mxu0 0
      %1022 = vmatprep.subr.bf16.mxu0 0
      %1023 = vmatpush2.bf16.xpose.msra.mxu0 0
      %1024 = vmatprep.subr.bf16.mxu0 0
      %1025 = vmatpush2.bf16.xpose.msra.mxu0 0
      %1026 = vmatprep.subr.bf16.mxu0 0
      %1027 = vmatpush2.bf16.xpose.msra.mxu0 0
      %1028 = vmatprep.subr.bf16.mxu0 0
      %1029 = vmatpush2.bf16.xpose.msra.mxu0 0
      %1030 = vmatprep.subr.bf16.mxu0 0
      %1031 = vmatpush2.bf16.xpose.msra.mxu0 0
      %1032 = vmatprep.subr.bf16.mxu0 0
      %1033 = vmatpush2.bf16.xpose.msra.mxu0 0
      %1034 = vmatprep.subr.bf16.mxu0 0
      %1035 = vmatpush2.bf16.xpose.msra.mxu0 0
      %1036 = vmatprep.mubr.bf16.mxu0 0
      %1037 = vmatmul.mubr.bf16.gmra.mxu0 %v999
      %v1038 = vpop.f32.mrf.mxu0
      %v1039 = vadd.f32 0.0, %v1038
      %v1040 = vpop.f32.mrf.mxu0
      %v1041 = vpop.f32.mrf.mxu0
      %v1042 = vpop.f32.mrf.mxu0
      %1043 = vdwg.mxu0
      %v1044 = vsel %vm130, %v989, -inf
      %1045 = vmax.xlane.f32.xlu0 %v1044
      %v1046 = vpop.xlane.xlu0 %1045
      %v1047 = vsel %vm130, %v1039, -inf
      %1048 = vmax.xlane.f32.xlu0 %v1047
      %v1049 = vpop.xlane.xlu0 %1048
      %v1050 = vsub.f32 %v989, %v1046
      %v1051 = vsub.f32 %v1039, %v1049
      %v1052 = vmul.f32 %v1050, 1.442695
      %v1053 = vpow.pop %v1052
      %v1054 = vmul.f32 %v1051, 1.442695
      %v1055 = vpow.pop %v1054
      %v1056 = vsel %vm130, %v1053, 0.0
      %1057 = vadd.xlane.f32.xlu0 %v1056
      %v1058 = vpop.xlane.xlu0 %1057
      %v1059 = vsel %vm130, %v1055, 0.0
      %1060 = vadd.xlane.f32.xlu0 %v1059
      %v1061 = vpop.xlane.xlu0 %1060
      %v1062 = vrcp.pop %v1058
      %v1063 = vrcp.pop %v1061
      %v1064 = vmul.f32 %v1053, %v1062
      %v1065 = vmul.f32 %v1055, %v1063
      %s1066 = scalar_lea.vmem [#allocation8], 24
      %1067 = vst.msk [vmem:[%s1066] sm:$0xff] %vm130, %v1064
      %1068 = vst.msk [vmem:[%s1066 + $0x20] sm:$0xff] %vm130, %v1065
      %v1069 = vpack.c.bf16 %v1064, %v1064
      %v1070 = vpack.c.bf16 %v1065, %v1065
      %1071 = vrot.lane.b32.xlu0 %v125, 40
      %v1072 = vpop.permute.xlu0 %1071
      %v1074 = vsel %vm130, %v1069, 0
      %v1077 = vsel %vm257, %v1072, 0
      %1079 = vmatprep.subr.bf16.mxu0 0
      %1080 = vmatpush1.bf16.msra.mxu0 0
      %1081 = vmatprep.subr.bf16.mxu0 0
      %1082 = vmatpush1.bf16.msra.mxu0 0
      %1083 = vmatprep.subr.bf16.mxu0 0
      %1084 = vmatpush1.bf16.msra.mxu0 0
      %1085 = vmatprep.subr.bf16.mxu0 0
      %1086 = vmatpush1.bf16.msra.mxu0 0
      %1087 = vmatprep.subr.bf16.mxu0 0
      %1088 = vmatpush1.bf16.msra.mxu0 0
      %1089 = vmatprep.subr.bf16.mxu0 0
      %1090 = vmatpush1.bf16.msra.mxu0 0
      %1091 = vmatprep.subr.bf16.mxu0 0
      %1092 = vmatpush1.bf16.msra.mxu0 0
      %1093 = vmatprep.subr.bf16.mxu0 0
      %1094 = vmatpush1.bf16.msra.mxu0 %v1077
      %1095 = vmatprep.subr.bf16.mxu0 0
      %1096 = vmatpush2.bf16.msra.mxu0 0
      %1097 = vmatprep.subr.bf16.mxu0 0
      %1098 = vmatpush2.bf16.msra.mxu0 0
      %1099 = vmatprep.subr.bf16.mxu0 0
      %1100 = vmatpush2.bf16.msra.mxu0 0
      %1101 = vmatprep.subr.bf16.mxu0 0
      %1102 = vmatpush2.bf16.msra.mxu0 0
      %1103 = vmatprep.subr.bf16.mxu0 0
      %1104 = vmatpush2.bf16.msra.mxu0 0
      %1105 = vmatprep.subr.bf16.mxu0 0
      %1106 = vmatpush2.bf16.msra.mxu0 0
      %1107 = vmatprep.subr.bf16.mxu0 0
      %1108 = vmatpush2.bf16.msra.mxu0 0
      %1109 = vmatprep.subr.bf16.mxu0 0
      %1110 = vmatpush2.bf16.msra.mxu0 0
      %1111 = vmatprep.mubr.bf16.mxu0 0
      %1112 = vmatmul.mubr.bf16.gmra.mxu0 %v1074
      %v1113 = vpop.f32.mrf.mxu0
      %v1114 = vadd.f32 0.0, %v1113
      %v1115 = vpop.f32.mrf.mxu0
      %v1116 = vpop.f32.mrf.mxu0
      %v1117 = vpop.f32.mrf.mxu0
      %1118 = vdwg.mxu0
      %1119 = vrot.lane.b32.xlu0 %v126, 40
      %v1120 = vpop.permute.xlu0 %1119
      %v1122 = vsel %vm130, %v1070, 0
      %v1125 = vsel %vm257, %v1120, 0
      %1127 = vmatprep.subr.bf16.mxu0 0
      %1128 = vmatpush1.bf16.msra.mxu0 0
      %1129 = vmatprep.subr.bf16.mxu0 0
      %1130 = vmatpush1.bf16.msra.mxu0 0
      %1131 = vmatprep.subr.bf16.mxu0 0
      %1132 = vmatpush1.bf16.msra.mxu0 0
      %1133 = vmatprep.subr.bf16.mxu0 0
      %1134 = vmatpush1.bf16.msra.mxu0 0
      %1135 = vmatprep.subr.bf16.mxu0 0
      %1136 = vmatpush1.bf16.msra.mxu0 0
      %1137 = vmatprep.subr.bf16.mxu0 0
      %1138 = vmatpush1.bf16.msra.mxu0 0
      %1139 = vmatprep.subr.bf16.mxu0 0
      %1140 = vmatpush1.bf16.msra.mxu0 0
      %1141 = vmatprep.subr.bf16.mxu0 0
      %1142 = vmatpush1.bf16.msra.mxu0 %v1125
      %1143 = vmatprep.subr.bf16.mxu0 0
      %1144 = vmatpush2.bf16.msra.mxu0 0
      %1145 = vmatprep.subr.bf16.mxu0 0
      %1146 = vmatpush2.bf16.msra.mxu0 0
      %1147 = vmatprep.subr.bf16.mxu0 0
      %1148 = vmatpush2.bf16.msra.mxu0 0
      %1149 = vmatprep.subr.bf16.mxu0 0
      %1150 = vmatpush2.bf16.msra.mxu0 0
      %1151 = vmatprep.subr.bf16.mxu0 0
      %1152 = vmatpush2.bf16.msra.mxu0 0
      %1153 = vmatprep.subr.bf16.mxu0 0
      %1154 = vmatpush2.bf16.msra.mxu0 0
      %1155 = vmatprep.subr.bf16.mxu0 0
      %1156 = vmatpush2.bf16.msra.mxu0 0
      %1157 = vmatprep.subr.bf16.mxu0 0
      %1158 = vmatpush2.bf16.msra.mxu0 0
      %1159 = vmatprep.mubr.bf16.mxu0 0
      %1160 = vmatmul.mubr.bf16.gmra.mxu0 %v1122
      %v1161 = vpop.f32.mrf.mxu0
      %v1162 = vadd.f32 0.0, %v1161
      %v1163 = vpop.f32.mrf.mxu0
      %v1164 = vpop.f32.mrf.mxu0
      %v1165 = vpop.f32.mrf.mxu0
      %1166 = vdwg.mxu0
      %v1167 = vpack.c.bf16 %v1162, %v1114
      %v1168 = vld [vmem:[%s2 + $0xc] sm:$0xf]
      %v1170 = vsel %vm130, %v1167, 0
      %v1173 = vsel %vm257, %v1168, 0
      %1175 = vmatprep.subr.bf16.mxu0 0
      %1176 = vmatpush1.bf16.msra.mxu0 0
      %1177 = vmatprep.subr.bf16.mxu0 0
      %1178 = vmatpush1.bf16.msra.mxu0 0
      %1179 = vmatprep.subr.bf16.mxu0 0
      %1180 = vmatpush1.bf16.msra.mxu0 0
      %1181 = vmatprep.subr.bf16.mxu0 0
      %1182 = vmatpush1.bf16.msra.mxu0 0
      %1183 = vmatprep.subr.bf16.mxu0 0
      %1184 = vmatpush1.bf16.msra.mxu0 0
      %1185 = vmatprep.subr.bf16.mxu0 0
      %1186 = vmatpush1.bf16.msra.mxu0 0
      %1187 = vmatprep.subr.bf16.mxu0 0
      %1188 = vmatpush1.bf16.msra.mxu0 0
      %1189 = vmatprep.subr.bf16.mxu0 0
      %1190 = vmatpush1.bf16.msra.mxu0 %v1173
      %1191 = vmatprep.subr.bf16.mxu0 0
      %1192 = vmatpush2.bf16.msra.mxu0 0
      %1193 = vmatprep.subr.bf16.mxu0 0
      %1194 = vmatpush2.bf16.msra.mxu0 0
      %1195 = vmatprep.subr.bf16.mxu0 0
      %1196 = vmatpush2.bf16.msra.mxu0 0
      %1197 = vmatprep.subr.bf16.mxu0 0
      %1198 = vmatpush2.bf16.msra.mxu0 0
      %1199 = vmatprep.subr.bf16.mxu0 0
      %1200 = vmatpush2.bf16.msra.mxu0 0
      %1201 = vmatprep.subr.bf16.mxu0 0
      %1202 = vmatpush2.bf16.msra.mxu0 0
      %1203 = vmatprep.subr.bf16.mxu0 0
      %1204 = vmatpush2.bf16.msra.mxu0 0
      %1205 = vmatprep.subr.bf16.mxu0 0
      %1206 = vmatpush2.bf16.msra.mxu0 0
      %1207 = vmatprep.mubr.bf16.mxu0 0
      %1208 = vmatmul.mubr.bf16.gmra.mxu0 %v1170
      %v1209 = vpop.f32.mrf.mxu0
      %v1210 = vadd.f32 0.0, %v1209
      %v1211 = vpop.f32.mrf.mxu0
      %v1212 = vpop.f32.mrf.mxu0
      %v1213 = vadd.f32 0.0, %v1212
      %v1214 = vpop.f32.mrf.mxu0
      %1215 = vdwg.mxu0
      %v1216 = vadd.f32 %v942, %v1210
      %v1217 = vadd.f32 %v943, %v1213
      %v1218 = vadd.f32 %v61, %v1216
      %v1219 = vadd.f32 %v62, %v1217
      %v1220 = vsel %vm80, %v1218, 0.0
      %1221 = vadd.xlane.f32.xlu0 %v1220
      %v1222 = vpop.xlane.xlu0 %1221
      %v1223 = vsel %vm80, %v1219, 0.0
      %1224 = vadd.xlane.f32.xlu0 %v1223
      %v1225 = vpop.xlane.xlu0 %1224
      %v1226 = vrcp.pop 32.0
      %v1227 = vmul.f32 %v1222, %v1226
      %v1228 = vmul.f32 %v1225, %v1226
      %v1229 = vsub.f32 %v1218, %v1227
      %v1230 = vsub.f32 %v1219, %v1228
      %v1231 = vmul.f32 %v1229, %v1229
      %v1232 = vmul.f32 %v1230, %v1230
      %v1233 = vsel %vm80, %v1231, 0.0
      %1234 = vadd.xlane.f32.xlu0 %v1233
      %v1235 = vpop.xlane.xlu0 %1234
      %v1236 = vsel %vm80, %v1232, 0.0
      %1237 = vadd.xlane.f32.xlu0 %v1236
      %v1238 = vpop.xlane.xlu0 %1237
      %v1239 = vmul.f32 %v1235, %v1226
      %v1240 = vmul.f32 %v1238, %v1226
      %v1241 = vadd.f32 %v1239, 1e-05
      %v1242 = vadd.f32 %v1240, 1e-05
      %v1243 = vrsqrt.pop %v1241
      %v1244 = vrsqrt.pop %v1242
      %v1245 = vmul.f32 %v1229, %v1243
      %v1246 = vmul.f32 %v1230, %v1244
      %v1247 = vld [vmem:[%s7] sm:$0x1]
      %v1249 = vlaneseq
      %v1250 = vshrl.u32 %v1249, 7
      %v1251 = vsub.s32 0, %v1250
      %v1252 = vrot.slane %v1247, %v1251
      %v1254 = vmul.f32 %v1245, %v1252
      %v1255 = vmul.f32 %v1246, %v1252
      %v1256 = vld [vmem:[%s8] sm:$0x1]
      %v1258 = vlaneseq
      %v1259 = vshrl.u32 %v1258, 7
      %v1260 = vsub.s32 0, %v1259
      %v1261 = vrot.slane %v1256, %v1260
      %v1263 = vadd.f32 %v1254, %v1261
      %v1264 = vadd.f32 %v1255, %v1261
      %1265 = vst.msk [vmem:[#allocation2] sm:$0xff] %vm80, %v1263
      %1266 = vst.msk [vmem:[#allocation2 + $0x8] sm:$0xff] %vm80, %v1264
      %1267 = vst.msk [vmem:[#allocation3] sm:$0xff] %vm80, 0.0
      %1268 = vst.msk [vmem:[#allocation3 + $0x8] sm:$0xff] %vm80, 0.0
    $region53: #{tpu_custom_call.1} parent=1 // pred_fallthru
      _
    %v1269 = vld [vmem:[#allocation2] sm:$0xff]
    %v1270 = vld [vmem:[#allocation2 + $0x8] sm:$0xff]
    %v1271 = vpack.c.bf16 %v1270, %v1269
    %v1272 = vld [vmem:[#allocation4] sm:$0xf]
    %v1273 = vld [vmem:[#allocation4 + $0x4] sm:$0xf]
    %v1274 = vld [vmem:[#allocation4 + $0x8] sm:$0xf]
    %v1275 = vld [vmem:[#allocation4 + $0xc] sm:$0xf]
    %v1276 = vld [vmem:[%s4] sm:$0x1]
    %v1278 = vlaneseq
    %v1279 = vshrl.u32 %v1278, 7
    %v1280 = vsub.s32 0, %v1279
    %v1281 = vrot.slane %v1276, %v1280
    %v1287 = vunpack.c.l.b16 %v1272
    %v1288 = vunpack.c.l.b16 %v1273
    %v1289 = vunpack.c.l.b16 %v1274
    %v1290 = vunpack.c.l.b16 %v1275
    %v1291 = vpack.c.b16 %v1288, %v1287
    %v1292 = vpack.c.b16 %v1290, %v1289
    %vm1295 = vcmask 261120
    %v1297 = vsel %vm1295, %v1271, 0
    %1299 = vmatprep.subr.bf16.mxu0 0
    %1300 = vmatpush1.bf16.msra.mxu0 0
    %1301 = vmatprep.subr.bf16.mxu0 0
    %1302 = vmatpush1.bf16.msra.mxu0 0
    %1303 = vmatprep.subr.bf16.mxu0 0
    %1304 = vmatpush1.bf16.msra.mxu0 0
    %1305 = vmatprep.subr.bf16.mxu0 0
    %1306 = vmatpush1.bf16.msra.mxu0 0
    %1307 = vmatprep.subr.bf16.mxu0 0
    %1308 = vmatpush1.bf16.msra.mxu0 0
    %1309 = vmatprep.subr.bf16.mxu0 0
    %1310 = vmatpush1.bf16.msra.mxu0 0
    %1311 = vmatprep.subr.bf16.mxu0 0
    %1312 = vmatpush1.bf16.msra.mxu0 %v1292
    %1313 = vmatprep.subr.bf16.mxu0 0
    %1314 = vmatpush1.bf16.msra.mxu0 %v1291
    %1315 = vmatprep.subr.bf16.mxu0 0
    %1316 = vmatpush2.bf16.msra.mxu0 0
    %1317 = vmatprep.subr.bf16.mxu0 0
    %1318 = vmatpush2.bf16.msra.mxu0 0
    %1319 = vmatprep.subr.bf16.mxu0 0
    %1320 = vmatpush2.bf16.msra.mxu0 0
    %1321 = vmatprep.subr.bf16.mxu0 0
    %1322 = vmatpush2.bf16.msra.mxu0 0
    %1323 = vmatprep.subr.bf16.mxu0 0
    %1324 = vmatpush2.bf16.msra.mxu0 0
    %1325 = vmatprep.subr.bf16.mxu0 0
    %1326 = vmatpush2.bf16.msra.mxu0 0
    %1327 = vmatprep.subr.bf16.mxu0 0
    %1328 = vmatpush2.bf16.msra.mxu0 0
    %1329 = vmatprep.subr.bf16.mxu0 0
    %1330 = vmatpush2.bf16.msra.mxu0 0
    %1331 = vmatprep.mubr.bf16.mxu0 0
    %1332 = vmatmul.mubr.bf16.gmra.mxu0 %v1297
    %v1333 = vpop.f32.mrf.mxu0
    %v1334 = vadd.f32 %v1281, %v1333
    %v1335 = vpop.f32.mrf.mxu0
    %v1336 = vpop.f32.mrf.mxu0
    %v1337 = vadd.f32 %v1281, %v1336
    %v1338 = vpop.f32.mrf.mxu0
    %1339 = vdwg.mxu0
    %v1340 = vmax.f32 %v1334, 0.0
    %v1341 = vmax.f32 %v1337, 0.0
    %v1342 = vld [vmem:[#allocation3] sm:$0xff]
    %v1343 = vld [vmem:[#allocation3 + $0x8] sm:$0xff]
    %v1344 = vpack.c.bf16 %v1341, %v1340
    %v1345 = vld [vmem:[%s5] sm:$0xf]
    %v1346 = vld [vmem:[%s5 + $0x4] sm:$0xf]
    %v1347 = vld [vmem:[%s5 + $0x8] sm:$0xf]
    %v1348 = vld [vmem:[%s5 + $0xc] sm:$0xf]
    %v1349 = vld [vmem:[%s5 + $0x10] sm:$0xf]
    %v1350 = vld [vmem:[%s5 + $0x14] sm:$0xf]
    %v1351 = vld [vmem:[%s5 + $0x18] sm:$0xf]
    %v1352 = vld [vmem:[%s5 + $0x1c] sm:$0xf]
    %v1361 = vunpack.c.l.b16 %v1345
    %v1362 = vunpack.c.l.b16 %v1346
    %v1363 = vunpack.c.l.b16 %v1347
    %v1364 = vunpack.c.l.b16 %v1348
    %v1365 = vunpack.c.l.b16 %v1349
    %v1366 = vunpack.c.l.b16 %v1350
    %v1367 = vunpack.c.l.b16 %v1351
    %v1368 = vunpack.c.l.b16 %v1352
    %v1369 = vpack.c.b16 %v1362, %v1361
    %v1370 = vpack.c.b16 %v1364, %v1363
    %v1371 = vpack.c.b16 %v1366, %v1365
    %v1372 = vpack.c.b16 %v1368, %v1367
    %vm1377 = vcmask 523264
    %v1379 = vsel %vm1377, %v1344, 0
    %1381 = vmatprep.subr.bf16.mxu0 0
    %1382 = vmatpush1.bf16.msra.mxu0 0
    %1383 = vmatprep.subr.bf16.mxu0 0
    %1384 = vmatpush1.bf16.msra.mxu0 0
    %1385 = vmatprep.subr.bf16.mxu0 0
    %1386 = vmatpush1.bf16.msra.mxu0 0
    %1387 = vmatprep.subr.bf16.mxu0 0
    %1388 = vmatpush1.bf16.msra.mxu0 0
    %1389 = vmatprep.subr.bf16.mxu0 0
    %1390 = vmatpush1.bf16.msra.mxu0 %v1372
    %1391 = vmatprep.subr.bf16.mxu0 0
    %1392 = vmatpush1.bf16.msra.mxu0 %v1371
    %1393 = vmatprep.subr.bf16.mxu0 0
    %1394 = vmatpush1.bf16.msra.mxu0 %v1370
    %1395 = vmatprep.subr.bf16.mxu0 0
    %1396 = vmatpush1.bf16.msra.mxu0 %v1369
    %1397 = vmatprep.subr.bf16.mxu0 0
    %1398 = vmatpush2.bf16.msra.mxu0 0
    %1399 = vmatprep.subr.bf16.mxu0 0
    %1400 = vmatpush2.bf16.msra.mxu0 0
    %1401 = vmatprep.subr.bf16.mxu0 0
    %1402 = vmatpush2.bf16.msra.mxu0 0
    %1403 = vmatprep.subr.bf16.mxu0 0
    %1404 = vmatpush2.bf16.msra.mxu0 0
    %1405 = vmatprep.subr.bf16.mxu0 0
    %1406 = vmatpush2.bf16.msra.mxu0 0
    %1407 = vmatprep.subr.bf16.mxu0 0
    %1408 = vmatpush2.bf16.msra.mxu0 0
    %1409 = vmatprep.subr.bf16.mxu0 0
    %1410 = vmatpush2.bf16.msra.mxu0 0
    %1411 = vmatprep.subr.bf16.mxu0 0
    %1412 = vmatpush2.bf16.msra.mxu0 0
    %1413 = vmatprep.mubr.bf16.mxu0 0
    %1414 = vmatmul.mubr.bf16.gmra.mxu0 %v1379
    %v1415 = vpop.f32.mrf.mxu0
    %v1416 = vadd.f32 0.0, %v1415
    %v1417 = vpop.f32.mrf.mxu0
    %v1418 = vpop.f32.mrf.mxu0
    %v1419 = vadd.f32 0.0, %v1418
    %v1420 = vpop.f32.mrf.mxu0
    %1421 = vdwg.mxu0
    %v1422 = vadd.f32 %v1342, %v1416
    %v1423 = vadd.f32 %v1343, %v1419
    %1424 = vst.msk [vmem:[#allocation3] sm:$0xff] %vm1295, %v1422
    %1425 = vst.msk [vmem:[#allocation3 + $0x8] sm:$0xff] %vm1295, %v1423
    // Predicated region
    $region54: #{tpu_custom_call.1} parent=1 // pred_check
      %p1426 = pneg %p57
    $region55: #{tpu_custom_call.1} parent=1 // pred_check_branch
      %1428 = sbr.rel (%p1426) target = $region57
    $region56: #{tpu_custom_call.1} parent=1 // pred_region
      %v1429 = vld [vmem:[%s0] sm:$0xff]
      %v1430 = vld [vmem:[%s0 + $0x8] sm:$0xff]
      %v1431 = vld [vmem:[#allocation2] sm:$0xff]
      %v1432 = vld [vmem:[#allocation2 + $0x8] sm:$0xff]
      %v1433 = vld [vmem:[#allocation3] sm:$0xff]
      %v1434 = vld [vmem:[#allocation3 + $0x8] sm:$0xff]
      %v1435 = vadd.f32 %v1431, %v1433
      %v1436 = vadd.f32 %v1432, %v1434
      %v1437 = vld [vmem:[%s6] sm:$0x1]
      %v1439 = vlaneseq
      %v1440 = vshrl.u32 %v1439, 7
      %v1441 = vsub.s32 0, %v1440
      %v1442 = vrot.slane %v1437, %v1441
      %v1444 = vadd.f32 %v1435, %v1442
      %v1445 = vadd.f32 %v1436, %v1442
      %v1446 = vsel %vm1295, %v1444, 0.0
      %1447 = vadd.xlane.f32.xlu0 %v1446
      %v1448 = vpop.xlane.xlu0 %1447
      %v1449 = vsel %vm1295, %v1445, 0.0
      %1450 = vadd.xlane.f32.xlu0 %v1449
      %v1451 = vpop.xlane.xlu0 %1450
      %v1452 = vrcp.pop 32.0
      %v1453 = vmul.f32 %v1448, %v1452
      %v1454 = vmul.f32 %v1451, %v1452
      %v1455 = vsub.f32 %v1444, %v1453
      %v1456 = vsub.f32 %v1445, %v1454
      %v1457 = vmul.f32 %v1455, %v1455
      %v1458 = vmul.f32 %v1456, %v1456
      %v1459 = vsel %vm1295, %v1457, 0.0
      %1460 = vadd.xlane.f32.xlu0 %v1459
      %v1461 = vpop.xlane.xlu0 %1460
      %v1462 = vsel %vm1295, %v1458, 0.0
      %1463 = vadd.xlane.f32.xlu0 %v1462
      %v1464 = vpop.xlane.xlu0 %1463
      %v1465 = vmul.f32 %v1461, %v1452
      %v1466 = vmul.f32 %v1464, %v1452
      %v1467 = vadd.f32 %v1465, 1e-05
      %v1468 = vadd.f32 %v1466, 1e-05
      %v1469 = vrsqrt.pop %v1467
      %v1470 = vrsqrt.pop %v1468
      %v1471 = vmul.f32 %v1455, %v1469
      %v1472 = vmul.f32 %v1456, %v1470
      %v1473 = vld [vmem:[%s9] sm:$0x1]
      %v1475 = vlaneseq
      %v1476 = vshrl.u32 %v1475, 7
      %v1477 = vsub.s32 0, %v1476
      %v1478 = vrot.slane %v1473, %v1477
      %v1480 = vmul.f32 %v1471, %v1478
      %v1481 = vmul.f32 %v1472, %v1478
      %v1482 = vld [vmem:[%s10] sm:$0x1]
      %v1484 = vlaneseq
      %v1485 = vshrl.u32 %v1484, 7
      %v1486 = vsub.s32 0, %v1485
      %v1487 = vrot.slane %v1482, %v1486
      %v1489 = vadd.f32 %v1480, %v1487
      %v1490 = vadd.f32 %v1481, %v1487
      %v1491 = vadd.f32 %v1489, %v1429
      %v1492 = vadd.f32 %v1490, %v1430
      %1493 = vst.msk [vmem:[#allocation7] sm:$0xff] %vm1295, %v1491
      %1494 = vst.msk [vmem:[#allocation7 + $0x8] sm:$0xff] %vm1295, %v1492
    $region57: #{tpu_custom_call.1} parent=1 // pred_fallthru
      _
    // Predicated region
    $region58: #{tpu_custom_call.1} parent=1 // pred_check
      _
    $region59: #{tpu_custom_call.1} parent=1 // pred_check_branch
      %1496 = sbr.rel (0) target = $region61
    $region60: #{tpu_custom_call.1} parent=1 // pred_region
      %s1498 = ssub.s32 256, 256
      %1499 = vsyncadd [#allocation6], %s1498
      %s1500 = sshll.u32 [#allocation7], 4
      %s1501 = int_to_ptr.vmem [resolvable:$true] %s1500
      %1506 = dma.vmem_to_hbm [thread:$0]  %s1501, 256, %s11, [#allocation6], 128, 128, 8
    $region61: #{tpu_custom_call.1} parent=1 // pred_fallthru
      _
    // Predicated region
    $region62: #{tpu_custom_call.1} parent=1 // pred_check
      _
    $region63: #{tpu_custom_call.1} parent=1 // pred_check_branch
      %1508 = sbr.rel (0) target = $region65
    $region64: #{tpu_custom_call.1} parent=1 // pred_region
      %s1510 = ssub.s32 1024, 1024
      %1511 = vsyncadd [#allocation9], %s1510
      %s1512 = sshll.u32 [#allocation8], 4
      %s1513 = int_to_ptr.vmem [resolvable:$true] %s1512
      %1518 = dma.vmem_to_hbm [thread:$0]  %s1513, 1024, %s12, [#allocation9], 128, 128, 8
    $region65: #{tpu_custom_call.1} parent=1 // pred_fallthru
      _
    // Predicated region
    $region66: #{tpu_custom_call.1} parent=1 // pred_check
      _
    $region67: #{tpu_custom_call.1} parent=1 // pred_check_branch
      %1520 = sbr.rel (0) target = $region69
    $region68: #{tpu_custom_call.1} parent=1 // pred_region
      %1521 = dma.done [#allocation6], 256
    $region69: #{tpu_custom_call.1} parent=1 // pred_fallthru
      _
    // Predicated region
    $region70: #{tpu_custom_call.1} parent=1 // pred_check
      _
    $region71: #{tpu_custom_call.1} parent=1 // pred_check_branch
      %1523 = sbr.rel (0) target = $region73
    $region72: #{tpu_custom_call.1} parent=1 // pred_region
      %1524 = dma.done [#allocation9], 1024
    $region73: #{tpu_custom_call.1} parent=1 // pred_fallthru
      _
    %1525 = vsyncpa [#allocation5], 1
    %1526 = vsyncpa [#allocation6], 1
    %1527 = vsyncpa [#allocation9], 1

</llo_original>
